<compile_context>
chip_gen: v7x
topology: tpu7x:2x2x1
jax: 0.10.0
libtpu: 0.0.40
codegen_flags: <defaults>
</compile_context>

<pallas_src>
import functools

import jax
import jax.numpy as jnp
from jax.experimental import pallas as pl
from jax.experimental.pallas import tpu as pltpu

_PAD = 8  # left halo width in the scratch -> interior store is sublane-aligned


# ----------------------------------------------------------------------------
# Fused Pallas kernel: BN+ReLU -> 1x1 -> BN+ReLU -> 3x3 -> BN+ReLU -> 1x1 + res
# ----------------------------------------------------------------------------
def _residual_kernel(*refs, H, W, has_proj):
    if has_proj:
        (x_ref, s0_ref, c0_ref, w1_ref, b1_ref, w2_ref, b2_ref,
         w3_ref, b3_ref, w4_ref, b4_ref, o_ref, hpad_ref) = refs
    else:
        (x_ref, s0_ref, c0_ref, w1_ref, b1_ref, w2_ref, b2_ref,
         w3_ref, b3_ref, o_ref, hpad_ref) = refs
        w4_ref = b4_ref = None

    Cin = x_ref.shape[-1]
    Cmid = w1_ref.shape[1]
    Cout = w3_ref.shape[1]

    # Input as (H*W, Cin); kept for the residual path as well.
    xf = x_ref[0].reshape(H * W, Cin).astype(jnp.float32)

    # Pre-BatchNorm (folded) + ReLU.
    h0 = jnp.maximum(xf * s0_ref[...] + c0_ref[...], 0.0)

    # conv1 (1x1) with conv-bias + BN1 folded into w1/b1, then ReLU.
    h1 = jnp.dot(h0, w1_ref[...], preferred_element_type=jnp.float32) + b1_ref[...]
    h1 = jnp.maximum(h1, 0.0)

    # Zero-padded hidden activation lives entirely in VMEM scratch:
    # data at rows [1, H+1), cols [_PAD, _PAD+W); everything else is zero halo.
    hpad_ref[...] = jnp.zeros_like(hpad_ref)
    hpad_ref[1:H + 1, _PAD:_PAD + W, :] = h1.reshape(H, W, Cmid)

    # conv2 (3x3, SAME, stride 1) + BN2 + ReLU as 9 shifted (H*W, Cmid) matmuls.
    acc = None
    for dh in range(3):
        for dw in range(3):
            win = hpad_ref[dh:dh + H, _PAD - 1 + dw:_PAD - 1 + dw + W, :]
            wk = w2_ref[(dh * 3 + dw) * Cmid:(dh * 3 + dw + 1) * Cmid, :]
            d = jnp.dot(win.reshape(H * W, Cmid), wk,
                        preferred_element_type=jnp.float32)
            acc = d if acc is None else acc + d
    h2 = jnp.maximum(acc + b2_ref[...], 0.0)

    # conv3 (1x1) + bias, with the residual branch fused in.
    y = jnp.dot(h2, w3_ref[...], preferred_element_type=jnp.float32) + b3_ref[...]
    if has_proj:
        y = y + jnp.dot(xf, w4_ref[...], preferred_element_type=jnp.float32) + b4_ref[...]
    else:
        y = y + xf  # numIn == numOut -> identity residual
    o_ref[0] = y.reshape(H, W, Cout).astype(o_ref.dtype)


def residual_forward(x, folded):
    """x: (N, H, W, numIn) NHWC.  folded: host-folded params (see fold_params)."""
    N, H, W, Cin = x.shape
    Cmid = folded["w1"].shape[1]
    Cout = folded["w3"].shape[1]
    has_proj = "w4" in folded

    args = [
        x,
        folded["s0"].reshape(1, Cin), folded["c0"].reshape(1, Cin),
        folded["w1"], folded["b1"].reshape(1, Cmid),
        folded["w2"], folded["b2"].reshape(1, Cmid),
        folded["w3"], folded["b3"].reshape(1, Cout),
    ]
    in_specs = [
        pl.BlockSpec((1, H, W, Cin), lambda n: (n, 0, 0, 0)),
        pl.BlockSpec((1, Cin), lambda n: (0, 0)),
        pl.BlockSpec((1, Cin), lambda n: (0, 0)),
        pl.BlockSpec((Cin, Cmid), lambda n: (0, 0)),
        pl.BlockSpec((1, Cmid), lambda n: (0, 0)),
        pl.BlockSpec((9 * Cmid, Cmid), lambda n: (0, 0)),
        pl.BlockSpec((1, Cmid), lambda n: (0, 0)),
        pl.BlockSpec((Cmid, Cout), lambda n: (0, 0)),
        pl.BlockSpec((1, Cout), lambda n: (0, 0)),
    ]
    if has_proj:
        args += [folded["w4"], folded["b4"].reshape(1, Cout)]
        in_specs += [pl.BlockSpec((Cin, Cout), lambda n: (0, 0)),
                     pl.BlockSpec((1, Cout), lambda n: (0, 0))]

    kernel = functools.partial(_residual_kernel, H=H, W=W, has_proj=has_proj)
    return pl.pallas_call(
        kernel,
        out_shape=jax.ShapeDtypeStruct((N, H, W, Cout), x.dtype),
        grid=(N,),
        in_specs=in_specs,
        out_specs=pl.BlockSpec((1, H, W, Cout), lambda n: (n, 0, 0, 0)),
        scratch_shapes=[pltpu.VMEM((H + 2, W + _PAD + 1, Cmid), jnp.float32)],
        compiler_params=pltpu.CompilerParams(dimension_semantics=("parallel",)),
    )(*args)


# ----------------------------------------------------------------------------
# Host-side folding of BatchNorm (eval mode) + conv biases into scale/bias
# ----------------------------------------------------------------------------
def fold_params(raw, eps=1e-5):
    def bn_fold(prm):
        g, b, m, v = prm
        s = g / jnp.sqrt(v + eps)
        return s, b - m * s

    s0, c0 = bn_fold(raw["bn"])
    s1, t1 = bn_fold(raw["bn1"])
    s2, t2 = bn_fold(raw["bn2"])

    cmid, num_in = raw["conv1_w"].shape[:2]
    num_out = raw["conv3_w"].shape[0]

    w1 = raw["conv1_w"].reshape(cmid, num_in).T * s1[None, :]
    b1 = raw["conv1_b"] * s1 + t1
    # (O, I, 3, 3) -> (kh, kw, I, O) -> (9*I, O); row = (kh*3+kw)*I + i
    w2 = jnp.transpose(raw["conv2_w"], (2, 3, 1, 0)).reshape(9 * cmid, cmid) * s2[None, :]
    b2 = raw["conv2_b"] * s2 + t2
    w3 = raw["conv3_w"].reshape(num_out, cmid).T
    b3 = raw["conv3_b"]

    folded = {"s0": s0, "c0": c0, "w1": w1, "b1": b1,
              "w2": w2, "b2": b2, "w3": w3, "b3": b3}
    if "conv4_w" in raw:
        folded["w4"] = raw["conv4_w"].reshape(num_out, num_in).T
        folded["b4"] = raw["conv4_b"]
    return folded


# ----------------------------------------------------------------------------
# Pure-JAX reference (unfolded params) for numerical validation
# ----------------------------------------------------------------------------
def residual_reference(x, raw, eps=1e-5):
    def bn(y, prm):
        g, b, m, v = prm
        return (y - m) * (g / jnp.sqrt(v + eps)) + b

    def conv1x1(y, w, b):  # w: OIHW (O, I, 1, 1)
        o, i = w.shape[0], w.shape[1]
        return jnp.einsum("nhwc,co->nhwo", y, w.reshape(o, i).T) + b

    out = jnp.maximum(bn(x, raw["bn"]), 0.0)
    out = jnp.maximum(bn(conv1x1(out, raw["conv1_w"], raw["conv1_b"]), raw["bn1"]), 0.0)
    w2 = jnp.transpose(raw["conv2_w"], (2, 3, 1, 0))  # HWIO
    out = jax.lax.conv_general_dilated(
        out, w2, window_strides=(1, 1), padding="SAME",
        dimension_numbers=("NHWC", "HWIO", "NHWC")) + raw["conv2_b"]
    out = jnp.maximum(bn(out, raw["bn2"]), 0.0)
    out = conv1x1(out, raw["conv3_w"], raw["conv3_b"])
    if "conv4_w" in raw:
        res = conv1x1(x, raw["conv4_w"], raw["conv4_b"])
    else:
        res = x
    return out + res


# ----------------------------------------------------------------------------
# Deterministic synthetic parameters (PyTorch layout: OIHW conv weights)
# ----------------------------------------------------------------------------
def init_residual_params(key, num_in, num_out):
    cmid = num_out // 2
    ks = iter(jax.random.split(key, 16))

    def conv_w(k, cout, cin, kh, kw):
        fan = cin * kh * kw
        return jax.random.normal(k, (cout, cin, kh, kw), jnp.float32) / jnp.sqrt(fan)

    def conv_b(k, c):
        return 0.2 * jax.random.normal(k, (c,), jnp.float32)

    def bn_params(k, c):
        k1, k2, k3, k4 = jax.random.split(k, 4)
        gamma = 1.0 + 0.2 * jax.random.normal(k1, (c,), jnp.float32)
        beta = 0.3 * jax.random.normal(k2, (c,), jnp.float32)
        mean = 0.3 * jax.random.normal(k3, (c,), jnp.float32)
        var = jnp.abs(1.0 + 0.2 * jax.random.normal(k4, (c,), jnp.float32)) + 0.1
        return (gamma, beta, mean, var)

    raw = {
        "bn": bn_params(next(ks), num_in),
        "conv1_w": conv_w(next(ks), cmid, num_in, 1, 1),
        "conv1_b": conv_b(next(ks), cmid),
        "bn1": bn_params(next(ks), cmid),
        "conv2_w": conv_w(next(ks), cmid, cmid, 3, 3),
        "conv2_b": conv_b(next(ks), cmid),
        "bn2": bn_params(next(ks), cmid),
        "conv3_w": conv_w(next(ks), num_out, cmid, 1, 1),
        "conv3_b": conv_b(next(ks), num_out),
    }
    if num_in != num_out:
        raw["conv4_w"] = conv_w(next(ks), num_out, num_in, 1, 1)
        raw["conv4_b"] = conv_b(next(ks), num_out)
    return raw, fold_params(raw)


# ----------------------------------------------------------------------------
if __name__ == "__main__":
    key = jax.random.PRNGKey(0)
    N, H, W = 2, 16, 16
    k1, k2, k3, k4 = jax.random.split(key, 4)

    # Case A: numIn != numOut -> conv4 projection residual (lane-dense Cout=128).
    raw_a, folded_a = init_residual_params(k1, num_in=64, num_out=128)
    x_a = jax.random.normal(k2, (N, H, W, 64), jnp.float32)

    # Case B: numIn == numOut -> identity residual branch.
    raw_b, folded_b = init_residual_params(k3, num_in=64, num_out=64)
    x_b = jax.random.normal(k4, (N, H, W, 64), jnp.float32)

    fwd = jax.jit(residual_forward)
    out_a = jax.block_until_ready(fwd(x_a, folded_a))
    out_b = jax.block_until_ready(fwd(x_b, folded_b))

    ref_a = jax.block_until_ready(residual_reference(x_a, raw_a))
    ref_b = jax.block_until_ready(residual_reference(x_b, raw_b))

    for out, ref, cout in ((out_a, ref_a, 128), (out_b, ref_b, 64)):
        assert out.shape == (N, H, W, cout)
        assert bool(jnp.all(jnp.isfinite(out)))
        err = float(jnp.max(jnp.abs(out - ref)))
        assert err < 5e-2, f"max abs error vs reference: {err}"

    print("KERNEL_OK")
</pallas_src>

<mosaic_0001>
module attributes {stable_mosaic.version = 11 : i64} {
  func.func @_residual_kernel(%arg0: i32, %arg1: memref<1x16x16x64xf32, #tpu.memory_space<vmem>>, %arg2: memref<1x64xf32, #tpu.memory_space<vmem>>, %arg3: memref<1x64xf32, #tpu.memory_space<vmem>>, %arg4: memref<64x64xf32, #tpu.memory_space<vmem>>, %arg5: memref<1x64xf32, #tpu.memory_space<vmem>>, %arg6: memref<576x64xf32, #tpu.memory_space<vmem>>, %arg7: memref<1x64xf32, #tpu.memory_space<vmem>>, %arg8: memref<64x128xf32, #tpu.memory_space<vmem>>, %arg9: memref<1x128xf32, #tpu.memory_space<vmem>>, %arg10: memref<64x128xf32, #tpu.memory_space<vmem>>, %arg11: memref<1x128xf32, #tpu.memory_space<vmem>>, %arg12: memref<1x16x16x128xf32, #tpu.memory_space<vmem>>, %arg13: memref<18x25x64xf32, #tpu.memory_space<vmem>>) attributes {dimension_semantics = [#tpu.dimension_semantics<parallel>], iteration_bounds = array<i64: 2>, scalar_prefetch = 0 : i64, scratch_operands = 1 : i64, tpu.core_type = #tpu.core_type<tc>, window_params = [{transform_indices = @transform_0, window_bounds = array<i64: 1, 16, 16, 64>}, {pipeline_mode = #tpu.pipeline_mode<synchronous>, transform_indices = @transform_1, window_bounds = array<i64: 1, 64>}, {pipeline_mode = #tpu.pipeline_mode<synchronous>, transform_indices = @transform_2, window_bounds = array<i64: 1, 64>}, {pipeline_mode = #tpu.pipeline_mode<synchronous>, transform_indices = @transform_3, window_bounds = array<i64: 64, 64>}, {pipeline_mode = #tpu.pipeline_mode<synchronous>, transform_indices = @transform_4, window_bounds = array<i64: 1, 64>}, {pipeline_mode = #tpu.pipeline_mode<synchronous>, transform_indices = @transform_5, window_bounds = array<i64: 576, 64>}, {pipeline_mode = #tpu.pipeline_mode<synchronous>, transform_indices = @transform_6, window_bounds = array<i64: 1, 64>}, {pipeline_mode = #tpu.pipeline_mode<synchronous>, transform_indices = @transform_7, window_bounds = array<i64: 64, 128>}, {pipeline_mode = #tpu.pipeline_mode<synchronous>, transform_indices = @transform_8, window_bounds = array<i64: 1, 128>}, {pipeline_mode = #tpu.pipeline_mode<synchronous>, transform_indices = @transform_9, window_bounds = array<i64: 64, 128>}, {pipeline_mode = #tpu.pipeline_mode<synchronous>, transform_indices = @transform_10, window_bounds = array<i64: 1, 128>}, {transform_indices = @transform_11, window_bounds = array<i64: 1, 16, 16, 128>}]} {
    %c0 = arith.constant 0 : index
    %c0_0 = arith.constant 0 : index
    %c0_1 = arith.constant 0 : index
    %c0_2 = arith.constant 0 : index
    %0 = vector.load %arg1[%c0, %c0_0, %c0_1, %c0_2] : memref<1x16x16x64xf32, #tpu.memory_space<vmem>>, vector<1x16x16x64xf32>
    %1 = vector.shape_cast %0 : vector<1x16x16x64xf32> to vector<16x16x64xf32>
    %2 = vector.shape_cast %1 : vector<16x16x64xf32> to vector<256x64xf32>
    %c0_3 = arith.constant 0 : index
    %c0_4 = arith.constant 0 : index
    %3 = vector.load %arg2[%c0_3, %c0_4] : memref<1x64xf32, #tpu.memory_space<vmem>>, vector<1x64xf32>
    %4 = vector.broadcast %3 : vector<1x64xf32> to vector<256x64xf32>
    %5 = arith.mulf %2, %4 : vector<256x64xf32>
    %c0_5 = arith.constant 0 : index
    %c0_6 = arith.constant 0 : index
    %6 = vector.load %arg3[%c0_5, %c0_6] : memref<1x64xf32, #tpu.memory_space<vmem>>, vector<1x64xf32>
    %7 = vector.broadcast %6 : vector<1x64xf32> to vector<256x64xf32>
    %8 = arith.addf %5, %7 : vector<256x64xf32>
    %cst = arith.constant 0.000000e+00 : f32
    %9 = vector.broadcast %cst : f32 to vector<256x64xf32>
    %10 = arith.maximumf %8, %9 : vector<256x64xf32>
    %c0_7 = arith.constant 0 : index
    %c0_8 = arith.constant 0 : index
    %11 = vector.load %arg4[%c0_7, %c0_8] : memref<64x64xf32, #tpu.memory_space<vmem>>, vector<64x64xf32>
    %cst_9 = arith.constant dense<0.000000e+00> : vector<256x64xf32>
    %12 = tpu.matmul %10, %11, %cst_9 {dimension_numbers = #tpu.dot_dimension_numbers<[1], [0], [0], [1], [0, 0, 1, 1], [], []>} : vector<256x64xf32>, vector<64x64xf32>, vector<256x64xf32> -> vector<256x64xf32>
    %c0_10 = arith.constant 0 : index
    %c0_11 = arith.constant 0 : index
    %13 = vector.load %arg5[%c0_10, %c0_11] : memref<1x64xf32, #tpu.memory_space<vmem>>, vector<1x64xf32>
    %14 = vector.broadcast %13 : vector<1x64xf32> to vector<256x64xf32>
    %15 = arith.addf %12, %14 : vector<256x64xf32>
    %cst_12 = arith.constant 0.000000e+00 : f32
    %16 = vector.broadcast %cst_12 : f32 to vector<256x64xf32>
    %17 = arith.maximumf %15, %16 : vector<256x64xf32>
    %cst_13 = arith.constant 0.000000e+00 : f32
    %18 = vector.broadcast %cst_13 : f32 to vector<18x25x64xf32>
    %c0_14 = arith.constant 0 : index
    %c0_15 = arith.constant 0 : index
    %c0_16 = arith.constant 0 : index
    %19 = vector.load %arg13[%c0_14, %c0_15, %c0_16] : memref<18x25x64xf32, #tpu.memory_space<vmem>>, vector<18x25x64xf32>
    tpu.vector_store %arg13[%c0_14, %c0_15, %c0_16], %18 {strides = array<i32>} : memref<18x25x64xf32, #tpu.memory_space<vmem>>, vector<18x25x64xf32>,
    %20 = vector.shape_cast %17 : vector<256x64xf32> to vector<16x16x64xf32>
    %c1 = arith.constant 1 : index
    %c8 = arith.constant 8 : index
    %c0_17 = arith.constant 0 : index
    %21 = vector.load %arg13[%c1, %c8, %c0_17] : memref<18x25x64xf32, #tpu.memory_space<vmem>>, vector<16x16x64xf32>
    tpu.vector_store %arg13[%c1, %c8, %c0_17], %20 {strides = array<i32>} : memref<18x25x64xf32, #tpu.memory_space<vmem>>, vector<16x16x64xf32>,
    %c0_18 = arith.constant 0 : index
    %c7 = arith.constant 7 : index
    %c0_19 = arith.constant 0 : index
    %22 = vector.load %arg13[%c0_18, %c7, %c0_19] : memref<18x25x64xf32, #tpu.memory_space<vmem>>, vector<16x16x64xf32>
    %c0_20 = arith.constant 0 : index
    %c0_21 = arith.constant 0 : index
    %23 = vector.load %arg6[%c0_20, %c0_21] : memref<576x64xf32, #tpu.memory_space<vmem>>, vector<64x64xf32>
    %24 = vector.shape_cast %22 : vector<16x16x64xf32> to vector<256x64xf32>
    %cst_22 = arith.constant dense<0.000000e+00> : vector<256x64xf32>
    %25 = tpu.matmul %24, %23, %cst_22 {dimension_numbers = #tpu.dot_dimension_numbers<[1], [0], [0], [1], [0, 0, 1, 1], [], []>} : vector<256x64xf32>, vector<64x64xf32>, vector<256x64xf32> -> vector<256x64xf32>
    %c0_23 = arith.constant 0 : index
    %c8_24 = arith.constant 8 : index
    %c0_25 = arith.constant 0 : index
    %26 = vector.load %arg13[%c0_23, %c8_24, %c0_25] : memref<18x25x64xf32, #tpu.memory_space<vmem>>, vector<16x16x64xf32>
    %c64 = arith.constant 64 : index
    %c0_26 = arith.constant 0 : index
    %27 = vector.load %arg6[%c64, %c0_26] : memref<576x64xf32, #tpu.memory_space<vmem>>, vector<64x64xf32>
    %28 = vector.shape_cast %26 : vector<16x16x64xf32> to vector<256x64xf32>
    %cst_27 = arith.constant dense<0.000000e+00> : vector<256x64xf32>
    %29 = tpu.matmul %28, %27, %cst_27 {dimension_numbers = #tpu.dot_dimension_numbers<[1], [0], [0], [1], [0, 0, 1, 1], [], []>} : vector<256x64xf32>, vector<64x64xf32>, vector<256x64xf32> -> vector<256x64xf32>
    %30 = arith.addf %25, %29 : vector<256x64xf32>
    %c0_28 = arith.constant 0 : index
    %c9 = arith.constant 9 : index
    %c0_29 = arith.constant 0 : index
    %31 = vector.load %arg13[%c0_28, %c9, %c0_29] : memref<18x25x64xf32, #tpu.memory_space<vmem>>, vector<16x16x64xf32>
    %c128 = arith.constant 128 : index
    %c0_30 = arith.constant 0 : index
    %32 = vector.load %arg6[%c128, %c0_30] : memref<576x64xf32, #tpu.memory_space<vmem>>, vector<64x64xf32>
    %33 = vector.shape_cast %31 : vector<16x16x64xf32> to vector<256x64xf32>
    %cst_31 = arith.constant dense<0.000000e+00> : vector<256x64xf32>
    %34 = tpu.matmul %33, %32, %cst_31 {dimension_numbers = #tpu.dot_dimension_numbers<[1], [0], [0], [1], [0, 0, 1, 1], [], []>} : vector<256x64xf32>, vector<64x64xf32>, vector<256x64xf32> -> vector<256x64xf32>
    %35 = arith.addf %30, %34 : vector<256x64xf32>
    %c1_32 = arith.constant 1 : index
    %c7_33 = arith.constant 7 : index
    %c0_34 = arith.constant 0 : index
    %36 = vector.load %arg13[%c1_32, %c7_33, %c0_34] : memref<18x25x64xf32, #tpu.memory_space<vmem>>, vector<16x16x64xf32>
    %c192 = arith.constant 192 : index
    %c0_35 = arith.constant 0 : index
    %37 = vector.load %arg6[%c192, %c0_35] : memref<576x64xf32, #tpu.memory_space<vmem>>, vector<64x64xf32>
    %38 = vector.shape_cast %36 : vector<16x16x64xf32> to vector<256x64xf32>
    %cst_36 = arith.constant dense<0.000000e+00> : vector<256x64xf32>
    %39 = tpu.matmul %38, %37, %cst_36 {dimension_numbers = #tpu.dot_dimension_numbers<[1], [0], [0], [1], [0, 0, 1, 1], [], []>} : vector<256x64xf32>, vector<64x64xf32>, vector<256x64xf32> -> vector<256x64xf32>
    %40 = arith.addf %35, %39 : vector<256x64xf32>
    %c1_37 = arith.constant 1 : index
    %c8_38 = arith.constant 8 : index
    %c0_39 = arith.constant 0 : index
    %41 = vector.load %arg13[%c1_37, %c8_38, %c0_39] : memref<18x25x64xf32, #tpu.memory_space<vmem>>, vector<16x16x64xf32>
    %c256 = arith.constant 256 : index
    %c0_40 = arith.constant 0 : index
    %42 = vector.load %arg6[%c256, %c0_40] : memref<576x64xf32, #tpu.memory_space<vmem>>, vector<64x64xf32>
    %43 = vector.shape_cast %41 : vector<16x16x64xf32> to vector<256x64xf32>
    %cst_41 = arith.constant dense<0.000000e+00> : vector<256x64xf32>
    %44 = tpu.matmul %43, %42, %cst_41 {dimension_numbers = #tpu.dot_dimension_numbers<[1], [0], [0], [1], [0, 0, 1, 1], [], []>} : vector<256x64xf32>, vector<64x64xf32>, vector<256x64xf32> -> vector<256x64xf32>
    %45 = arith.addf %40, %44 : vector<256x64xf32>
    %c1_42 = arith.constant 1 : index
    %c9_43 = arith.constant 9 : index
    %c0_44 = arith.constant 0 : index
    %46 = vector.load %arg13[%c1_42, %c9_43, %c0_44] : memref<18x25x64xf32, #tpu.memory_space<vmem>>, vector<16x16x64xf32>
    %c320 = arith.constant 320 : index
    %c0_45 = arith.constant 0 : index
    %47 = vector.load %arg6[%c320, %c0_45] : memref<576x64xf32, #tpu.memory_space<vmem>>, vector<64x64xf32>
    %48 = vector.shape_cast %46 : vector<16x16x64xf32> to vector<256x64xf32>
    %cst_46 = arith.constant dense<0.000000e+00> : vector<256x64xf32>
    %49 = tpu.matmul %48, %47, %cst_46 {dimension_numbers = #tpu.dot_dimension_numbers<[1], [0], [0], [1], [0, 0, 1, 1], [], []>} : vector<256x64xf32>, vector<64x64xf32>, vector<256x64xf32> -> vector<256x64xf32>
    %50 = arith.addf %45, %49 : vector<256x64xf32>
    %c2 = arith.constant 2 : index
    %c7_47 = arith.constant 7 : index
    %c0_48 = arith.constant 0 : index
    %51 = vector.load %arg13[%c2, %c7_47, %c0_48] : memref<18x25x64xf32, #tpu.memory_space<vmem>>, vector<16x16x64xf32>
    %c384 = arith.constant 384 : index
    %c0_49 = arith.constant 0 : index
    %52 = vector.load %arg6[%c384, %c0_49] : memref<576x64xf32, #tpu.memory_space<vmem>>, vector<64x64xf32>
    %53 = vector.shape_cast %51 : vector<16x16x64xf32> to vector<256x64xf32>
    %cst_50 = arith.constant dense<0.000000e+00> : vector<256x64xf32>
    %54 = tpu.matmul %53, %52, %cst_50 {dimension_numbers = #tpu.dot_dimension_numbers<[1], [0], [0], [1], [0, 0, 1, 1], [], []>} : vector<256x64xf32>, vector<64x64xf32>, vector<256x64xf32> -> vector<256x64xf32>
    %55 = arith.addf %50, %54 : vector<256x64xf32>
    %c2_51 = arith.constant 2 : index
    %c8_52 = arith.constant 8 : index
    %c0_53 = arith.constant 0 : index
    %56 = vector.load %arg13[%c2_51, %c8_52, %c0_53] : memref<18x25x64xf32, #tpu.memory_space<vmem>>, vector<16x16x64xf32>
    %c448 = arith.constant 448 : index
    %c0_54 = arith.constant 0 : index
    %57 = vector.load %arg6[%c448, %c0_54] : memref<576x64xf32, #tpu.memory_space<vmem>>, vector<64x64xf32>
    %58 = vector.shape_cast %56 : vector<16x16x64xf32> to vector<256x64xf32>
    %cst_55 = arith.constant dense<0.000000e+00> : vector<256x64xf32>
    %59 = tpu.matmul %58, %57, %cst_55 {dimension_numbers = #tpu.dot_dimension_numbers<[1], [0], [0], [1], [0, 0, 1, 1], [], []>} : vector<256x64xf32>, vector<64x64xf32>, vector<256x64xf32> -> vector<256x64xf32>
    %60 = arith.addf %55, %59 : vector<256x64xf32>
    %c2_56 = arith.constant 2 : index
    %c9_57 = arith.constant 9 : index
    %c0_58 = arith.constant 0 : index
    %61 = vector.load %arg13[%c2_56, %c9_57, %c0_58] : memref<18x25x64xf32, #tpu.memory_space<vmem>>, vector<16x16x64xf32>
    %c512 = arith.constant 512 : index
    %c0_59 = arith.constant 0 : index
    %62 = vector.load %arg6[%c512, %c0_59] : memref<576x64xf32, #tpu.memory_space<vmem>>, vector<64x64xf32>
    %63 = vector.shape_cast %61 : vector<16x16x64xf32> to vector<256x64xf32>
    %cst_60 = arith.constant dense<0.000000e+00> : vector<256x64xf32>
    %64 = tpu.matmul %63, %62, %cst_60 {dimension_numbers = #tpu.dot_dimension_numbers<[1], [0], [0], [1], [0, 0, 1, 1], [], []>} : vector<256x64xf32>, vector<64x64xf32>, vector<256x64xf32> -> vector<256x64xf32>
    %65 = arith.addf %60, %64 : vector<256x64xf32>
    %c0_61 = arith.constant 0 : index
    %c0_62 = arith.constant 0 : index
    %66 = vector.load %arg7[%c0_61, %c0_62] : memref<1x64xf32, #tpu.memory_space<vmem>>, vector<1x64xf32>
    %67 = vector.broadcast %66 : vector<1x64xf32> to vector<256x64xf32>
    %68 = arith.addf %65, %67 : vector<256x64xf32>
    %cst_63 = arith.constant 0.000000e+00 : f32
    %69 = vector.broadcast %cst_63 : f32 to vector<256x64xf32>
    %70 = arith.maximumf %68, %69 : vector<256x64xf32>
    %c0_64 = arith.constant 0 : index
    %c0_65 = arith.constant 0 : index
    %71 = vector.load %arg8[%c0_64, %c0_65] : memref<64x128xf32, #tpu.memory_space<vmem>>, vector<64x128xf32>
    %cst_66 = arith.constant dense<0.000000e+00> : vector<256x128xf32>
    %72 = tpu.matmul %70, %71, %cst_66 {dimension_numbers = #tpu.dot_dimension_numbers<[1], [0], [0], [1], [0, 0, 1, 1], [], []>} : vector<256x64xf32>, vector<64x128xf32>, vector<256x128xf32> -> vector<256x128xf32>
    %c0_67 = arith.constant 0 : index
    %c0_68 = arith.constant 0 : index
    %73 = vector.load %arg9[%c0_67, %c0_68] : memref<1x128xf32, #tpu.memory_space<vmem>>, vector<1x128xf32>
    %74 = vector.broadcast %73 : vector<1x128xf32> to vector<256x128xf32>
    %75 = arith.addf %72, %74 : vector<256x128xf32>
    %c0_69 = arith.constant 0 : index
    %c0_70 = arith.constant 0 : index
    %76 = vector.load %arg10[%c0_69, %c0_70] : memref<64x128xf32, #tpu.memory_space<vmem>>, vector<64x128xf32>
    %cst_71 = arith.constant dense<0.000000e+00> : vector<256x128xf32>
    %77 = tpu.matmul %2, %76, %cst_71 {dimension_numbers = #tpu.dot_dimension_numbers<[1], [0], [0], [1], [0, 0, 1, 1], [], []>} : vector<256x64xf32>, vector<64x128xf32>, vector<256x128xf32> -> vector<256x128xf32>
    %78 = arith.addf %75, %77 : vector<256x128xf32>
    %c0_72 = arith.constant 0 : index
    %c0_73 = arith.constant 0 : index
    %79 = vector.load %arg11[%c0_72, %c0_73] : memref<1x128xf32, #tpu.memory_space<vmem>>, vector<1x128xf32>
    %80 = vector.broadcast %79 : vector<1x128xf32> to vector<256x128xf32>
    %81 = arith.addf %78, %80 : vector<256x128xf32>
    %82 = vector.shape_cast %81 : vector<256x128xf32> to vector<16x16x128xf32>
    %c0_74 = arith.constant 0 : index
    %c0_75 = arith.constant 0 : index
    %c0_76 = arith.constant 0 : index
    %c0_77 = arith.constant 0 : index
    %83 = vector.load %arg12[%c0_74, %c0_75, %c0_76, %c0_77] : memref<1x16x16x128xf32, #tpu.memory_space<vmem>>, vector<1x16x16x128xf32>
    %84 = vector.shape_cast %83 : vector<1x16x16x128xf32> to vector<16x16x128xf32>
    %85 = vector.shape_cast %82 : vector<16x16x128xf32> to vector<1x16x16x128xf32>
    tpu.vector_store %arg12[%c0_74, %c0_75, %c0_76, %c0_77], %85 {strides = array<i32>} : memref<1x16x16x128xf32, #tpu.memory_space<vmem>>, vector<1x16x16x128xf32>,
    return
  }
  func.func @transform_0(%arg0: i32) -> (i32, i32, i32, i32) {
    %c0_i32 = arith.constant 0 : i32
    %c0_i32_0 = arith.constant 0 : i32
    %c0_i32_1 = arith.constant 0 : i32
    %c0_i32_2 = arith.constant 0 : i32
    return %arg0, %c0_i32, %c0_i32_0, %c0_i32_1 : i32, i32, i32, i32
  }
  func.func @transform_1(%arg0: i32) -> (i32, i32) {
    %c0_i32 = arith.constant 0 : i32
    %c0_i32_0 = arith.constant 0 : i32
    %c0_i32_1 = arith.constant 0 : i32
    return %c0_i32, %c0_i32_0 : i32, i32
  }
  func.func @transform_2(%arg0: i32) -> (i32, i32) {
    %c0_i32 = arith.constant 0 : i32
    %c0_i32_0 = arith.constant 0 : i32
    %c0_i32_1 = arith.constant 0 : i32
    return %c0_i32, %c0_i32_0 : i32, i32
  }
  func.func @transform_3(%arg0: i32) -> (i32, i32) {
    %c0_i32 = arith.constant 0 : i32
    %c0_i32_0 = arith.constant 0 : i32
    %c0_i32_1 = arith.constant 0 : i32
    return %c0_i32, %c0_i32_0 : i32, i32
  }
  func.func @transform_4(%arg0: i32) -> (i32, i32) {
    %c0_i32 = arith.constant 0 : i32
    %c0_i32_0 = arith.constant 0 : i32
    %c0_i32_1 = arith.constant 0 : i32
    return %c0_i32, %c0_i32_0 : i32, i32
  }
  func.func @transform_5(%arg0: i32) -> (i32, i32) {
    %c0_i32 = arith.constant 0 : i32
    %c0_i32_0 = arith.constant 0 : i32
    %c0_i32_1 = arith.constant 0 : i32
    return %c0_i32, %c0_i32_0 : i32, i32
  }
  func.func @transform_6(%arg0: i32) -> (i32, i32) {
    %c0_i32 = arith.constant 0 : i32
    %c0_i32_0 = arith.constant 0 : i32
    %c0_i32_1 = arith.constant 0 : i32
    return %c0_i32, %c0_i32_0 : i32, i32
  }
  func.func @transform_7(%arg0: i32) -> (i32, i32) {
    %c0_i32 = arith.constant 0 : i32
    %c0_i32_0 = arith.constant 0 : i32
    %c0_i32_1 = arith.constant 0 : i32
    return %c0_i32, %c0_i32_0 : i32, i32
  }
  func.func @transform_8(%arg0: i32) -> (i32, i32) {
    %c0_i32 = arith.constant 0 : i32
    %c0_i32_0 = arith.constant 0 : i32
    %c0_i32_1 = arith.constant 0 : i32
    return %c0_i32, %c0_i32_0 : i32, i32
  }
  func.func @transform_9(%arg0: i32) -> (i32, i32) {
    %c0_i32 = arith.constant 0 : i32
    %c0_i32_0 = arith.constant 0 : i32
    %c0_i32_1 = arith.constant 0 : i32
    return %c0_i32, %c0_i32_0 : i32, i32
  }
  func.func @transform_10(%arg0: i32) -> (i32, i32) {
    %c0_i32 = arith.constant 0 : i32
    %c0_i32_0 = arith.constant 0 : i32
    %c0_i32_1 = arith.constant 0 : i32
    return %c0_i32, %c0_i32_0 : i32, i32
  }
  func.func @transform_11(%arg0: i32) -> (i32, i32, i32, i32) {
    %c0_i32 = arith.constant 0 : i32
    %c0_i32_0 = arith.constant 0 : i32
    %c0_i32_1 = arith.constant 0 : i32
    %c0_i32_2 = arith.constant 0 : i32
    return %arg0, %c0_i32, %c0_i32_0, %c0_i32_1 : i32, i32, i32, i32
  }
}

</mosaic_0001>

<llo_original>
// kernel: residual_forward.1
$region0: #{residual_forward.1}
  #allocation0 [shape = 'u32[]', space=smem, size = 0x4, offset = 0x4, fixed_abs, tag = 'smem constant byte address 0x4 - core index']
  #allocation1 [shape = 'u32[144,128]{1,0:T(1,128)}', space=vmem, size = 0x12000, scoped, tag = 'internal scratch']
  #allocation2 [shape = 'f32[18,25,64]{2,1,0:T(8,128)}', space=vmem, size = 0x48000, scoped, tag = 'scratch operand']
  %s0 = inlined_call_operand.vmem [shape: f32[2,16,16,64], index: 0, kind: input, shape index: {}]
  %s1 = inlined_call_operand.vmem [shape: f32[1,64], index: 1, kind: input, shape index: {}]
  %s2 = inlined_call_operand.vmem [shape: f32[1,64], index: 2, kind: input, shape index: {}]
  %s3 = inlined_call_operand.vmem [shape: f32[64,64], index: 3, kind: input, shape index: {}]
  %s4 = inlined_call_operand.vmem [shape: f32[1,64], index: 4, kind: input, shape index: {}]
  %s5 = inlined_call_operand.vmem [shape: f32[576,64], index: 5, kind: input, shape index: {}]
  %s6 = inlined_call_operand.vmem [shape: f32[1,64], index: 6, kind: input, shape index: {}]
  %s7 = inlined_call_operand.vmem [shape: f32[64,128], index: 7, kind: input, shape index: {}]
  %s8 = inlined_call_operand.vmem [shape: f32[1,128], index: 8, kind: input, shape index: {}]
  %s9 = inlined_call_operand.vmem [shape: f32[64,128], index: 9, kind: input, shape index: {}]
  %s10 = inlined_call_operand.vmem [shape: f32[1,128], index: 10, kind: input, shape index: {}]
  %s11 = inlined_call_operand.hbm [shape: f32[2,16,16,128], index: 11, kind: output, shape index: {}]
  %s12 = sld [smem:[#allocation0]]
  $region77: #{residual_forward.1} parent=0
    _
  %s14 = ssub.s32 1, %s12
  %s15 = scalar_select 0, %s14, %s12
  $region1: #{residual_forward.1} parent=0
    #allocation3 [shape = 'u8[262144]{0}', space=vmem, size = 0x40000, scoped, tag = 'output window, operand 0']
    #allocation4 [shape = 's32[2]{0}', space=sflag, size = 0x8, scoped, tag = 'scoped memory for residual_forward.1']
    %16 = vsyncpa [#allocation4], 0
    %s17 = scalar_lea.sflag [#allocation4], 1
    %18 = vsyncpa %s17, 0
    loop: start=0, step=1, limit=4
    $region2: #{residual_forward.1} parent=1 // loop_pre_header
      _
    $region3: #{residual_forward.1} parent=1 // loop_header
      %s20 = sphi 0, %s24
      %p21 = scmp.ge.s32.totalorder %s20, 4
      %s30 = sphi 0, %s32
      %s33 = sphi 0, %s30
      %s34 = sphi 0, %s33
      %s50 = sphi 0, %s34
      %s54 = sphi 0, %s54
      %s56 = sphi 0, %s54
      %s57 = sphi 0, %s56
      %s71 = sphi 0, %s57
      %s75 = sphi 0, %s75
      %s77 = sphi 0, %s75
      %s78 = sphi 0, %s77
      %s92 = sphi 0, %s78
      %s96 = sphi 0, %s96
      %s98 = sphi 0, %s96
      %s99 = sphi 0, %s98
      %s113 = sphi 0, %s99
      %s117 = sphi 0, %s117
      %s119 = sphi 0, %s117
      %s120 = sphi 0, %s119
      %s134 = sphi 0, %s120
      %s138 = sphi 0, %s138
      %s140 = sphi 0, %s138
      %s141 = sphi 0, %s140
      %s155 = sphi 0, %s141
      %s159 = sphi 0, %s159
      %s161 = sphi 0, %s159
      %s162 = sphi 0, %s161
      %s176 = sphi 0, %s162
      %s180 = sphi 0, %s180
      %s182 = sphi 0, %s180
      %s183 = sphi 0, %s182
      %s197 = sphi 0, %s183
      %s201 = sphi 0, %s201
      %s203 = sphi 0, %s201
      %s204 = sphi 0, %s203
      %s218 = sphi 0, %s204
      %s222 = sphi 0, %s222
      %s224 = sphi 0, %s222
      %s225 = sphi 0, %s224
      %s239 = sphi 0, %s225
      %s243 = sphi 0, %s243
      %s245 = sphi 0, %s243
      %s246 = sphi 0, %s245
      %s260 = sphi 0, %s246
      %s266 = sphi 0, %s268
      %s269 = sphi 0, %s266
      %s270 = sphi 0, %s269
      %s286 = sphi 0, %s270
    $region4: #{residual_forward.1} parent=1 // loop_header_branch
      %23 = sbr.rel (%p21) target = $region8
    $region5: #{residual_forward.1} parent=1 // loop_body
      %s25 = ssub.s32 %s20, 1
      %s26 = ssub.s32 %s20, 2
      %s27 = sadd.s32 %s20, 1
      %s28 = ssub.s32 %s20, %s27
      %p29 = scmp.eq.s32.totalorder %s28, 0
      %s31 = sadd.s32 %s30, 1
      %s32 = scalar_select %p29, %s30, %s31
      %p35 = pneg %p29
      %p36 = scmp.eq.s32.totalorder %s20, 1
      %p37 = por %p35, %p36
      %p38 = scmp.ne.s32.totalorder %s30, %s33
      %p39 = scmp.eq.s32.totalorder %s20, 0
      %p40 = por %p38, %p39
      %p41 = scmp.ne.s32.totalorder %s30, %s33
      %p42 = scmp.eq.s32.totalorder %s25, 1
      %p43 = por %p41, %p42
      %p44 = scmp.ne.s32.totalorder %s33, %s34
      %p45 = scmp.eq.s32.totalorder %s25, 0
      %p46 = por %p44, %p45
      %p47 = scmp.ne.s32.totalorder %s33, %s34
      %p48 = scmp.eq.s32.totalorder %s26, 1
      %p49 = por %p47, %p48
      %p51 = scmp.ne.s32.totalorder %s34, %s50
      %p52 = scmp.eq.s32.totalorder %s26, 0
      %p53 = por %p51, %p52
      %s55 = sadd.s32 %s54, 1
      %p58 = scmp.eq.s32.totalorder %s20, 1
      %p59 = scmp.ne.s32.totalorder %s54, %s56
      %p60 = scmp.eq.s32.totalorder %s20, 0
      %p61 = por %p59, %p60
      %p62 = scmp.ne.s32.totalorder %s54, %s56
      %p63 = scmp.eq.s32.totalorder %s25, 1
      %p64 = por %p62, %p63
      %p65 = scmp.ne.s32.totalorder %s56, %s57
      %p66 = scmp.eq.s32.totalorder %s25, 0
      %p67 = por %p65, %p66
      %p68 = scmp.ne.s32.totalorder %s56, %s57
      %p69 = scmp.eq.s32.totalorder %s26, 1
      %p70 = por %p68, %p69
      %p72 = scmp.ne.s32.totalorder %s57, %s71
      %p73 = scmp.eq.s32.totalorder %s26, 0
      %p74 = por %p72, %p73
      %s76 = sadd.s32 %s75, 1
      %p79 = scmp.eq.s32.totalorder %s20, 1
      %p80 = scmp.ne.s32.totalorder %s75, %s77
      %p81 = scmp.eq.s32.totalorder %s20, 0
      %p82 = por %p80, %p81
      %p83 = scmp.ne.s32.totalorder %s75, %s77
      %p84 = scmp.eq.s32.totalorder %s25, 1
      %p85 = por %p83, %p84
      %p86 = scmp.ne.s32.totalorder %s77, %s78
      %p87 = scmp.eq.s32.totalorder %s25, 0
      %p88 = por %p86, %p87
      %p89 = scmp.ne.s32.totalorder %s77, %s78
      %p90 = scmp.eq.s32.totalorder %s26, 1
      %p91 = por %p89, %p90
      %p93 = scmp.ne.s32.totalorder %s78, %s92
      %p94 = scmp.eq.s32.totalorder %s26, 0
      %p95 = por %p93, %p94
      %s97 = sadd.s32 %s96, 1
      %p100 = scmp.eq.s32.totalorder %s20, 1
      %p101 = scmp.ne.s32.totalorder %s96, %s98
      %p102 = scmp.eq.s32.totalorder %s20, 0
      %p103 = por %p101, %p102
      %p104 = scmp.ne.s32.totalorder %s96, %s98
      %p105 = scmp.eq.s32.totalorder %s25, 1
      %p106 = por %p104, %p105
      %p107 = scmp.ne.s32.totalorder %s98, %s99
      %p108 = scmp.eq.s32.totalorder %s25, 0
      %p109 = por %p107, %p108
      %p110 = scmp.ne.s32.totalorder %s98, %s99
      %p111 = scmp.eq.s32.totalorder %s26, 1
      %p112 = por %p110, %p111
      %p114 = scmp.ne.s32.totalorder %s99, %s113
      %p115 = scmp.eq.s32.totalorder %s26, 0
      %p116 = por %p114, %p115
      %s118 = sadd.s32 %s117, 1
      %p121 = scmp.eq.s32.totalorder %s20, 1
      %p122 = scmp.ne.s32.totalorder %s117, %s119
      %p123 = scmp.eq.s32.totalorder %s20, 0
      %p124 = por %p122, %p123
      %p125 = scmp.ne.s32.totalorder %s117, %s119
      %p126 = scmp.eq.s32.totalorder %s25, 1
      %p127 = por %p125, %p126
      %p128 = scmp.ne.s32.totalorder %s119, %s120
      %p129 = scmp.eq.s32.totalorder %s25, 0
      %p130 = por %p128, %p129
      %p131 = scmp.ne.s32.totalorder %s119, %s120
      %p132 = scmp.eq.s32.totalorder %s26, 1
      %p133 = por %p131, %p132
      %p135 = scmp.ne.s32.totalorder %s120, %s134
      %p136 = scmp.eq.s32.totalorder %s26, 0
      %p137 = por %p135, %p136
      %s139 = sadd.s32 %s138, 1
      %p142 = scmp.eq.s32.totalorder %s20, 1
      %p143 = scmp.ne.s32.totalorder %s138, %s140
      %p144 = scmp.eq.s32.totalorder %s20, 0
      %p145 = por %p143, %p144
      %p146 = scmp.ne.s32.totalorder %s138, %s140
      %p147 = scmp.eq.s32.totalorder %s25, 1
      %p148 = por %p146, %p147
      %p149 = scmp.ne.s32.totalorder %s140, %s141
      %p150 = scmp.eq.s32.totalorder %s25, 0
      %p151 = por %p149, %p150
      %p152 = scmp.ne.s32.totalorder %s140, %s141
      %p153 = scmp.eq.s32.totalorder %s26, 1
      %p154 = por %p152, %p153
      %p156 = scmp.ne.s32.totalorder %s141, %s155
      %p157 = scmp.eq.s32.totalorder %s26, 0
      %p158 = por %p156, %p157
      %s160 = sadd.s32 %s159, 1
      %p163 = scmp.eq.s32.totalorder %s20, 1
      %p164 = scmp.ne.s32.totalorder %s159, %s161
      %p165 = scmp.eq.s32.totalorder %s20, 0
      %p166 = por %p164, %p165
      %p167 = scmp.ne.s32.totalorder %s159, %s161
      %p168 = scmp.eq.s32.totalorder %s25, 1
      %p169 = por %p167, %p168
      %p170 = scmp.ne.s32.totalorder %s161, %s162
      %p171 = scmp.eq.s32.totalorder %s25, 0
      %p172 = por %p170, %p171
      %p173 = scmp.ne.s32.totalorder %s161, %s162
      %p174 = scmp.eq.s32.totalorder %s26, 1
      %p175 = por %p173, %p174
      %p177 = scmp.ne.s32.totalorder %s162, %s176
      %p178 = scmp.eq.s32.totalorder %s26, 0
      %p179 = por %p177, %p178
      %s181 = sadd.s32 %s180, 1
      %p184 = scmp.eq.s32.totalorder %s20, 1
      %p185 = scmp.ne.s32.totalorder %s180, %s182
      %p186 = scmp.eq.s32.totalorder %s20, 0
      %p187 = por %p185, %p186
      %p188 = scmp.ne.s32.totalorder %s180, %s182
      %p189 = scmp.eq.s32.totalorder %s25, 1
      %p190 = por %p188, %p189
      %p191 = scmp.ne.s32.totalorder %s182, %s183
      %p192 = scmp.eq.s32.totalorder %s25, 0
      %p193 = por %p191, %p192
      %p194 = scmp.ne.s32.totalorder %s182, %s183
      %p195 = scmp.eq.s32.totalorder %s26, 1
      %p196 = por %p194, %p195
      %p198 = scmp.ne.s32.totalorder %s183, %s197
      %p199 = scmp.eq.s32.totalorder %s26, 0
      %p200 = por %p198, %p199
      %s202 = sadd.s32 %s201, 1
      %p205 = scmp.eq.s32.totalorder %s20, 1
      %p206 = scmp.ne.s32.totalorder %s201, %s203
      %p207 = scmp.eq.s32.totalorder %s20, 0
      %p208 = por %p206, %p207
      %p209 = scmp.ne.s32.totalorder %s201, %s203
      %p210 = scmp.eq.s32.totalorder %s25, 1
      %p211 = por %p209, %p210
      %p212 = scmp.ne.s32.totalorder %s203, %s204
      %p213 = scmp.eq.s32.totalorder %s25, 0
      %p214 = por %p212, %p213
      %p215 = scmp.ne.s32.totalorder %s203, %s204
      %p216 = scmp.eq.s32.totalorder %s26, 1
      %p217 = por %p215, %p216
      %p219 = scmp.ne.s32.totalorder %s204, %s218
      %p220 = scmp.eq.s32.totalorder %s26, 0
      %p221 = por %p219, %p220
      %s223 = sadd.s32 %s222, 1
      %p226 = scmp.eq.s32.totalorder %s20, 1
      %p227 = scmp.ne.s32.totalorder %s222, %s224
      %p228 = scmp.eq.s32.totalorder %s20, 0
      %p229 = por %p227, %p228
      %p230 = scmp.ne.s32.totalorder %s222, %s224
      %p231 = scmp.eq.s32.totalorder %s25, 1
      %p232 = por %p230, %p231
      %p233 = scmp.ne.s32.totalorder %s224, %s225
      %p234 = scmp.eq.s32.totalorder %s25, 0
      %p235 = por %p233, %p234
      %p236 = scmp.ne.s32.totalorder %s224, %s225
      %p237 = scmp.eq.s32.totalorder %s26, 1
      %p238 = por %p236, %p237
      %p240 = scmp.ne.s32.totalorder %s225, %s239
      %p241 = scmp.eq.s32.totalorder %s26, 0
      %p242 = por %p240, %p241
      %s244 = sadd.s32 %s243, 1
      %p247 = scmp.eq.s32.totalorder %s20, 1
      %p248 = scmp.ne.s32.totalorder %s243, %s245
      %p249 = scmp.eq.s32.totalorder %s20, 0
      %p250 = por %p248, %p249
      %p251 = scmp.ne.s32.totalorder %s243, %s245
      %p252 = scmp.eq.s32.totalorder %s25, 1
      %p253 = por %p251, %p252
      %p254 = scmp.ne.s32.totalorder %s245, %s246
      %p255 = scmp.eq.s32.totalorder %s25, 0
      %p256 = por %p254, %p255
      %p257 = scmp.ne.s32.totalorder %s245, %s246
      %p258 = scmp.eq.s32.totalorder %s26, 1
      %p259 = por %p257, %p258
      %p261 = scmp.ne.s32.totalorder %s246, %s260
      %p262 = scmp.eq.s32.totalorder %s26, 0
      %p263 = por %p261, %p262
      %s264 = ssub.s32 %s20, %s27
      %p265 = scmp.eq.s32.totalorder %s264, 0
      %s267 = sadd.s32 %s266, 1
      %s268 = scalar_select %p265, %s266, %s267
      %p271 = pneg %p265
      %p272 = scmp.eq.s32.totalorder %s20, 1
      %p273 = por %p271, %p272
      %p274 = scmp.ne.s32.totalorder %s266, %s269
      %p275 = scmp.eq.s32.totalorder %s20, 0
      %p276 = por %p274, %p275
      %p277 = scmp.ne.s32.totalorder %s266, %s269
      %p278 = scmp.eq.s32.totalorder %s25, 1
      %p279 = por %p277, %p278
      %p280 = scmp.ne.s32.totalorder %s269, %s270
      %p281 = scmp.eq.s32.totalorder %s25, 0
      %p282 = por %p280, %p281
      %p283 = scmp.ne.s32.totalorder %s269, %s270
      %p284 = scmp.eq.s32.totalorder %s26, 1
      %p285 = por %p283, %p284
      %p287 = scmp.ne.s32.totalorder %s270, %s286
      %p288 = scmp.eq.s32.totalorder %s26, 0
      %p289 = por %p287, %p288
      %p290 = scmp.le.s32.totalorder 1, %s20
      %p291 = scmp.lt.s32.totalorder %s20, 3
      %p292 = pnand %p290, %p291
      %p293 = pneg %p292
      // Predicated region
      $region9: #{residual_forward.1} parent=5 // pred_check
        _
      $region10: #{residual_forward.1} parent=5 // pred_check_branch
        %295 = sbr.rel (%p292) target = $region12
      $region11: #{residual_forward.1} parent=5 // pred_region
        %s296 = ssub.s32 %s20, 1
        // Predicated region
        $region13: #{residual_forward.1} parent=11 // pred_check
          %p297 = pneg %p67
        $region14: #{residual_forward.1} parent=11 // pred_check_branch
          %299 = sbr.rel (%p297) target = $region16
        $region15: #{residual_forward.1} parent=11 // pred_region
          _
        $region16: #{residual_forward.1} parent=11 // pred_fallthru
          _
        // Predicated region
        $region17: #{residual_forward.1} parent=11 // pred_check
          %p300 = pneg %p88
        $region18: #{residual_forward.1} parent=11 // pred_check_branch
          %302 = sbr.rel (%p300) target = $region20
        $region19: #{residual_forward.1} parent=11 // pred_region
          _
        $region20: #{residual_forward.1} parent=11 // pred_fallthru
          _
        // Predicated region
        $region21: #{residual_forward.1} parent=11 // pred_check
          %p303 = pneg %p109
        $region22: #{residual_forward.1} parent=11 // pred_check_branch
          %305 = sbr.rel (%p303) target = $region24
        $region23: #{residual_forward.1} parent=11 // pred_region
          _
        $region24: #{residual_forward.1} parent=11 // pred_fallthru
          _
        // Predicated region
        $region25: #{residual_forward.1} parent=11 // pred_check
          %p306 = pneg %p130
        $region26: #{residual_forward.1} parent=11 // pred_check_branch
          %308 = sbr.rel (%p306) target = $region28
        $region27: #{residual_forward.1} parent=11 // pred_region
          _
        $region28: #{residual_forward.1} parent=11 // pred_fallthru
          _
        // Predicated region
        $region29: #{residual_forward.1} parent=11 // pred_check
          %p309 = pneg %p151
        $region30: #{residual_forward.1} parent=11 // pred_check_branch
          %311 = sbr.rel (%p309) target = $region32
        $region31: #{residual_forward.1} parent=11 // pred_region
          _
        $region32: #{residual_forward.1} parent=11 // pred_fallthru
          _
        // Predicated region
        $region33: #{residual_forward.1} parent=11 // pred_check
          %p312 = pneg %p172
        $region34: #{residual_forward.1} parent=11 // pred_check_branch
          %314 = sbr.rel (%p312) target = $region36
        $region35: #{residual_forward.1} parent=11 // pred_region
          _
        $region36: #{residual_forward.1} parent=11 // pred_fallthru
          _
        // Predicated region
        $region37: #{residual_forward.1} parent=11 // pred_check
          %p315 = pneg %p193
        $region38: #{residual_forward.1} parent=11 // pred_check_branch
          %317 = sbr.rel (%p315) target = $region40
        $region39: #{residual_forward.1} parent=11 // pred_region
          _
        $region40: #{residual_forward.1} parent=11 // pred_fallthru
          _
        // Predicated region
        $region41: #{residual_forward.1} parent=11 // pred_check
          %p318 = pneg %p214
        $region42: #{residual_forward.1} parent=11 // pred_check_branch
          %320 = sbr.rel (%p318) target = $region44
        $region43: #{residual_forward.1} parent=11 // pred_region
          _
        $region44: #{residual_forward.1} parent=11 // pred_fallthru
          _
        // Predicated region
        $region45: #{residual_forward.1} parent=11 // pred_check
          %p321 = pneg %p235
        $region46: #{residual_forward.1} parent=11 // pred_check_branch
          %323 = sbr.rel (%p321) target = $region48
        $region47: #{residual_forward.1} parent=11 // pred_region
          _
        $region48: #{residual_forward.1} parent=11 // pred_fallthru
          _
        // Predicated region
        $region49: #{residual_forward.1} parent=11 // pred_check
          %p324 = pneg %p256
        $region50: #{residual_forward.1} parent=11 // pred_check_branch
          %326 = sbr.rel (%p324) target = $region52
        $region51: #{residual_forward.1} parent=11 // pred_region
          _
        $region52: #{residual_forward.1} parent=11 // pred_fallthru
          _
      $region12: #{residual_forward.1} parent=5 // pred_fallthru
        _
      %p327 = scmp.lt.s32.totalorder %s20, 2
      // Predicated region
      $region53: #{residual_forward.1} parent=5 // pred_check
        %p328 = pneg %p327
      $region54: #{residual_forward.1} parent=5 // pred_check_branch
        %330 = sbr.rel (%p328) target = $region56
      $region55: #{residual_forward.1} parent=5 // pred_region
        // Predicated region
        $region57: #{residual_forward.1} parent=55 // pred_check
          %p331 = pneg %p40
        $region58: #{residual_forward.1} parent=55 // pred_check_branch
          %333 = sbr.rel (%p331) target = $region60
        $region59: #{residual_forward.1} parent=55 // pred_region
          %p334 = scmp.lt.s32.totalorder %s20, 1
          %s335 = scalar_select %p334, %s20, 1
          %s336 = smul.addr %s335, 32
          %s337 = smul.addr %s336, 8
          %s338 = scalar_lea.vmem %s0, %s337
        $region60: #{residual_forward.1} parent=55 // pred_fallthru
          _
      $region56: #{residual_forward.1} parent=5 // pred_fallthru
        _
      %p339 = scmp.le.s32.totalorder 1, %s20
      %p340 = scmp.lt.s32.totalorder %s20, 3
      %p341 = pnand %p339, %p340
      %p342 = pneg %p341
      // Predicated region
      $region61: #{residual_forward.1} parent=5 // pred_check
        _
      $region62: #{residual_forward.1} parent=5 // pred_check_branch
        %344 = sbr.rel (%p341) target = $region64
      $region63: #{residual_forward.1} parent=5 // pred_region
        %s345 = ssub.s32 %s20, 1
        %p346 = scmp.lt.s32.totalorder %s25, 1
        %s347 = scalar_select %p346, %s25, 1
        %s348 = smul.addr %s347, 32
        %s349 = smul.addr %s348, 8
        %s350 = scalar_lea.vmem %s0, %s349
        %p351 = pneg %p46
        %p352 = pneg %p43
        %p353 = pneg %p67
        %p354 = pneg %p64
        %p355 = pneg %p88
        %p356 = pneg %p85
        %p357 = pneg %p109
        %p358 = pneg %p106
        %p359 = pneg %p130
        %p360 = pneg %p127
        %p361 = pneg %p151
        %p362 = pneg %p148
        %p363 = pneg %p172
        %p364 = pneg %p169
        %p365 = pneg %p193
        %p366 = pneg %p190
        %p367 = pneg %p214
        %p368 = pneg %p211
        %p369 = pneg %p235
        %p370 = pneg %p232
        %p371 = pneg %p256
        %p372 = pneg %p253
        %p373 = pneg %p282
        %p374 = pneg %p279
        %s375 = sand.u32 %s269, 1
        %s376 = scalar_lea.sflag [#allocation4], %s375
        %s377 = sand.u32 %s269, 1
        %s378 = smul.addr %s377, 256
        %s379 = scalar_lea.vmem [#allocation3], %s378
        %p380 = scmp.lt.s32.totalorder %s25, 1
        %s381 = scalar_select %p380, %s25, 1
        %s382 = smul.addr %s381, 32
        %s383 = smul.addr %s382, 8
        %s384 = scalar_lea.vmem %s0, %s383
        %v385 = vld [vmem:[%s384] sm:$0xff]
        %v386 = vld [vmem:[%s384 + $0x8] sm:$0xff]
        %v387 = vld [vmem:[%s384 + $0x10] sm:$0xff]
        %v388 = vld [vmem:[%s384 + $0x18] sm:$0xff]
        %v389 = vld [vmem:[%s384 + $0x20] sm:$0xff]
        %v390 = vld [vmem:[%s384 + $0x28] sm:$0xff]
        %v391 = vld [vmem:[%s384 + $0x30] sm:$0xff]
        %v392 = vld [vmem:[%s384 + $0x38] sm:$0xff]
        %v393 = vld [vmem:[%s384 + $0x40] sm:$0xff]
        %v394 = vld [vmem:[%s384 + $0x48] sm:$0xff]
        %v395 = vld [vmem:[%s384 + $0x50] sm:$0xff]
        %v396 = vld [vmem:[%s384 + $0x58] sm:$0xff]
        %v397 = vld [vmem:[%s384 + $0x60] sm:$0xff]
        %v398 = vld [vmem:[%s384 + $0x68] sm:$0xff]
        %v399 = vld [vmem:[%s384 + $0x70] sm:$0xff]
        %v400 = vld [vmem:[%s384 + $0x78] sm:$0xff]
        %v401 = vld [vmem:[%s384 + $0x80] sm:$0xff]
        %v402 = vld [vmem:[%s384 + $0x88] sm:$0xff]
        %v403 = vld [vmem:[%s384 + $0x90] sm:$0xff]
        %v404 = vld [vmem:[%s384 + $0x98] sm:$0xff]
        %v405 = vld [vmem:[%s384 + $0xa0] sm:$0xff]
        %v406 = vld [vmem:[%s384 + $0xa8] sm:$0xff]
        %v407 = vld [vmem:[%s384 + $0xb0] sm:$0xff]
        %v408 = vld [vmem:[%s384 + $0xb8] sm:$0xff]
        %v409 = vld [vmem:[%s384 + $0xc0] sm:$0xff]
        %v410 = vld [vmem:[%s384 + $0xc8] sm:$0xff]
        %v411 = vld [vmem:[%s384 + $0xd0] sm:$0xff]
        %v412 = vld [vmem:[%s384 + $0xd8] sm:$0xff]
        %v413 = vld [vmem:[%s384 + $0xe0] sm:$0xff]
        %v414 = vld [vmem:[%s384 + $0xe8] sm:$0xff]
        %v415 = vld [vmem:[%s384 + $0xf0] sm:$0xff]
        %v416 = vld [vmem:[%s384 + $0xf8] sm:$0xff]
        %v417 = vld [vmem:[%s1] sm:$0x1]
        %v419 = vlaneseq
        %v420 = vshrl.u32 %v419, 7
        %v421 = vsub.s32 0, %v420
        %v422 = vrot.slane %v417, %v421
        %v424 = vmul.f32 %v385, %v422
        %v425 = vmul.f32 %v386, %v422
        %v426 = vmul.f32 %v387, %v422
        %v427 = vmul.f32 %v388, %v422
        %v428 = vmul.f32 %v389, %v422
        %v429 = vmul.f32 %v390, %v422
        %v430 = vmul.f32 %v391, %v422
        %v431 = vmul.f32 %v392, %v422
        %v432 = vmul.f32 %v393, %v422
        %v433 = vmul.f32 %v394, %v422
        %v434 = vmul.f32 %v395, %v422
        %v435 = vmul.f32 %v396, %v422
        %v436 = vmul.f32 %v397, %v422
        %v437 = vmul.f32 %v398, %v422
        %v438 = vmul.f32 %v399, %v422
        %v439 = vmul.f32 %v400, %v422
        %v440 = vmul.f32 %v401, %v422
        %v441 = vmul.f32 %v402, %v422
        %v442 = vmul.f32 %v403, %v422
        %v443 = vmul.f32 %v404, %v422
        %v444 = vmul.f32 %v405, %v422
        %v445 = vmul.f32 %v406, %v422
        %v446 = vmul.f32 %v407, %v422
        %v447 = vmul.f32 %v408, %v422
        %v448 = vmul.f32 %v409, %v422
        %v449 = vmul.f32 %v410, %v422
        %v450 = vmul.f32 %v411, %v422
        %v451 = vmul.f32 %v412, %v422
        %v452 = vmul.f32 %v413, %v422
        %v453 = vmul.f32 %v414, %v422
        %v454 = vmul.f32 %v415, %v422
        %v455 = vmul.f32 %v416, %v422
        %v456 = vld [vmem:[%s2] sm:$0x1]
        %v458 = vlaneseq
        %v459 = vshrl.u32 %v458, 7
        %v460 = vsub.s32 0, %v459
        %v461 = vrot.slane %v456, %v460
        %v463 = vadd.f32 %v424, %v461
        %v464 = vadd.f32 %v425, %v461
        %v465 = vadd.f32 %v426, %v461
        %v466 = vadd.f32 %v427, %v461
        %v467 = vadd.f32 %v428, %v461
        %v468 = vadd.f32 %v429, %v461
        %v469 = vadd.f32 %v430, %v461
        %v470 = vadd.f32 %v431, %v461
        %v471 = vadd.f32 %v432, %v461
        %v472 = vadd.f32 %v433, %v461
        %v473 = vadd.f32 %v434, %v461
        %v474 = vadd.f32 %v435, %v461
        %v475 = vadd.f32 %v436, %v461
        %v476 = vadd.f32 %v437, %v461
        %v477 = vadd.f32 %v438, %v461
        %v478 = vadd.f32 %v439, %v461
        %v479 = vadd.f32 %v440, %v461
        %v480 = vadd.f32 %v441, %v461
        %v481 = vadd.f32 %v442, %v461
        %v482 = vadd.f32 %v443, %v461
        %v483 = vadd.f32 %v444, %v461
        %v484 = vadd.f32 %v445, %v461
        %v485 = vadd.f32 %v446, %v461
        %v486 = vadd.f32 %v447, %v461
        %v487 = vadd.f32 %v448, %v461
        %v488 = vadd.f32 %v449, %v461
        %v489 = vadd.f32 %v450, %v461
        %v490 = vadd.f32 %v451, %v461
        %v491 = vadd.f32 %v452, %v461
        %v492 = vadd.f32 %v453, %v461
        %v493 = vadd.f32 %v454, %v461
        %v494 = vadd.f32 %v455, %v461
        %v495 = vmax.f32 %v463, 0.0
        %v496 = vmax.f32 %v464, 0.0
        %v497 = vmax.f32 %v465, 0.0
        %v498 = vmax.f32 %v466, 0.0
        %v499 = vmax.f32 %v467, 0.0
        %v500 = vmax.f32 %v468, 0.0
        %v501 = vmax.f32 %v469, 0.0
        %v502 = vmax.f32 %v470, 0.0
        %v503 = vmax.f32 %v471, 0.0
        %v504 = vmax.f32 %v472, 0.0
        %v505 = vmax.f32 %v473, 0.0
        %v506 = vmax.f32 %v474, 0.0
        %v507 = vmax.f32 %v475, 0.0
        %v508 = vmax.f32 %v476, 0.0
        %v509 = vmax.f32 %v477, 0.0
        %v510 = vmax.f32 %v478, 0.0
        %v511 = vmax.f32 %v479, 0.0
        %v512 = vmax.f32 %v480, 0.0
        %v513 = vmax.f32 %v481, 0.0
        %v514 = vmax.f32 %v482, 0.0
        %v515 = vmax.f32 %v483, 0.0
        %v516 = vmax.f32 %v484, 0.0
        %v517 = vmax.f32 %v485, 0.0
        %v518 = vmax.f32 %v486, 0.0
        %v519 = vmax.f32 %v487, 0.0
        %v520 = vmax.f32 %v488, 0.0
        %v521 = vmax.f32 %v489, 0.0
        %v522 = vmax.f32 %v490, 0.0
        %v523 = vmax.f32 %v491, 0.0
        %v524 = vmax.f32 %v492, 0.0
        %v525 = vmax.f32 %v493, 0.0
        %v526 = vmax.f32 %v494, 0.0
        %v527 = vld [vmem:[%s3] sm:$0xff]
        %v528 = vld [vmem:[%s3 + $0x8] sm:$0xff]
        %v529 = vld [vmem:[%s3 + $0x10] sm:$0xff]
        %v530 = vld [vmem:[%s3 + $0x18] sm:$0xff]
        %v531 = vld [vmem:[%s3 + $0x20] sm:$0xff]
        %v532 = vld [vmem:[%s3 + $0x28] sm:$0xff]
        %v533 = vld [vmem:[%s3 + $0x30] sm:$0xff]
        %v534 = vld [vmem:[%s3 + $0x38] sm:$0xff]
        %v535 = vld [vmem:[%s4] sm:$0x1]
        %v537 = vlaneseq
        %v538 = vshrl.u32 %v537, 7
        %v539 = vsub.s32 0, %v538
        %v540 = vrot.slane %v535, %v539
        %vm542 = vcmask 523264
        %v544 = vsel %vm542, %v495, 0
        %v547 = vsel %vm542, %v496, 0
        %v550 = vsel %vm542, %v497, 0
        %v553 = vsel %vm542, %v498, 0
        %v556 = vsel %vm542, %v499, 0
        %v559 = vsel %vm542, %v500, 0
        %v562 = vsel %vm542, %v501, 0
        %v565 = vsel %vm542, %v502, 0
        %v568 = vsel %vm542, %v503, 0
        %v571 = vsel %vm542, %v504, 0
        %v574 = vsel %vm542, %v505, 0
        %v577 = vsel %vm542, %v506, 0
        %v580 = vsel %vm542, %v507, 0
        %v583 = vsel %vm542, %v508, 0
        %v586 = vsel %vm542, %v509, 0
        %v589 = vsel %vm542, %v510, 0
        %v592 = vsel %vm542, %v511, 0
        %v595 = vsel %vm542, %v512, 0
        %v598 = vsel %vm542, %v513, 0
        %v601 = vsel %vm542, %v514, 0
        %v604 = vsel %vm542, %v515, 0
        %v607 = vsel %vm542, %v516, 0
        %v610 = vsel %vm542, %v517, 0
        %v613 = vsel %vm542, %v518, 0
        %v616 = vsel %vm542, %v519, 0
        %v619 = vsel %vm542, %v520, 0
        %v622 = vsel %vm542, %v521, 0
        %v625 = vsel %vm542, %v522, 0
        %v628 = vsel %vm542, %v523, 0
        %v631 = vsel %vm542, %v524, 0
        %v634 = vsel %vm542, %v525, 0
        %v637 = vsel %vm542, %v526, 0
        %639 = vmatprep.subr.mxu0 0.0
        %640 = vmatpush1.msra.mxu0 %v527
        %641 = vmatprep.subr.mxu0 0.0
        %642 = vmatpush1.msra.mxu0 %v528
        %643 = vmatprep.subr.mxu0 0.0
        %644 = vmatpush1.msra.mxu0 %v529
        %645 = vmatprep.subr.mxu0 0.0
        %646 = vmatpush1.msra.mxu0 %v530
        %647 = vmatprep.subr.mxu0 0.0
        %648 = vmatpush1.msra.mxu0 %v531
        %649 = vmatprep.subr.mxu0 0.0
        %650 = vmatpush1.msra.mxu0 %v532
        %651 = vmatprep.subr.mxu0 0.0
        %652 = vmatpush1.msra.mxu0 %v533
        %653 = vmatprep.subr.mxu0 0.0
        %654 = vmatpush1.msra.mxu0 %v534
        %655 = vmatprep.subr.mxu0 0.0
        %656 = vmatpush1.msra.mxu0 0.0
        %657 = vmatprep.subr.mxu0 0.0
        %658 = vmatpush1.msra.mxu0 0.0
        %659 = vmatprep.subr.mxu0 0.0
        %660 = vmatpush1.msra.mxu0 0.0
        %661 = vmatprep.subr.mxu0 0.0
        %662 = vmatpush1.msra.mxu0 0.0
        %663 = vmatprep.subr.mxu0 0.0
        %664 = vmatpush1.msra.mxu0 0.0
        %665 = vmatprep.subr.mxu0 0.0
        %666 = vmatpush1.msra.mxu0 0.0
        %667 = vmatprep.subr.mxu0 0.0
        %668 = vmatpush1.msra.mxu0 0.0
        %669 = vmatprep.subr.mxu0 0.0
        %670 = vmatpush1.msra.mxu0 0.0
        %671 = vmatprep.subr.mxu0 0.0
        %672 = vmatpush1.msra.mxu0 0.0
        %673 = vmatprep.subr.mxu0 0.0
        %674 = vmatpush1.msra.mxu0 0.0
        %675 = vmatprep.subr.mxu0 0.0
        %676 = vmatpush1.msra.mxu0 0.0
        %677 = vmatprep.subr.mxu0 0.0
        %678 = vmatpush1.msra.mxu0 0.0
        %679 = vmatprep.subr.mxu0 0.0
        %680 = vmatpush1.msra.mxu0 0.0
        %681 = vmatprep.subr.mxu0 0.0
        %682 = vmatpush1.msra.mxu0 0.0
        %683 = vmatprep.subr.mxu0 0.0
        %684 = vmatpush1.msra.mxu0 0.0
        %685 = vmatprep.subr.mxu0 0.0
        %686 = vmatpush1.msra.mxu0 0.0
        %687 = vmatprep.subr.mxu0 0.0
        %688 = vmatpush1.msra.mxu0 0.0
        %689 = vmatprep.subr.mxu0 0.0
        %690 = vmatpush1.msra.mxu0 0.0
        %691 = vmatprep.subr.mxu0 0.0
        %692 = vmatpush1.msra.mxu0 0.0
        %693 = vmatprep.subr.mxu0 0.0
        %694 = vmatpush1.msra.mxu0 0.0
        %695 = vmatprep.subr.mxu0 0.0
        %696 = vmatpush1.msra.mxu0 0.0
        %697 = vmatprep.subr.mxu0 0.0
        %698 = vmatpush1.msra.mxu0 0.0
        %699 = vmatprep.subr.mxu0 0.0
        %700 = vmatpush1.msra.mxu0 0.0
        %701 = vmatprep.subr.mxu0 0.0
        %702 = vmatpush1.msra.mxu0 0.0
        %703 = vmatprep.mubr.f32.mxu0 0.0
        %704 = vmatmul.mubr.f32.gmra.mrb[0].mxu0 %v544
        %v705 = vpop.f32.mrb[0].mxu0
        %v706 = vadd.f32 %v540, %v705
        %v707 = vpop.f32.mrb[0].mxu0
        %708 = vmatprep.mubr.f32.mxu0 0.0
        %709 = vmatmul.mubr.f32.gmra.mrb[0].mxu0 %v547
        %v710 = vpop.f32.mrb[0].mxu0
        %v711 = vadd.f32 %v540, %v710
        %v712 = vpop.f32.mrb[0].mxu0
        %713 = vmatprep.mubr.f32.mxu0 0.0
        %714 = vmatmul.mubr.f32.gmra.mrb[0].mxu0 %v550
        %v715 = vpop.f32.mrb[0].mxu0
        %v716 = vadd.f32 %v540, %v715
        %v717 = vpop.f32.mrb[0].mxu0
        %718 = vmatprep.mubr.f32.mxu0 0.0
        %719 = vmatmul.mubr.f32.gmra.mrb[0].mxu0 %v553
        %v720 = vpop.f32.mrb[0].mxu0
        %v721 = vadd.f32 %v540, %v720
        %v722 = vpop.f32.mrb[0].mxu0
        %723 = vmatprep.mubr.f32.mxu0 0.0
        %724 = vmatmul.mubr.f32.gmra.mrb[0].mxu0 %v556
        %v725 = vpop.f32.mrb[0].mxu0
        %v726 = vadd.f32 %v540, %v725
        %v727 = vpop.f32.mrb[0].mxu0
        %728 = vmatprep.mubr.f32.mxu0 0.0
        %729 = vmatmul.mubr.f32.gmra.mrb[0].mxu0 %v559
        %v730 = vpop.f32.mrb[0].mxu0
        %v731 = vadd.f32 %v540, %v730
        %v732 = vpop.f32.mrb[0].mxu0
        %733 = vmatprep.mubr.f32.mxu0 0.0
        %734 = vmatmul.mubr.f32.gmra.mrb[0].mxu0 %v562
        %v735 = vpop.f32.mrb[0].mxu0
        %v736 = vadd.f32 %v540, %v735
        %v737 = vpop.f32.mrb[0].mxu0
        %738 = vmatprep.mubr.f32.mxu0 0.0
        %739 = vmatmul.mubr.f32.gmra.mrb[0].mxu0 %v565
        %v740 = vpop.f32.mrb[0].mxu0
        %v741 = vadd.f32 %v540, %v740
        %v742 = vpop.f32.mrb[0].mxu0
        %743 = vmatprep.mubr.f32.mxu0 0.0
        %744 = vmatmul.mubr.f32.gmra.mrb[0].mxu0 %v568
        %v745 = vpop.f32.mrb[0].mxu0
        %v746 = vadd.f32 %v540, %v745
        %v747 = vpop.f32.mrb[0].mxu0
        %748 = vmatprep.mubr.f32.mxu0 0.0
        %749 = vmatmul.mubr.f32.gmra.mrb[0].mxu0 %v571
        %v750 = vpop.f32.mrb[0].mxu0
        %v751 = vadd.f32 %v540, %v750
        %v752 = vpop.f32.mrb[0].mxu0
        %753 = vmatprep.mubr.f32.mxu0 0.0
        %754 = vmatmul.mubr.f32.gmra.mrb[0].mxu0 %v574
        %v755 = vpop.f32.mrb[0].mxu0
        %v756 = vadd.f32 %v540, %v755
        %v757 = vpop.f32.mrb[0].mxu0
        %758 = vmatprep.mubr.f32.mxu0 0.0
        %759 = vmatmul.mubr.f32.gmra.mrb[0].mxu0 %v577
        %v760 = vpop.f32.mrb[0].mxu0
        %v761 = vadd.f32 %v540, %v760
        %v762 = vpop.f32.mrb[0].mxu0
        %763 = vmatprep.mubr.f32.mxu0 0.0
        %764 = vmatmul.mubr.f32.gmra.mrb[0].mxu0 %v580
        %v765 = vpop.f32.mrb[0].mxu0
        %v766 = vadd.f32 %v540, %v765
        %v767 = vpop.f32.mrb[0].mxu0
        %768 = vmatprep.mubr.f32.mxu0 0.0
        %769 = vmatmul.mubr.f32.gmra.mrb[0].mxu0 %v583
        %v770 = vpop.f32.mrb[0].mxu0
        %v771 = vadd.f32 %v540, %v770
        %v772 = vpop.f32.mrb[0].mxu0
        %773 = vmatprep.mubr.f32.mxu0 0.0
        %774 = vmatmul.mubr.f32.gmra.mrb[0].mxu0 %v586
        %v775 = vpop.f32.mrb[0].mxu0
        %v776 = vadd.f32 %v540, %v775
        %v777 = vpop.f32.mrb[0].mxu0
        %778 = vmatprep.mubr.f32.mxu0 0.0
        %779 = vmatmul.mubr.f32.gmra.mrb[0].mxu0 %v589
        %v780 = vpop.f32.mrb[0].mxu0
        %v781 = vadd.f32 %v540, %v780
        %v782 = vpop.f32.mrb[0].mxu0
        %783 = vmatprep.mubr.f32.mxu0 0.0
        %784 = vmatmul.mubr.f32.gmra.mrb[0].mxu0 %v592
        %v785 = vpop.f32.mrb[0].mxu0
        %v786 = vadd.f32 %v540, %v785
        %v787 = vpop.f32.mrb[0].mxu0
        %788 = vmatprep.mubr.f32.mxu0 0.0
        %789 = vmatmul.mubr.f32.gmra.mrb[0].mxu0 %v595
        %v790 = vpop.f32.mrb[0].mxu0
        %v791 = vadd.f32 %v540, %v790
        %v792 = vpop.f32.mrb[0].mxu0
        %793 = vmatprep.mubr.f32.mxu0 0.0
        %794 = vmatmul.mubr.f32.gmra.mrb[0].mxu0 %v598
        %v795 = vpop.f32.mrb[0].mxu0
        %v796 = vadd.f32 %v540, %v795
        %v797 = vpop.f32.mrb[0].mxu0
        %798 = vmatprep.mubr.f32.mxu0 0.0
        %799 = vmatmul.mubr.f32.gmra.mrb[0].mxu0 %v601
        %v800 = vpop.f32.mrb[0].mxu0
        %v801 = vadd.f32 %v540, %v800
        %v802 = vpop.f32.mrb[0].mxu0
        %803 = vmatprep.mubr.f32.mxu0 0.0
        %804 = vmatmul.mubr.f32.gmra.mrb[0].mxu0 %v604
        %v805 = vpop.f32.mrb[0].mxu0
        %v806 = vadd.f32 %v540, %v805
        %v807 = vpop.f32.mrb[0].mxu0
        %808 = vmatprep.mubr.f32.mxu0 0.0
        %809 = vmatmul.mubr.f32.gmra.mrb[0].mxu0 %v607
        %v810 = vpop.f32.mrb[0].mxu0
        %v811 = vadd.f32 %v540, %v810
        %v812 = vpop.f32.mrb[0].mxu0
        %813 = vmatprep.mubr.f32.mxu0 0.0
        %814 = vmatmul.mubr.f32.gmra.mrb[0].mxu0 %v610
        %v815 = vpop.f32.mrb[0].mxu0
        %v816 = vadd.f32 %v540, %v815
        %v817 = vpop.f32.mrb[0].mxu0
        %818 = vmatprep.mubr.f32.mxu0 0.0
        %819 = vmatmul.mubr.f32.gmra.mrb[0].mxu0 %v613
        %v820 = vpop.f32.mrb[0].mxu0
        %v821 = vadd.f32 %v540, %v820
        %v822 = vpop.f32.mrb[0].mxu0
        %823 = vmatprep.mubr.f32.mxu0 0.0
        %824 = vmatmul.mubr.f32.gmra.mrb[0].mxu0 %v616
        %v825 = vpop.f32.mrb[0].mxu0
        %v826 = vadd.f32 %v540, %v825
        %v827 = vpop.f32.mrb[0].mxu0
        %828 = vmatprep.mubr.f32.mxu0 0.0
        %829 = vmatmul.mubr.f32.gmra.mrb[0].mxu0 %v619
        %v830 = vpop.f32.mrb[0].mxu0
        %v831 = vadd.f32 %v540, %v830
        %v832 = vpop.f32.mrb[0].mxu0
        %833 = vmatprep.mubr.f32.mxu0 0.0
        %834 = vmatmul.mubr.f32.gmra.mrb[0].mxu0 %v622
        %v835 = vpop.f32.mrb[0].mxu0
        %v836 = vadd.f32 %v540, %v835
        %v837 = vpop.f32.mrb[0].mxu0
        %838 = vmatprep.mubr.f32.mxu0 0.0
        %839 = vmatmul.mubr.f32.gmra.mrb[0].mxu0 %v625
        %v840 = vpop.f32.mrb[0].mxu0
        %v841 = vadd.f32 %v540, %v840
        %v842 = vpop.f32.mrb[0].mxu0
        %843 = vmatprep.mubr.f32.mxu0 0.0
        %844 = vmatmul.mubr.f32.gmra.mrb[0].mxu0 %v628
        %v845 = vpop.f32.mrb[0].mxu0
        %v846 = vadd.f32 %v540, %v845
        %v847 = vpop.f32.mrb[0].mxu0
        %848 = vmatprep.mubr.f32.mxu0 0.0
        %849 = vmatmul.mubr.f32.gmra.mrb[0].mxu0 %v631
        %v850 = vpop.f32.mrb[0].mxu0
        %v851 = vadd.f32 %v540, %v850
        %v852 = vpop.f32.mrb[0].mxu0
        %853 = vmatprep.mubr.f32.mxu0 0.0
        %854 = vmatmul.mubr.f32.gmra.mrb[0].mxu0 %v634
        %v855 = vpop.f32.mrb[0].mxu0
        %v856 = vadd.f32 %v540, %v855
        %v857 = vpop.f32.mrb[0].mxu0
        %858 = vmatprep.mubr.f32.mxu0 0.0
        %859 = vmatmul.mubr.f32.gmra.mrb[0].mxu0 %v637
        %v860 = vpop.f32.mrb[0].mxu0
        %v861 = vadd.f32 %v540, %v860
        %v862 = vpop.f32.mrb[0].mxu0
        %863 = vdwg.mxu0
        %v864 = vmax.f32 %v706, 0.0
        %v865 = vmax.f32 %v711, 0.0
        %v866 = vmax.f32 %v716, 0.0
        %v867 = vmax.f32 %v721, 0.0
        %v868 = vmax.f32 %v726, 0.0
        %v869 = vmax.f32 %v731, 0.0
        %v870 = vmax.f32 %v736, 0.0
        %v871 = vmax.f32 %v741, 0.0
        %v872 = vmax.f32 %v746, 0.0
        %v873 = vmax.f32 %v751, 0.0
        %v874 = vmax.f32 %v756, 0.0
        %v875 = vmax.f32 %v761, 0.0
        %v876 = vmax.f32 %v766, 0.0
        %v877 = vmax.f32 %v771, 0.0
        %v878 = vmax.f32 %v776, 0.0
        %v879 = vmax.f32 %v781, 0.0
        %v880 = vmax.f32 %v786, 0.0
        %v881 = vmax.f32 %v791, 0.0
        %v882 = vmax.f32 %v796, 0.0
        %v883 = vmax.f32 %v801, 0.0
        %v884 = vmax.f32 %v806, 0.0
        %v885 = vmax.f32 %v811, 0.0
        %v886 = vmax.f32 %v816, 0.0
        %v887 = vmax.f32 %v821, 0.0
        %v888 = vmax.f32 %v826, 0.0
        %v889 = vmax.f32 %v831, 0.0
        %v890 = vmax.f32 %v836, 0.0
        %v891 = vmax.f32 %v841, 0.0
        %v892 = vmax.f32 %v846, 0.0
        %v893 = vmax.f32 %v851, 0.0
        %v894 = vmax.f32 %v856, 0.0
        %v895 = vmax.f32 %v861, 0.0
        %896 = vst.msk [vmem:[#allocation2] sm:$0xff] %vm542, 0.0
        %897 = vst.msk [vmem:[#allocation2 + $0x8] sm:$0xff] %vm542, 0.0
        %898 = vst.msk [vmem:[#allocation2 + $0x10] sm:$0xff] %vm542, 0.0
        %vm899 = vcmask 516096
        %900 = vst.msk [vmem:[#allocation2 + $0x18] sm:$0x1] %vm899, 0.0
        %901 = vst.msk [vmem:[#allocation2 + $0x20] sm:$0xff] %vm542, 0.0
        %902 = vst.msk [vmem:[#allocation2 + $0x28] sm:$0xff] %vm542, 0.0
        %903 = vst.msk [vmem:[#allocation2 + $0x30] sm:$0xff] %vm542, 0.0
        %904 = vst.msk [vmem:[#allocation2 + $0x38] sm:$0x1] %vm899, 0.0
        %905 = vst.msk [vmem:[#allocation2 + $0x40] sm:$0xff] %vm542, 0.0
        %906 = vst.msk [vmem:[#allocation2 + $0x48] sm:$0xff] %vm542, 0.0
        %907 = vst.msk [vmem:[#allocation2 + $0x50] sm:$0xff] %vm542, 0.0
        %908 = vst.msk [vmem:[#allocation2 + $0x58] sm:$0x1] %vm899, 0.0
        %909 = vst.msk [vmem:[#allocation2 + $0x60] sm:$0xff] %vm542, 0.0
        %910 = vst.msk [vmem:[#allocation2 + $0x68] sm:$0xff] %vm542, 0.0
        %911 = vst.msk [vmem:[#allocation2 + $0x70] sm:$0xff] %vm542, 0.0
        %912 = vst.msk [vmem:[#allocation2 + $0x78] sm:$0x1] %vm899, 0.0
        %913 = vst.msk [vmem:[#allocation2 + $0x80] sm:$0xff] %vm542, 0.0
        %914 = vst.msk [vmem:[#allocation2 + $0x88] sm:$0xff] %vm542, 0.0
        %915 = vst.msk [vmem:[#allocation2 + $0x90] sm:$0xff] %vm542, 0.0
        %916 = vst.msk [vmem:[#allocation2 + $0x98] sm:$0x1] %vm899, 0.0
        %917 = vst.msk [vmem:[#allocation2 + $0xa0] sm:$0xff] %vm542, 0.0
        %918 = vst.msk [vmem:[#allocation2 + $0xa8] sm:$0xff] %vm542, 0.0
        %919 = vst.msk [vmem:[#allocation2 + $0xb0] sm:$0xff] %vm542, 0.0
        %920 = vst.msk [vmem:[#allocation2 + $0xb8] sm:$0x1] %vm899, 0.0
        %921 = vst.msk [vmem:[#allocation2 + $0xc0] sm:$0xff] %vm542, 0.0
        %922 = vst.msk [vmem:[#allocation2 + $0xc8] sm:$0xff] %vm542, 0.0
        %923 = vst.msk [vmem:[#allocation2 + $0xd0] sm:$0xff] %vm542, 0.0
        %924 = vst.msk [vmem:[#allocation2 + $0xd8] sm:$0x1] %vm899, 0.0
        %925 = vst.msk [vmem:[#allocation2 + $0xe0] sm:$0xff] %vm542, 0.0
        %926 = vst.msk [vmem:[#allocation2 + $0xe8] sm:$0xff] %vm542, 0.0
        %927 = vst.msk [vmem:[#allocation2 + $0xf0] sm:$0xff] %vm542, 0.0
        %928 = vst.msk [vmem:[#allocation2 + $0xf8] sm:$0x1] %vm899, 0.0
        %929 = vst.msk [vmem:[#allocation2 + $0x100] sm:$0xff] %vm542, 0.0
        %930 = vst.msk [vmem:[#allocation2 + $0x108] sm:$0xff] %vm542, 0.0
        %931 = vst.msk [vmem:[#allocation2 + $0x110] sm:$0xff] %vm542, 0.0
        %932 = vst.msk [vmem:[#allocation2 + $0x118] sm:$0x1] %vm899, 0.0
        %933 = vst.msk [vmem:[#allocation2 + $0x120] sm:$0xff] %vm542, 0.0
        %934 = vst.msk [vmem:[#allocation2 + $0x128] sm:$0xff] %vm542, 0.0
        %935 = vst.msk [vmem:[#allocation2 + $0x130] sm:$0xff] %vm542, 0.0
        %936 = vst.msk [vmem:[#allocation2 + $0x138] sm:$0x1] %vm899, 0.0
        %937 = vst.msk [vmem:[#allocation2 + $0x140] sm:$0xff] %vm542, 0.0
        %938 = vst.msk [vmem:[#allocation2 + $0x148] sm:$0xff] %vm542, 0.0
        %939 = vst.msk [vmem:[#allocation2 + $0x150] sm:$0xff] %vm542, 0.0
        %940 = vst.msk [vmem:[#allocation2 + $0x158] sm:$0x1] %vm899, 0.0
        %941 = vst.msk [vmem:[#allocation2 + $0x160] sm:$0xff] %vm542, 0.0
        %942 = vst.msk [vmem:[#allocation2 + $0x168] sm:$0xff] %vm542, 0.0
        %943 = vst.msk [vmem:[#allocation2 + $0x170] sm:$0xff] %vm542, 0.0
        %944 = vst.msk [vmem:[#allocation2 + $0x178] sm:$0x1] %vm899, 0.0
        %945 = vst.msk [vmem:[#allocation2 + $0x180] sm:$0xff] %vm542, 0.0
        %946 = vst.msk [vmem:[#allocation2 + $0x188] sm:$0xff] %vm542, 0.0
        %947 = vst.msk [vmem:[#allocation2 + $0x190] sm:$0xff] %vm542, 0.0
        %948 = vst.msk [vmem:[#allocation2 + $0x198] sm:$0x1] %vm899, 0.0
        %949 = vst.msk [vmem:[#allocation2 + $0x1a0] sm:$0xff] %vm542, 0.0
        %950 = vst.msk [vmem:[#allocation2 + $0x1a8] sm:$0xff] %vm542, 0.0
        %951 = vst.msk [vmem:[#allocation2 + $0x1b0] sm:$0xff] %vm542, 0.0
        %952 = vst.msk [vmem:[#allocation2 + $0x1b8] sm:$0x1] %vm899, 0.0
        %953 = vst.msk [vmem:[#allocation2 + $0x1c0] sm:$0xff] %vm542, 0.0
        %954 = vst.msk [vmem:[#allocation2 + $0x1c8] sm:$0xff] %vm542, 0.0
        %955 = vst.msk [vmem:[#allocation2 + $0x1d0] sm:$0xff] %vm542, 0.0
        %956 = vst.msk [vmem:[#allocation2 + $0x1d8] sm:$0x1] %vm899, 0.0
        %957 = vst.msk [vmem:[#allocation2 + $0x1e0] sm:$0xff] %vm542, 0.0
        %958 = vst.msk [vmem:[#allocation2 + $0x1e8] sm:$0xff] %vm542, 0.0
        %959 = vst.msk [vmem:[#allocation2 + $0x1f0] sm:$0xff] %vm542, 0.0
        %960 = vst.msk [vmem:[#allocation2 + $0x1f8] sm:$0x1] %vm899, 0.0
        %961 = vst.msk [vmem:[#allocation2 + $0x200] sm:$0xff] %vm542, 0.0
        %962 = vst.msk [vmem:[#allocation2 + $0x208] sm:$0xff] %vm542, 0.0
        %963 = vst.msk [vmem:[#allocation2 + $0x210] sm:$0xff] %vm542, 0.0
        %964 = vst.msk [vmem:[#allocation2 + $0x218] sm:$0x1] %vm899, 0.0
        %965 = vst.msk [vmem:[#allocation2 + $0x220] sm:$0xff] %vm542, 0.0
        %966 = vst.msk [vmem:[#allocation2 + $0x228] sm:$0xff] %vm542, 0.0
        %967 = vst.msk [vmem:[#allocation2 + $0x230] sm:$0xff] %vm542, 0.0
        %968 = vst.msk [vmem:[#allocation2 + $0x238] sm:$0x1] %vm899, 0.0
        %s969 = scalar_lea.vmem [#allocation2], 32
        %970 = vst.msk [vmem:[%s969 + $0x8] sm:$0xff] %vm542, %v864
        %971 = vst.msk [vmem:[%s969 + $0x10] sm:$0xff] %vm542, %v865
        %972 = vst.msk [vmem:[%s969 + $0x28] sm:$0xff] %vm542, %v866
        %973 = vst.msk [vmem:[%s969 + $0x30] sm:$0xff] %vm542, %v867
        %974 = vst.msk [vmem:[%s969 + $0x48] sm:$0xff] %vm542, %v868
        %975 = vst.msk [vmem:[%s969 + $0x50] sm:$0xff] %vm542, %v869
        %976 = vst.msk [vmem:[%s969 + $0x68] sm:$0xff] %vm542, %v870
        %977 = vst.msk [vmem:[%s969 + $0x70] sm:$0xff] %vm542, %v871
        %978 = vst.msk [vmem:[%s969 + $0x88] sm:$0xff] %vm542, %v872
        %979 = vst.msk [vmem:[%s969 + $0x90] sm:$0xff] %vm542, %v873
        %980 = vst.msk [vmem:[%s969 + $0xa8] sm:$0xff] %vm542, %v874
        %981 = vst.msk [vmem:[%s969 + $0xb0] sm:$0xff] %vm542, %v875
        %982 = vst.msk [vmem:[%s969 + $0xc8] sm:$0xff] %vm542, %v876
        %983 = vst.msk [vmem:[%s969 + $0xd0] sm:$0xff] %vm542, %v877
        %984 = vst.msk [vmem:[%s969 + $0xe8] sm:$0xff] %vm542, %v878
        %985 = vst.msk [vmem:[%s969 + $0xf0] sm:$0xff] %vm542, %v879
        %986 = vst.msk [vmem:[%s969 + $0x108] sm:$0xff] %vm542, %v880
        %987 = vst.msk [vmem:[%s969 + $0x110] sm:$0xff] %vm542, %v881
        %988 = vst.msk [vmem:[%s969 + $0x128] sm:$0xff] %vm542, %v882
        %989 = vst.msk [vmem:[%s969 + $0x130] sm:$0xff] %vm542, %v883
        %990 = vst.msk [vmem:[%s969 + $0x148] sm:$0xff] %vm542, %v884
        %991 = vst.msk [vmem:[%s969 + $0x150] sm:$0xff] %vm542, %v885
        %992 = vst.msk [vmem:[%s969 + $0x168] sm:$0xff] %vm542, %v886
        %993 = vst.msk [vmem:[%s969 + $0x170] sm:$0xff] %vm542, %v887
        %994 = vst.msk [vmem:[%s969 + $0x188] sm:$0xff] %vm542, %v888
        %995 = vst.msk [vmem:[%s969 + $0x190] sm:$0xff] %vm542, %v889
        %996 = vst.msk [vmem:[%s969 + $0x1a8] sm:$0xff] %vm542, %v890
        %997 = vst.msk [vmem:[%s969 + $0x1b0] sm:$0xff] %vm542, %v891
        %998 = vst.msk [vmem:[%s969 + $0x1c8] sm:$0xff] %vm542, %v892
        %999 = vst.msk [vmem:[%s969 + $0x1d0] sm:$0xff] %vm542, %v893
        %1000 = vst.msk [vmem:[%s969 + $0x1e8] sm:$0xff] %vm542, %v894
        %1001 = vst.msk [vmem:[%s969 + $0x1f0] sm:$0xff] %vm542, %v895
        %v1002 = vld [vmem:[#allocation2 + $0x7] sm:$0xff]
        %v1003 = vld [vmem:[#allocation2 + $0xf] sm:$0xff]
        %v1004 = vld [vmem:[#allocation2 + $0x27] sm:$0xff]
        %v1005 = vld [vmem:[#allocation2 + $0x2f] sm:$0xff]
        %v1006 = vld [vmem:[#allocation2 + $0x47] sm:$0xff]
        %v1007 = vld [vmem:[#allocation2 + $0x4f] sm:$0xff]
        %v1008 = vld [vmem:[#allocation2 + $0x67] sm:$0xff]
        %v1009 = vld [vmem:[#allocation2 + $0x6f] sm:$0xff]
        %v1010 = vld [vmem:[#allocation2 + $0x87] sm:$0xff]
        %v1011 = vld [vmem:[#allocation2 + $0x8f] sm:$0xff]
        %v1012 = vld [vmem:[#allocation2 + $0xa7] sm:$0xff]
        %v1013 = vld [vmem:[#allocation2 + $0xaf] sm:$0xff]
        %v1014 = vld [vmem:[#allocation2 + $0xc7] sm:$0xff]
        %v1015 = vld [vmem:[#allocation2 + $0xcf] sm:$0xff]
        %v1016 = vld [vmem:[#allocation2 + $0xe7] sm:$0xff]
        %v1017 = vld [vmem:[#allocation2 + $0xef] sm:$0xff]
        %v1018 = vld [vmem:[#allocation2 + $0x107] sm:$0xff]
        %v1019 = vld [vmem:[#allocation2 + $0x10f] sm:$0xff]
        %v1020 = vld [vmem:[#allocation2 + $0x127] sm:$0xff]
        %v1021 = vld [vmem:[#allocation2 + $0x12f] sm:$0xff]
        %v1022 = vld [vmem:[#allocation2 + $0x147] sm:$0xff]
        %v1023 = vld [vmem:[#allocation2 + $0x14f] sm:$0xff]
        %v1024 = vld [vmem:[#allocation2 + $0x167] sm:$0xff]
        %v1025 = vld [vmem:[#allocation2 + $0x16f] sm:$0xff]
        %v1026 = vld [vmem:[#allocation2 + $0x187] sm:$0xff]
        %v1027 = vld [vmem:[#allocation2 + $0x18f] sm:$0xff]
        %v1028 = vld [vmem:[#allocation2 + $0x1a7] sm:$0xff]
        %v1029 = vld [vmem:[#allocation2 + $0x1af] sm:$0xff]
        %v1030 = vld [vmem:[#allocation2 + $0x1c7] sm:$0xff]
        %v1031 = vld [vmem:[#allocation2 + $0x1cf] sm:$0xff]
        %v1032 = vld [vmem:[#allocation2 + $0x1e7] sm:$0xff]
        %v1033 = vld [vmem:[#allocation2 + $0x1ef] sm:$0xff]
        %v1034 = vld [vmem:[%s5] sm:$0xff]
        %v1035 = vld [vmem:[%s5 + $0x8] sm:$0xff]
        %v1036 = vld [vmem:[%s5 + $0x10] sm:$0xff]
        %v1037 = vld [vmem:[%s5 + $0x18] sm:$0xff]
        %v1038 = vld [vmem:[%s5 + $0x20] sm:$0xff]
        %v1039 = vld [vmem:[%s5 + $0x28] sm:$0xff]
        %v1040 = vld [vmem:[%s5 + $0x30] sm:$0xff]
        %v1041 = vld [vmem:[%s5 + $0x38] sm:$0xff]
        %v1042 = vld [vmem:[#allocation2 + $0x8] sm:$0xff]
        %v1043 = vld [vmem:[#allocation2 + $0x10] sm:$0xff]
        %v1044 = vld [vmem:[#allocation2 + $0x28] sm:$0xff]
        %v1045 = vld [vmem:[#allocation2 + $0x30] sm:$0xff]
        %v1046 = vld [vmem:[#allocation2 + $0x48] sm:$0xff]
        %v1047 = vld [vmem:[#allocation2 + $0x50] sm:$0xff]
        %v1048 = vld [vmem:[#allocation2 + $0x68] sm:$0xff]
        %v1049 = vld [vmem:[#allocation2 + $0x70] sm:$0xff]
        %v1050 = vld [vmem:[#allocation2 + $0x88] sm:$0xff]
        %v1051 = vld [vmem:[#allocation2 + $0x90] sm:$0xff]
        %v1052 = vld [vmem:[#allocation2 + $0xa8] sm:$0xff]
        %v1053 = vld [vmem:[#allocation2 + $0xb0] sm:$0xff]
        %v1054 = vld [vmem:[#allocation2 + $0xc8] sm:$0xff]
        %v1055 = vld [vmem:[#allocation2 + $0xd0] sm:$0xff]
        %v1056 = vld [vmem:[#allocation2 + $0xe8] sm:$0xff]
        %v1057 = vld [vmem:[#allocation2 + $0xf0] sm:$0xff]
        %v1058 = vld [vmem:[#allocation2 + $0x108] sm:$0xff]
        %v1059 = vld [vmem:[#allocation2 + $0x110] sm:$0xff]
        %v1060 = vld [vmem:[#allocation2 + $0x128] sm:$0xff]
        %v1061 = vld [vmem:[#allocation2 + $0x130] sm:$0xff]
        %v1062 = vld [vmem:[#allocation2 + $0x148] sm:$0xff]
        %v1063 = vld [vmem:[#allocation2 + $0x150] sm:$0xff]
        %v1064 = vld [vmem:[#allocation2 + $0x168] sm:$0xff]
        %v1065 = vld [vmem:[#allocation2 + $0x170] sm:$0xff]
        %v1066 = vld [vmem:[#allocation2 + $0x188] sm:$0xff]
        %v1067 = vld [vmem:[#allocation2 + $0x190] sm:$0xff]
        %v1068 = vld [vmem:[#allocation2 + $0x1a8] sm:$0xff]
        %v1069 = vld [vmem:[#allocation2 + $0x1b0] sm:$0xff]
        %v1070 = vld [vmem:[#allocation2 + $0x1c8] sm:$0xff]
        %v1071 = vld [vmem:[#allocation2 + $0x1d0] sm:$0xff]
        %v1072 = vld [vmem:[#allocation2 + $0x1e8] sm:$0xff]
        %v1073 = vld [vmem:[#allocation2 + $0x1f0] sm:$0xff]
        %v1074 = vld [vmem:[%s5 + $0x40] sm:$0xff]
        %v1075 = vld [vmem:[%s5 + $0x48] sm:$0xff]
        %v1076 = vld [vmem:[%s5 + $0x50] sm:$0xff]
        %v1077 = vld [vmem:[%s5 + $0x58] sm:$0xff]
        %v1078 = vld [vmem:[%s5 + $0x60] sm:$0xff]
        %v1079 = vld [vmem:[%s5 + $0x68] sm:$0xff]
        %v1080 = vld [vmem:[%s5 + $0x70] sm:$0xff]
        %v1081 = vld [vmem:[%s5 + $0x78] sm:$0xff]
        %v1083 = vsel %vm542, %v1042, 0
        %v1086 = vsel %vm542, %v1043, 0
        %v1089 = vsel %vm542, %v1044, 0
        %v1092 = vsel %vm542, %v1045, 0
        %v1095 = vsel %vm542, %v1046, 0
        %v1098 = vsel %vm542, %v1047, 0
        %v1101 = vsel %vm542, %v1048, 0
        %v1104 = vsel %vm542, %v1049, 0
        %v1107 = vsel %vm542, %v1050, 0
        %v1110 = vsel %vm542, %v1051, 0
        %v1113 = vsel %vm542, %v1052, 0
        %v1116 = vsel %vm542, %v1053, 0
        %v1119 = vsel %vm542, %v1054, 0
        %v1122 = vsel %vm542, %v1055, 0
        %v1125 = vsel %vm542, %v1056, 0
        %v1128 = vsel %vm542, %v1057, 0
        %v1131 = vsel %vm542, %v1058, 0
        %v1134 = vsel %vm542, %v1059, 0
        %v1137 = vsel %vm542, %v1060, 0
        %v1140 = vsel %vm542, %v1061, 0
        %v1143 = vsel %vm542, %v1062, 0
        %v1146 = vsel %vm542, %v1063, 0
        %v1149 = vsel %vm542, %v1064, 0
        %v1152 = vsel %vm542, %v1065, 0
        %v1155 = vsel %vm542, %v1066, 0
        %v1158 = vsel %vm542, %v1067, 0
        %v1161 = vsel %vm542, %v1068, 0
        %v1164 = vsel %vm542, %v1069, 0
        %v1167 = vsel %vm542, %v1070, 0
        %v1170 = vsel %vm542, %v1071, 0
        %v1173 = vsel %vm542, %v1072, 0
        %v1176 = vsel %vm542, %v1073, 0
        %1178 = vmatprep.subr.mxu0 0.0
        %1179 = vmatpush1.msra.mxu0 %v1074
        %1180 = vmatprep.subr.mxu0 0.0
        %1181 = vmatpush1.msra.mxu0 %v1075
        %1182 = vmatprep.subr.mxu0 0.0
        %1183 = vmatpush1.msra.mxu0 %v1076
        %1184 = vmatprep.subr.mxu0 0.0
        %1185 = vmatpush1.msra.mxu0 %v1077
        %1186 = vmatprep.subr.mxu0 0.0
        %1187 = vmatpush1.msra.mxu0 %v1078
        %1188 = vmatprep.subr.mxu0 0.0
        %1189 = vmatpush1.msra.mxu0 %v1079
        %1190 = vmatprep.subr.mxu0 0.0
        %1191 = vmatpush1.msra.mxu0 %v1080
        %1192 = vmatprep.subr.mxu0 0.0
        %1193 = vmatpush1.msra.mxu0 %v1081
        %1194 = vmatprep.subr.mxu0 0.0
        %1195 = vmatpush1.msra.mxu0 0.0
        %1196 = vmatprep.subr.mxu0 0.0
        %1197 = vmatpush1.msra.mxu0 0.0
        %1198 = vmatprep.subr.mxu0 0.0
        %1199 = vmatpush1.msra.mxu0 0.0
        %1200 = vmatprep.subr.mxu0 0.0
        %1201 = vmatpush1.msra.mxu0 0.0
        %1202 = vmatprep.subr.mxu0 0.0
        %1203 = vmatpush1.msra.mxu0 0.0
        %1204 = vmatprep.subr.mxu0 0.0
        %1205 = vmatpush1.msra.mxu0 0.0
        %1206 = vmatprep.subr.mxu0 0.0
        %1207 = vmatpush1.msra.mxu0 0.0
        %1208 = vmatprep.subr.mxu0 0.0
        %1209 = vmatpush1.msra.mxu0 0.0
        %1210 = vmatprep.subr.mxu0 0.0
        %1211 = vmatpush1.msra.mxu0 0.0
        %1212 = vmatprep.subr.mxu0 0.0
        %1213 = vmatpush1.msra.mxu0 0.0
        %1214 = vmatprep.subr.mxu0 0.0
        %1215 = vmatpush1.msra.mxu0 0.0
        %1216 = vmatprep.subr.mxu0 0.0
        %1217 = vmatpush1.msra.mxu0 0.0
        %1218 = vmatprep.subr.mxu0 0.0
        %1219 = vmatpush1.msra.mxu0 0.0
        %1220 = vmatprep.subr.mxu0 0.0
        %1221 = vmatpush1.msra.mxu0 0.0
        %1222 = vmatprep.subr.mxu0 0.0
        %1223 = vmatpush1.msra.mxu0 0.0
        %1224 = vmatprep.subr.mxu0 0.0
        %1225 = vmatpush1.msra.mxu0 0.0
        %1226 = vmatprep.subr.mxu0 0.0
        %1227 = vmatpush1.msra.mxu0 0.0
        %1228 = vmatprep.subr.mxu0 0.0
        %1229 = vmatpush1.msra.mxu0 0.0
        %1230 = vmatprep.subr.mxu0 0.0
        %1231 = vmatpush1.msra.mxu0 0.0
        %1232 = vmatprep.subr.mxu0 0.0
        %1233 = vmatpush1.msra.mxu0 0.0
        %1234 = vmatprep.subr.mxu0 0.0
        %1235 = vmatpush1.msra.mxu0 0.0
        %1236 = vmatprep.subr.mxu0 0.0
        %1237 = vmatpush1.msra.mxu0 0.0
        %1238 = vmatprep.subr.mxu0 0.0
        %1239 = vmatpush1.msra.mxu0 0.0
        %1240 = vmatprep.subr.mxu0 0.0
        %1241 = vmatpush1.msra.mxu0 0.0
        %1242 = vmatprep.mubr.f32.mxu0 0.0
        %1243 = vmatmul.mubr.f32.gmra.mrb[0].mxu0 %v1083
        %v1244 = vpop.f32.mrb[0].mxu0
        %v1245 = vadd.f32 0.0, %v1244
        %v1246 = vpop.f32.mrb[0].mxu0
        %1247 = vmatprep.mubr.f32.mxu0 0.0
        %1248 = vmatmul.mubr.f32.gmra.mrb[0].mxu0 %v1086
        %v1249 = vpop.f32.mrb[0].mxu0
        %v1250 = vadd.f32 0.0, %v1249
        %v1251 = vpop.f32.mrb[0].mxu0
        %1252 = vmatprep.mubr.f32.mxu0 0.0
        %1253 = vmatmul.mubr.f32.gmra.mrb[0].mxu0 %v1089
        %v1254 = vpop.f32.mrb[0].mxu0
        %v1255 = vadd.f32 0.0, %v1254
        %v1256 = vpop.f32.mrb[0].mxu0
        %1257 = vmatprep.mubr.f32.mxu0 0.0
        %1258 = vmatmul.mubr.f32.gmra.mrb[0].mxu0 %v1092
        %v1259 = vpop.f32.mrb[0].mxu0
        %v1260 = vadd.f32 0.0, %v1259
        %v1261 = vpop.f32.mrb[0].mxu0
        %1262 = vmatprep.mubr.f32.mxu0 0.0
        %1263 = vmatmul.mubr.f32.gmra.mrb[0].mxu0 %v1095
        %v1264 = vpop.f32.mrb[0].mxu0
        %v1265 = vadd.f32 0.0, %v1264
        %v1266 = vpop.f32.mrb[0].mxu0
        %1267 = vmatprep.mubr.f32.mxu0 0.0
        %1268 = vmatmul.mubr.f32.gmra.mrb[0].mxu0 %v1098
        %v1269 = vpop.f32.mrb[0].mxu0
        %v1270 = vadd.f32 0.0, %v1269
        %v1271 = vpop.f32.mrb[0].mxu0
        %1272 = vmatprep.mubr.f32.mxu0 0.0
        %1273 = vmatmul.mubr.f32.gmra.mrb[0].mxu0 %v1101
        %v1274 = vpop.f32.mrb[0].mxu0
        %v1275 = vadd.f32 0.0, %v1274
        %v1276 = vpop.f32.mrb[0].mxu0
        %1277 = vmatprep.mubr.f32.mxu0 0.0
        %1278 = vmatmul.mubr.f32.gmra.mrb[0].mxu0 %v1104
        %v1279 = vpop.f32.mrb[0].mxu0
        %v1280 = vadd.f32 0.0, %v1279
        %v1281 = vpop.f32.mrb[0].mxu0
        %1282 = vmatprep.mubr.f32.mxu0 0.0
        %1283 = vmatmul.mubr.f32.gmra.mrb[0].mxu0 %v1107
        %v1284 = vpop.f32.mrb[0].mxu0
        %v1285 = vadd.f32 0.0, %v1284
        %v1286 = vpop.f32.mrb[0].mxu0
        %1287 = vmatprep.mubr.f32.mxu0 0.0
        %1288 = vmatmul.mubr.f32.gmra.mrb[0].mxu0 %v1110
        %v1289 = vpop.f32.mrb[0].mxu0
        %v1290 = vadd.f32 0.0, %v1289
        %v1291 = vpop.f32.mrb[0].mxu0
        %1292 = vmatprep.mubr.f32.mxu0 0.0
        %1293 = vmatmul.mubr.f32.gmra.mrb[0].mxu0 %v1113
        %v1294 = vpop.f32.mrb[0].mxu0
        %v1295 = vadd.f32 0.0, %v1294
        %v1296 = vpop.f32.mrb[0].mxu0
        %1297 = vmatprep.mubr.f32.mxu0 0.0
        %1298 = vmatmul.mubr.f32.gmra.mrb[0].mxu0 %v1116
        %v1299 = vpop.f32.mrb[0].mxu0
        %v1300 = vadd.f32 0.0, %v1299
        %v1301 = vpop.f32.mrb[0].mxu0
        %1302 = vmatprep.mubr.f32.mxu0 0.0
        %1303 = vmatmul.mubr.f32.gmra.mrb[0].mxu0 %v1119
        %v1304 = vpop.f32.mrb[0].mxu0
        %v1305 = vadd.f32 0.0, %v1304
        %v1306 = vpop.f32.mrb[0].mxu0
        %1307 = vmatprep.mubr.f32.mxu0 0.0
        %1308 = vmatmul.mubr.f32.gmra.mrb[0].mxu0 %v1122
        %v1309 = vpop.f32.mrb[0].mxu0
        %v1310 = vadd.f32 0.0, %v1309
        %v1311 = vpop.f32.mrb[0].mxu0
        %1312 = vmatprep.mubr.f32.mxu0 0.0
        %1313 = vmatmul.mubr.f32.gmra.mrb[0].mxu0 %v1125
        %v1314 = vpop.f32.mrb[0].mxu0
        %v1315 = vadd.f32 0.0, %v1314
        %v1316 = vpop.f32.mrb[0].mxu0
        %1317 = vmatprep.mubr.f32.mxu0 0.0
        %1318 = vmatmul.mubr.f32.gmra.mrb[0].mxu0 %v1128
        %v1319 = vpop.f32.mrb[0].mxu0
        %v1320 = vadd.f32 0.0, %v1319
        %v1321 = vpop.f32.mrb[0].mxu0
        %1322 = vmatprep.mubr.f32.mxu0 0.0
        %1323 = vmatmul.mubr.f32.gmra.mrb[0].mxu0 %v1131
        %v1324 = vpop.f32.mrb[0].mxu0
        %v1325 = vadd.f32 0.0, %v1324
        %v1326 = vpop.f32.mrb[0].mxu0
        %1327 = vmatprep.mubr.f32.mxu0 0.0
        %1328 = vmatmul.mubr.f32.gmra.mrb[0].mxu0 %v1134
        %v1329 = vpop.f32.mrb[0].mxu0
        %v1330 = vadd.f32 0.0, %v1329
        %v1331 = vpop.f32.mrb[0].mxu0
        %1332 = vmatprep.mubr.f32.mxu0 0.0
        %1333 = vmatmul.mubr.f32.gmra.mrb[0].mxu0 %v1137
        %v1334 = vpop.f32.mrb[0].mxu0
        %v1335 = vadd.f32 0.0, %v1334
        %v1336 = vpop.f32.mrb[0].mxu0
        %1337 = vmatprep.mubr.f32.mxu0 0.0
        %1338 = vmatmul.mubr.f32.gmra.mrb[0].mxu0 %v1140
        %v1339 = vpop.f32.mrb[0].mxu0
        %v1340 = vadd.f32 0.0, %v1339
        %v1341 = vpop.f32.mrb[0].mxu0
        %1342 = vmatprep.mubr.f32.mxu0 0.0
        %1343 = vmatmul.mubr.f32.gmra.mrb[0].mxu0 %v1143
        %v1344 = vpop.f32.mrb[0].mxu0
        %v1345 = vadd.f32 0.0, %v1344
        %v1346 = vpop.f32.mrb[0].mxu0
        %1347 = vmatprep.mubr.f32.mxu0 0.0
        %1348 = vmatmul.mubr.f32.gmra.mrb[0].mxu0 %v1146
        %v1349 = vpop.f32.mrb[0].mxu0
        %v1350 = vadd.f32 0.0, %v1349
        %v1351 = vpop.f32.mrb[0].mxu0
        %1352 = vmatprep.mubr.f32.mxu0 0.0
        %1353 = vmatmul.mubr.f32.gmra.mrb[0].mxu0 %v1149
        %v1354 = vpop.f32.mrb[0].mxu0
        %v1355 = vadd.f32 0.0, %v1354
        %v1356 = vpop.f32.mrb[0].mxu0
        %1357 = vmatprep.mubr.f32.mxu0 0.0
        %1358 = vmatmul.mubr.f32.gmra.mrb[0].mxu0 %v1152
        %v1359 = vpop.f32.mrb[0].mxu0
        %v1360 = vadd.f32 0.0, %v1359
        %v1361 = vpop.f32.mrb[0].mxu0
        %1362 = vmatprep.mubr.f32.mxu0 0.0
        %1363 = vmatmul.mubr.f32.gmra.mrb[0].mxu0 %v1155
        %v1364 = vpop.f32.mrb[0].mxu0
        %v1365 = vadd.f32 0.0, %v1364
        %v1366 = vpop.f32.mrb[0].mxu0
        %1367 = vmatprep.mubr.f32.mxu0 0.0
        %1368 = vmatmul.mubr.f32.gmra.mrb[0].mxu0 %v1158
        %v1369 = vpop.f32.mrb[0].mxu0
        %v1370 = vadd.f32 0.0, %v1369
        %v1371 = vpop.f32.mrb[0].mxu0
        %1372 = vmatprep.mubr.f32.mxu0 0.0
        %1373 = vmatmul.mubr.f32.gmra.mrb[0].mxu0 %v1161
        %v1374 = vpop.f32.mrb[0].mxu0
        %v1375 = vadd.f32 0.0, %v1374
        %v1376 = vpop.f32.mrb[0].mxu0
        %1377 = vmatprep.mubr.f32.mxu0 0.0
        %1378 = vmatmul.mubr.f32.gmra.mrb[0].mxu0 %v1164
        %v1379 = vpop.f32.mrb[0].mxu0
        %v1380 = vadd.f32 0.0, %v1379
        %v1381 = vpop.f32.mrb[0].mxu0
        %1382 = vmatprep.mubr.f32.mxu0 0.0
        %1383 = vmatmul.mubr.f32.gmra.mrb[0].mxu0 %v1167
        %v1384 = vpop.f32.mrb[0].mxu0
        %v1385 = vadd.f32 0.0, %v1384
        %v1386 = vpop.f32.mrb[0].mxu0
        %1387 = vmatprep.mubr.f32.mxu0 0.0
        %1388 = vmatmul.mubr.f32.gmra.mrb[0].mxu0 %v1170
        %v1389 = vpop.f32.mrb[0].mxu0
        %v1390 = vadd.f32 0.0, %v1389
        %v1391 = vpop.f32.mrb[0].mxu0
        %1392 = vmatprep.mubr.f32.mxu0 0.0
        %1393 = vmatmul.mubr.f32.gmra.mrb[0].mxu0 %v1173
        %v1394 = vpop.f32.mrb[0].mxu0
        %v1395 = vadd.f32 0.0, %v1394
        %v1396 = vpop.f32.mrb[0].mxu0
        %1397 = vmatprep.mubr.f32.mxu0 0.0
        %1398 = vmatmul.mubr.f32.gmra.mrb[0].mxu0 %v1176
        %v1399 = vpop.f32.mrb[0].mxu0
        %v1400 = vadd.f32 0.0, %v1399
        %v1401 = vpop.f32.mrb[0].mxu0
        %1402 = vdwg.mxu0
        %v1404 = vsel %vm542, %v1002, 0
        %v1407 = vsel %vm542, %v1003, 0
        %v1410 = vsel %vm542, %v1004, 0
        %v1413 = vsel %vm542, %v1005, 0
        %v1416 = vsel %vm542, %v1006, 0
        %v1419 = vsel %vm542, %v1007, 0
        %v1422 = vsel %vm542, %v1008, 0
        %v1425 = vsel %vm542, %v1009, 0
        %v1428 = vsel %vm542, %v1010, 0
        %v1431 = vsel %vm542, %v1011, 0
        %v1434 = vsel %vm542, %v1012, 0
        %v1437 = vsel %vm542, %v1013, 0
        %v1440 = vsel %vm542, %v1014, 0
        %v1443 = vsel %vm542, %v1015, 0
        %v1446 = vsel %vm542, %v1016, 0
        %v1449 = vsel %vm542, %v1017, 0
        %v1452 = vsel %vm542, %v1018, 0
        %v1455 = vsel %vm542, %v1019, 0
        %v1458 = vsel %vm542, %v1020, 0
        %v1461 = vsel %vm542, %v1021, 0
        %v1464 = vsel %vm542, %v1022, 0
        %v1467 = vsel %vm542, %v1023, 0
        %v1470 = vsel %vm542, %v1024, 0
        %v1473 = vsel %vm542, %v1025, 0
        %v1476 = vsel %vm542, %v1026, 0
        %v1479 = vsel %vm542, %v1027, 0
        %v1482 = vsel %vm542, %v1028, 0
        %v1485 = vsel %vm542, %v1029, 0
        %v1488 = vsel %vm542, %v1030, 0
        %v1491 = vsel %vm542, %v1031, 0
        %v1494 = vsel %vm542, %v1032, 0
        %v1497 = vsel %vm542, %v1033, 0
        %1499 = vmatprep.subr.mxu0 0.0
        %1500 = vmatpush1.msra.mxu0 %v1034
        %1501 = vmatprep.subr.mxu0 0.0
        %1502 = vmatpush1.msra.mxu0 %v1035
        %1503 = vmatprep.subr.mxu0 0.0
        %1504 = vmatpush1.msra.mxu0 %v1036
        %1505 = vmatprep.subr.mxu0 0.0
        %1506 = vmatpush1.msra.mxu0 %v1037
        %1507 = vmatprep.subr.mxu0 0.0
        %1508 = vmatpush1.msra.mxu0 %v1038
        %1509 = vmatprep.subr.mxu0 0.0
        %1510 = vmatpush1.msra.mxu0 %v1039
        %1511 = vmatprep.subr.mxu0 0.0
        %1512 = vmatpush1.msra.mxu0 %v1040
        %1513 = vmatprep.subr.mxu0 0.0
        %1514 = vmatpush1.msra.mxu0 %v1041
        %1515 = vmatprep.subr.mxu0 0.0
        %1516 = vmatpush1.msra.mxu0 0.0
        %1517 = vmatprep.subr.mxu0 0.0
        %1518 = vmatpush1.msra.mxu0 0.0
        %1519 = vmatprep.subr.mxu0 0.0
        %1520 = vmatpush1.msra.mxu0 0.0
        %1521 = vmatprep.subr.mxu0 0.0
        %1522 = vmatpush1.msra.mxu0 0.0
        %1523 = vmatprep.subr.mxu0 0.0
        %1524 = vmatpush1.msra.mxu0 0.0
        %1525 = vmatprep.subr.mxu0 0.0
        %1526 = vmatpush1.msra.mxu0 0.0
        %1527 = vmatprep.subr.mxu0 0.0
        %1528 = vmatpush1.msra.mxu0 0.0
        %1529 = vmatprep.subr.mxu0 0.0
        %1530 = vmatpush1.msra.mxu0 0.0
        %1531 = vmatprep.subr.mxu0 0.0
        %1532 = vmatpush1.msra.mxu0 0.0
        %1533 = vmatprep.subr.mxu0 0.0
        %1534 = vmatpush1.msra.mxu0 0.0
        %1535 = vmatprep.subr.mxu0 0.0
        %1536 = vmatpush1.msra.mxu0 0.0
        %1537 = vmatprep.subr.mxu0 0.0
        %1538 = vmatpush1.msra.mxu0 0.0
        %1539 = vmatprep.subr.mxu0 0.0
        %1540 = vmatpush1.msra.mxu0 0.0
        %1541 = vmatprep.subr.mxu0 0.0
        %1542 = vmatpush1.msra.mxu0 0.0
        %1543 = vmatprep.subr.mxu0 0.0
        %1544 = vmatpush1.msra.mxu0 0.0
        %1545 = vmatprep.subr.mxu0 0.0
        %1546 = vmatpush1.msra.mxu0 0.0
        %1547 = vmatprep.subr.mxu0 0.0
        %1548 = vmatpush1.msra.mxu0 0.0
        %1549 = vmatprep.subr.mxu0 0.0
        %1550 = vmatpush1.msra.mxu0 0.0
        %1551 = vmatprep.subr.mxu0 0.0
        %1552 = vmatpush1.msra.mxu0 0.0
        %1553 = vmatprep.subr.mxu0 0.0
        %1554 = vmatpush1.msra.mxu0 0.0
        %1555 = vmatprep.subr.mxu0 0.0
        %1556 = vmatpush1.msra.mxu0 0.0
        %1557 = vmatprep.subr.mxu0 0.0
        %1558 = vmatpush1.msra.mxu0 0.0
        %1559 = vmatprep.subr.mxu0 0.0
        %1560 = vmatpush1.msra.mxu0 0.0
        %1561 = vmatprep.subr.mxu0 0.0
        %1562 = vmatpush1.msra.mxu0 0.0
        %1563 = vmatprep.mubr.f32.mxu0 0.0
        %1564 = vmatmul.mubr.f32.gmra.mrb[0].mxu0 %v1404
        %v1565 = vpop.f32.mrb[0].mxu0
        %v1566 = vadd.f32 %v1245, %v1565
        %v1567 = vpop.f32.mrb[0].mxu0
        %1568 = vmatprep.mubr.f32.mxu0 0.0
        %1569 = vmatmul.mubr.f32.gmra.mrb[0].mxu0 %v1407
        %v1570 = vpop.f32.mrb[0].mxu0
        %v1571 = vadd.f32 %v1250, %v1570
        %v1572 = vpop.f32.mrb[0].mxu0
        %1573 = vmatprep.mubr.f32.mxu0 0.0
        %1574 = vmatmul.mubr.f32.gmra.mrb[0].mxu0 %v1410
        %v1575 = vpop.f32.mrb[0].mxu0
        %v1576 = vadd.f32 %v1255, %v1575
        %v1577 = vpop.f32.mrb[0].mxu0
        %1578 = vmatprep.mubr.f32.mxu0 0.0
        %1579 = vmatmul.mubr.f32.gmra.mrb[0].mxu0 %v1413
        %v1580 = vpop.f32.mrb[0].mxu0
        %v1581 = vadd.f32 %v1260, %v1580
        %v1582 = vpop.f32.mrb[0].mxu0
        %1583 = vmatprep.mubr.f32.mxu0 0.0
        %1584 = vmatmul.mubr.f32.gmra.mrb[0].mxu0 %v1416
        %v1585 = vpop.f32.mrb[0].mxu0
        %v1586 = vadd.f32 %v1265, %v1585
        %v1587 = vpop.f32.mrb[0].mxu0
        %1588 = vmatprep.mubr.f32.mxu0 0.0
        %1589 = vmatmul.mubr.f32.gmra.mrb[0].mxu0 %v1419
        %v1590 = vpop.f32.mrb[0].mxu0
        %v1591 = vadd.f32 %v1270, %v1590
        %v1592 = vpop.f32.mrb[0].mxu0
        %1593 = vmatprep.mubr.f32.mxu0 0.0
        %1594 = vmatmul.mubr.f32.gmra.mrb[0].mxu0 %v1422
        %v1595 = vpop.f32.mrb[0].mxu0
        %v1596 = vadd.f32 %v1275, %v1595
        %v1597 = vpop.f32.mrb[0].mxu0
        %1598 = vmatprep.mubr.f32.mxu0 0.0
        %1599 = vmatmul.mubr.f32.gmra.mrb[0].mxu0 %v1425
        %v1600 = vpop.f32.mrb[0].mxu0
        %v1601 = vadd.f32 %v1280, %v1600
        %v1602 = vpop.f32.mrb[0].mxu0
        %1603 = vmatprep.mubr.f32.mxu0 0.0
        %1604 = vmatmul.mubr.f32.gmra.mrb[0].mxu0 %v1428
        %v1605 = vpop.f32.mrb[0].mxu0
        %v1606 = vadd.f32 %v1285, %v1605
        %v1607 = vpop.f32.mrb[0].mxu0
        %1608 = vmatprep.mubr.f32.mxu0 0.0
        %1609 = vmatmul.mubr.f32.gmra.mrb[0].mxu0 %v1431
        %v1610 = vpop.f32.mrb[0].mxu0
        %v1611 = vadd.f32 %v1290, %v1610
        %v1612 = vpop.f32.mrb[0].mxu0
        %1613 = vmatprep.mubr.f32.mxu0 0.0
        %1614 = vmatmul.mubr.f32.gmra.mrb[0].mxu0 %v1434
        %v1615 = vpop.f32.mrb[0].mxu0
        %v1616 = vadd.f32 %v1295, %v1615
        %v1617 = vpop.f32.mrb[0].mxu0
        %1618 = vmatprep.mubr.f32.mxu0 0.0
        %1619 = vmatmul.mubr.f32.gmra.mrb[0].mxu0 %v1437
        %v1620 = vpop.f32.mrb[0].mxu0
        %v1621 = vadd.f32 %v1300, %v1620
        %v1622 = vpop.f32.mrb[0].mxu0
        %1623 = vmatprep.mubr.f32.mxu0 0.0
        %1624 = vmatmul.mubr.f32.gmra.mrb[0].mxu0 %v1440
        %v1625 = vpop.f32.mrb[0].mxu0
        %v1626 = vadd.f32 %v1305, %v1625
        %v1627 = vpop.f32.mrb[0].mxu0
        %1628 = vmatprep.mubr.f32.mxu0 0.0
        %1629 = vmatmul.mubr.f32.gmra.mrb[0].mxu0 %v1443
        %v1630 = vpop.f32.mrb[0].mxu0
        %v1631 = vadd.f32 %v1310, %v1630
        %v1632 = vpop.f32.mrb[0].mxu0
        %1633 = vmatprep.mubr.f32.mxu0 0.0
        %1634 = vmatmul.mubr.f32.gmra.mrb[0].mxu0 %v1446
        %v1635 = vpop.f32.mrb[0].mxu0
        %v1636 = vadd.f32 %v1315, %v1635
        %v1637 = vpop.f32.mrb[0].mxu0
        %1638 = vmatprep.mubr.f32.mxu0 0.0
        %1639 = vmatmul.mubr.f32.gmra.mrb[0].mxu0 %v1449
        %v1640 = vpop.f32.mrb[0].mxu0
        %v1641 = vadd.f32 %v1320, %v1640
        %v1642 = vpop.f32.mrb[0].mxu0
        %1643 = vmatprep.mubr.f32.mxu0 0.0
        %1644 = vmatmul.mubr.f32.gmra.mrb[0].mxu0 %v1452
        %v1645 = vpop.f32.mrb[0].mxu0
        %v1646 = vadd.f32 %v1325, %v1645
        %v1647 = vpop.f32.mrb[0].mxu0
        %1648 = vmatprep.mubr.f32.mxu0 0.0
        %1649 = vmatmul.mubr.f32.gmra.mrb[0].mxu0 %v1455
        %v1650 = vpop.f32.mrb[0].mxu0
        %v1651 = vadd.f32 %v1330, %v1650
        %v1652 = vpop.f32.mrb[0].mxu0
        %1653 = vmatprep.mubr.f32.mxu0 0.0
        %1654 = vmatmul.mubr.f32.gmra.mrb[0].mxu0 %v1458
        %v1655 = vpop.f32.mrb[0].mxu0
        %v1656 = vadd.f32 %v1335, %v1655
        %v1657 = vpop.f32.mrb[0].mxu0
        %1658 = vmatprep.mubr.f32.mxu0 0.0
        %1659 = vmatmul.mubr.f32.gmra.mrb[0].mxu0 %v1461
        %v1660 = vpop.f32.mrb[0].mxu0
        %v1661 = vadd.f32 %v1340, %v1660
        %v1662 = vpop.f32.mrb[0].mxu0
        %1663 = vmatprep.mubr.f32.mxu0 0.0
        %1664 = vmatmul.mubr.f32.gmra.mrb[0].mxu0 %v1464
        %v1665 = vpop.f32.mrb[0].mxu0
        %v1666 = vadd.f32 %v1345, %v1665
        %v1667 = vpop.f32.mrb[0].mxu0
        %1668 = vmatprep.mubr.f32.mxu0 0.0
        %1669 = vmatmul.mubr.f32.gmra.mrb[0].mxu0 %v1467
        %v1670 = vpop.f32.mrb[0].mxu0
        %v1671 = vadd.f32 %v1350, %v1670
        %v1672 = vpop.f32.mrb[0].mxu0
        %1673 = vmatprep.mubr.f32.mxu0 0.0
        %1674 = vmatmul.mubr.f32.gmra.mrb[0].mxu0 %v1470
        %v1675 = vpop.f32.mrb[0].mxu0
        %v1676 = vadd.f32 %v1355, %v1675
        %v1677 = vpop.f32.mrb[0].mxu0
        %1678 = vmatprep.mubr.f32.mxu0 0.0
        %1679 = vmatmul.mubr.f32.gmra.mrb[0].mxu0 %v1473
        %v1680 = vpop.f32.mrb[0].mxu0
        %v1681 = vadd.f32 %v1360, %v1680
        %v1682 = vpop.f32.mrb[0].mxu0
        %1683 = vmatprep.mubr.f32.mxu0 0.0
        %1684 = vmatmul.mubr.f32.gmra.mrb[0].mxu0 %v1476
        %v1685 = vpop.f32.mrb[0].mxu0
        %v1686 = vadd.f32 %v1365, %v1685
        %v1687 = vpop.f32.mrb[0].mxu0
        %1688 = vmatprep.mubr.f32.mxu0 0.0
        %1689 = vmatmul.mubr.f32.gmra.mrb[0].mxu0 %v1479
        %v1690 = vpop.f32.mrb[0].mxu0
        %v1691 = vadd.f32 %v1370, %v1690
        %v1692 = vpop.f32.mrb[0].mxu0
        %1693 = vmatprep.mubr.f32.mxu0 0.0
        %1694 = vmatmul.mubr.f32.gmra.mrb[0].mxu0 %v1482
        %v1695 = vpop.f32.mrb[0].mxu0
        %v1696 = vadd.f32 %v1375, %v1695
        %v1697 = vpop.f32.mrb[0].mxu0
        %1698 = vmatprep.mubr.f32.mxu0 0.0
        %1699 = vmatmul.mubr.f32.gmra.mrb[0].mxu0 %v1485
        %v1700 = vpop.f32.mrb[0].mxu0
        %v1701 = vadd.f32 %v1380, %v1700
        %v1702 = vpop.f32.mrb[0].mxu0
        %1703 = vmatprep.mubr.f32.mxu0 0.0
        %1704 = vmatmul.mubr.f32.gmra.mrb[0].mxu0 %v1488
        %v1705 = vpop.f32.mrb[0].mxu0
        %v1706 = vadd.f32 %v1385, %v1705
        %v1707 = vpop.f32.mrb[0].mxu0
        %1708 = vmatprep.mubr.f32.mxu0 0.0
        %1709 = vmatmul.mubr.f32.gmra.mrb[0].mxu0 %v1491
        %v1710 = vpop.f32.mrb[0].mxu0
        %v1711 = vadd.f32 %v1390, %v1710
        %v1712 = vpop.f32.mrb[0].mxu0
        %1713 = vmatprep.mubr.f32.mxu0 0.0
        %1714 = vmatmul.mubr.f32.gmra.mrb[0].mxu0 %v1494
        %v1715 = vpop.f32.mrb[0].mxu0
        %v1716 = vadd.f32 %v1395, %v1715
        %v1717 = vpop.f32.mrb[0].mxu0
        %1718 = vmatprep.mubr.f32.mxu0 0.0
        %1719 = vmatmul.mubr.f32.gmra.mrb[0].mxu0 %v1497
        %v1720 = vpop.f32.mrb[0].mxu0
        %v1721 = vadd.f32 %v1400, %v1720
        %v1722 = vpop.f32.mrb[0].mxu0
        %1723 = vdwg.mxu0
        %v1724 = vld [vmem:[#allocation2 + $0x9] sm:$0xff]
        %v1725 = vld [vmem:[#allocation2 + $0x11] sm:$0xff]
        %v1726 = vld [vmem:[#allocation2 + $0x29] sm:$0xff]
        %v1727 = vld [vmem:[#allocation2 + $0x31] sm:$0xff]
        %v1728 = vld [vmem:[#allocation2 + $0x49] sm:$0xff]
        %v1729 = vld [vmem:[#allocation2 + $0x51] sm:$0xff]
        %v1730 = vld [vmem:[#allocation2 + $0x69] sm:$0xff]
        %v1731 = vld [vmem:[#allocation2 + $0x71] sm:$0xff]
        %v1732 = vld [vmem:[#allocation2 + $0x89] sm:$0xff]
        %v1733 = vld [vmem:[#allocation2 + $0x91] sm:$0xff]
        %v1734 = vld [vmem:[#allocation2 + $0xa9] sm:$0xff]
        %v1735 = vld [vmem:[#allocation2 + $0xb1] sm:$0xff]
        %v1736 = vld [vmem:[#allocation2 + $0xc9] sm:$0xff]
        %v1737 = vld [vmem:[#allocation2 + $0xd1] sm:$0xff]
        %v1738 = vld [vmem:[#allocation2 + $0xe9] sm:$0xff]
        %v1739 = vld [vmem:[#allocation2 + $0xf1] sm:$0xff]
        %v1740 = vld [vmem:[#allocation2 + $0x109] sm:$0xff]
        %v1741 = vld [vmem:[#allocation2 + $0x111] sm:$0xff]
        %v1742 = vld [vmem:[#allocation2 + $0x129] sm:$0xff]
        %v1743 = vld [vmem:[#allocation2 + $0x131] sm:$0xff]
        %v1744 = vld [vmem:[#allocation2 + $0x149] sm:$0xff]
        %v1745 = vld [vmem:[#allocation2 + $0x151] sm:$0xff]
        %v1746 = vld [vmem:[#allocation2 + $0x169] sm:$0xff]
        %v1747 = vld [vmem:[#allocation2 + $0x171] sm:$0xff]
        %v1748 = vld [vmem:[#allocation2 + $0x189] sm:$0xff]
        %v1749 = vld [vmem:[#allocation2 + $0x191] sm:$0xff]
        %v1750 = vld [vmem:[#allocation2 + $0x1a9] sm:$0xff]
        %v1751 = vld [vmem:[#allocation2 + $0x1b1] sm:$0xff]
        %v1752 = vld [vmem:[#allocation2 + $0x1c9] sm:$0xff]
        %v1753 = vld [vmem:[#allocation2 + $0x1d1] sm:$0xff]
        %v1754 = vld [vmem:[#allocation2 + $0x1e9] sm:$0xff]
        %v1755 = vld [vmem:[#allocation2 + $0x1f1] sm:$0xff]
        %v1756 = vld [vmem:[%s5 + $0x80] sm:$0xff]
        %v1757 = vld [vmem:[%s5 + $0x88] sm:$0xff]
        %v1758 = vld [vmem:[%s5 + $0x90] sm:$0xff]
        %v1759 = vld [vmem:[%s5 + $0x98] sm:$0xff]
        %v1760 = vld [vmem:[%s5 + $0xa0] sm:$0xff]
        %v1761 = vld [vmem:[%s5 + $0xa8] sm:$0xff]
        %v1762 = vld [vmem:[%s5 + $0xb0] sm:$0xff]
        %v1763 = vld [vmem:[%s5 + $0xb8] sm:$0xff]
        %v1765 = vsel %vm542, %v1724, 0
        %v1768 = vsel %vm542, %v1725, 0
        %v1771 = vsel %vm542, %v1726, 0
        %v1774 = vsel %vm542, %v1727, 0
        %v1777 = vsel %vm542, %v1728, 0
        %v1780 = vsel %vm542, %v1729, 0
        %v1783 = vsel %vm542, %v1730, 0
        %v1786 = vsel %vm542, %v1731, 0
        %v1789 = vsel %vm542, %v1732, 0
        %v1792 = vsel %vm542, %v1733, 0
        %v1795 = vsel %vm542, %v1734, 0
        %v1798 = vsel %vm542, %v1735, 0
        %v1801 = vsel %vm542, %v1736, 0
        %v1804 = vsel %vm542, %v1737, 0
        %v1807 = vsel %vm542, %v1738, 0
        %v1810 = vsel %vm542, %v1739, 0
        %v1813 = vsel %vm542, %v1740, 0
        %v1816 = vsel %vm542, %v1741, 0
        %v1819 = vsel %vm542, %v1742, 0
        %v1822 = vsel %vm542, %v1743, 0
        %v1825 = vsel %vm542, %v1744, 0
        %v1828 = vsel %vm542, %v1745, 0
        %v1831 = vsel %vm542, %v1746, 0
        %v1834 = vsel %vm542, %v1747, 0
        %v1837 = vsel %vm542, %v1748, 0
        %v1840 = vsel %vm542, %v1749, 0
        %v1843 = vsel %vm542, %v1750, 0
        %v1846 = vsel %vm542, %v1751, 0
        %v1849 = vsel %vm542, %v1752, 0
        %v1852 = vsel %vm542, %v1753, 0
        %v1855 = vsel %vm542, %v1754, 0
        %v1858 = vsel %vm542, %v1755, 0
        %1860 = vmatprep.subr.mxu0 0.0
        %1861 = vmatpush1.msra.mxu0 %v1756
        %1862 = vmatprep.subr.mxu0 0.0
        %1863 = vmatpush1.msra.mxu0 %v1757
        %1864 = vmatprep.subr.mxu0 0.0
        %1865 = vmatpush1.msra.mxu0 %v1758
        %1866 = vmatprep.subr.mxu0 0.0
        %1867 = vmatpush1.msra.mxu0 %v1759
        %1868 = vmatprep.subr.mxu0 0.0
        %1869 = vmatpush1.msra.mxu0 %v1760
        %1870 = vmatprep.subr.mxu0 0.0
        %1871 = vmatpush1.msra.mxu0 %v1761
        %1872 = vmatprep.subr.mxu0 0.0
        %1873 = vmatpush1.msra.mxu0 %v1762
        %1874 = vmatprep.subr.mxu0 0.0
        %1875 = vmatpush1.msra.mxu0 %v1763
        %1876 = vmatprep.subr.mxu0 0.0
        %1877 = vmatpush1.msra.mxu0 0.0
        %1878 = vmatprep.subr.mxu0 0.0
        %1879 = vmatpush1.msra.mxu0 0.0
        %1880 = vmatprep.subr.mxu0 0.0
        %1881 = vmatpush1.msra.mxu0 0.0
        %1882 = vmatprep.subr.mxu0 0.0
        %1883 = vmatpush1.msra.mxu0 0.0
        %1884 = vmatprep.subr.mxu0 0.0
        %1885 = vmatpush1.msra.mxu0 0.0
        %1886 = vmatprep.subr.mxu0 0.0
        %1887 = vmatpush1.msra.mxu0 0.0
        %1888 = vmatprep.subr.mxu0 0.0
        %1889 = vmatpush1.msra.mxu0 0.0
        %1890 = vmatprep.subr.mxu0 0.0
        %1891 = vmatpush1.msra.mxu0 0.0
        %1892 = vmatprep.subr.mxu0 0.0
        %1893 = vmatpush1.msra.mxu0 0.0
        %1894 = vmatprep.subr.mxu0 0.0
        %1895 = vmatpush1.msra.mxu0 0.0
        %1896 = vmatprep.subr.mxu0 0.0
        %1897 = vmatpush1.msra.mxu0 0.0
        %1898 = vmatprep.subr.mxu0 0.0
        %1899 = vmatpush1.msra.mxu0 0.0
        %1900 = vmatprep.subr.mxu0 0.0
        %1901 = vmatpush1.msra.mxu0 0.0
        %1902 = vmatprep.subr.mxu0 0.0
        %1903 = vmatpush1.msra.mxu0 0.0
        %1904 = vmatprep.subr.mxu0 0.0
        %1905 = vmatpush1.msra.mxu0 0.0
        %1906 = vmatprep.subr.mxu0 0.0
        %1907 = vmatpush1.msra.mxu0 0.0
        %1908 = vmatprep.subr.mxu0 0.0
        %1909 = vmatpush1.msra.mxu0 0.0
        %1910 = vmatprep.subr.mxu0 0.0
        %1911 = vmatpush1.msra.mxu0 0.0
        %1912 = vmatprep.subr.mxu0 0.0
        %1913 = vmatpush1.msra.mxu0 0.0
        %1914 = vmatprep.subr.mxu0 0.0
        %1915 = vmatpush1.msra.mxu0 0.0
        %1916 = vmatprep.subr.mxu0 0.0
        %1917 = vmatpush1.msra.mxu0 0.0
        %1918 = vmatprep.subr.mxu0 0.0
        %1919 = vmatpush1.msra.mxu0 0.0
        %1920 = vmatprep.subr.mxu0 0.0
        %1921 = vmatpush1.msra.mxu0 0.0
        %1922 = vmatprep.subr.mxu0 0.0
        %1923 = vmatpush1.msra.mxu0 0.0
        %1924 = vmatprep.mubr.f32.mxu0 0.0
        %1925 = vmatmul.mubr.f32.gmra.mrb[0].mxu0 %v1765
        %v1926 = vpop.f32.mrb[0].mxu0
        %v1927 = vadd.f32 0.0, %v1926
        %v1928 = vpop.f32.mrb[0].mxu0
        %1929 = vmatprep.mubr.f32.mxu0 0.0
        %1930 = vmatmul.mubr.f32.gmra.mrb[0].mxu0 %v1768
        %v1931 = vpop.f32.mrb[0].mxu0
        %v1932 = vadd.f32 0.0, %v1931
        %v1933 = vpop.f32.mrb[0].mxu0
        %1934 = vmatprep.mubr.f32.mxu0 0.0
        %1935 = vmatmul.mubr.f32.gmra.mrb[0].mxu0 %v1771
        %v1936 = vpop.f32.mrb[0].mxu0
        %v1937 = vadd.f32 0.0, %v1936
        %v1938 = vpop.f32.mrb[0].mxu0
        %1939 = vmatprep.mubr.f32.mxu0 0.0
        %1940 = vmatmul.mubr.f32.gmra.mrb[0].mxu0 %v1774
        %v1941 = vpop.f32.mrb[0].mxu0
        %v1942 = vadd.f32 0.0, %v1941
        %v1943 = vpop.f32.mrb[0].mxu0
        %1944 = vmatprep.mubr.f32.mxu0 0.0
        %1945 = vmatmul.mubr.f32.gmra.mrb[0].mxu0 %v1777
        %v1946 = vpop.f32.mrb[0].mxu0
        %v1947 = vadd.f32 0.0, %v1946
        %v1948 = vpop.f32.mrb[0].mxu0
        %1949 = vmatprep.mubr.f32.mxu0 0.0
        %1950 = vmatmul.mubr.f32.gmra.mrb[0].mxu0 %v1780
        %v1951 = vpop.f32.mrb[0].mxu0
        %v1952 = vadd.f32 0.0, %v1951
        %v1953 = vpop.f32.mrb[0].mxu0
        %1954 = vmatprep.mubr.f32.mxu0 0.0
        %1955 = vmatmul.mubr.f32.gmra.mrb[0].mxu0 %v1783
        %v1956 = vpop.f32.mrb[0].mxu0
        %v1957 = vadd.f32 0.0, %v1956
        %v1958 = vpop.f32.mrb[0].mxu0
        %1959 = vmatprep.mubr.f32.mxu0 0.0
        %1960 = vmatmul.mubr.f32.gmra.mrb[0].mxu0 %v1786
        %v1961 = vpop.f32.mrb[0].mxu0
        %v1962 = vadd.f32 0.0, %v1961
        %v1963 = vpop.f32.mrb[0].mxu0
        %1964 = vmatprep.mubr.f32.mxu0 0.0
        %1965 = vmatmul.mubr.f32.gmra.mrb[0].mxu0 %v1789
        %v1966 = vpop.f32.mrb[0].mxu0
        %v1967 = vadd.f32 0.0, %v1966
        %v1968 = vpop.f32.mrb[0].mxu0
        %1969 = vmatprep.mubr.f32.mxu0 0.0
        %1970 = vmatmul.mubr.f32.gmra.mrb[0].mxu0 %v1792
        %v1971 = vpop.f32.mrb[0].mxu0
        %v1972 = vadd.f32 0.0, %v1971
        %v1973 = vpop.f32.mrb[0].mxu0
        %1974 = vmatprep.mubr.f32.mxu0 0.0
        %1975 = vmatmul.mubr.f32.gmra.mrb[0].mxu0 %v1795
        %v1976 = vpop.f32.mrb[0].mxu0
        %v1977 = vadd.f32 0.0, %v1976
        %v1978 = vpop.f32.mrb[0].mxu0
        %1979 = vmatprep.mubr.f32.mxu0 0.0
        %1980 = vmatmul.mubr.f32.gmra.mrb[0].mxu0 %v1798
        %v1981 = vpop.f32.mrb[0].mxu0
        %v1982 = vadd.f32 0.0, %v1981
        %v1983 = vpop.f32.mrb[0].mxu0
        %1984 = vmatprep.mubr.f32.mxu0 0.0
        %1985 = vmatmul.mubr.f32.gmra.mrb[0].mxu0 %v1801
        %v1986 = vpop.f32.mrb[0].mxu0
        %v1987 = vadd.f32 0.0, %v1986
        %v1988 = vpop.f32.mrb[0].mxu0
        %1989 = vmatprep.mubr.f32.mxu0 0.0
        %1990 = vmatmul.mubr.f32.gmra.mrb[0].mxu0 %v1804
        %v1991 = vpop.f32.mrb[0].mxu0
        %v1992 = vadd.f32 0.0, %v1991
        %v1993 = vpop.f32.mrb[0].mxu0
        %1994 = vmatprep.mubr.f32.mxu0 0.0
        %1995 = vmatmul.mubr.f32.gmra.mrb[0].mxu0 %v1807
        %v1996 = vpop.f32.mrb[0].mxu0
        %v1997 = vadd.f32 0.0, %v1996
        %v1998 = vpop.f32.mrb[0].mxu0
        %1999 = vmatprep.mubr.f32.mxu0 0.0
        %2000 = vmatmul.mubr.f32.gmra.mrb[0].mxu0 %v1810
        %v2001 = vpop.f32.mrb[0].mxu0
        %v2002 = vadd.f32 0.0, %v2001
        %v2003 = vpop.f32.mrb[0].mxu0
        %2004 = vmatprep.mubr.f32.mxu0 0.0
        %2005 = vmatmul.mubr.f32.gmra.mrb[0].mxu0 %v1813
        %v2006 = vpop.f32.mrb[0].mxu0
        %v2007 = vadd.f32 0.0, %v2006
        %v2008 = vpop.f32.mrb[0].mxu0
        %2009 = vmatprep.mubr.f32.mxu0 0.0
        %2010 = vmatmul.mubr.f32.gmra.mrb[0].mxu0 %v1816
        %v2011 = vpop.f32.mrb[0].mxu0
        %v2012 = vadd.f32 0.0, %v2011
        %v2013 = vpop.f32.mrb[0].mxu0
        %2014 = vmatprep.mubr.f32.mxu0 0.0
        %2015 = vmatmul.mubr.f32.gmra.mrb[0].mxu0 %v1819
        %v2016 = vpop.f32.mrb[0].mxu0
        %v2017 = vadd.f32 0.0, %v2016
        %v2018 = vpop.f32.mrb[0].mxu0
        %2019 = vmatprep.mubr.f32.mxu0 0.0
        %2020 = vmatmul.mubr.f32.gmra.mrb[0].mxu0 %v1822
        %v2021 = vpop.f32.mrb[0].mxu0
        %v2022 = vadd.f32 0.0, %v2021
        %v2023 = vpop.f32.mrb[0].mxu0
        %2024 = vmatprep.mubr.f32.mxu0 0.0
        %2025 = vmatmul.mubr.f32.gmra.mrb[0].mxu0 %v1825
        %v2026 = vpop.f32.mrb[0].mxu0
        %v2027 = vadd.f32 0.0, %v2026
        %v2028 = vpop.f32.mrb[0].mxu0
        %2029 = vmatprep.mubr.f32.mxu0 0.0
        %2030 = vmatmul.mubr.f32.gmra.mrb[0].mxu0 %v1828
        %v2031 = vpop.f32.mrb[0].mxu0
        %v2032 = vadd.f32 0.0, %v2031
        %v2033 = vpop.f32.mrb[0].mxu0
        %2034 = vmatprep.mubr.f32.mxu0 0.0
        %2035 = vmatmul.mubr.f32.gmra.mrb[0].mxu0 %v1831
        %v2036 = vpop.f32.mrb[0].mxu0
        %v2037 = vadd.f32 0.0, %v2036
        %v2038 = vpop.f32.mrb[0].mxu0
        %2039 = vmatprep.mubr.f32.mxu0 0.0
        %2040 = vmatmul.mubr.f32.gmra.mrb[0].mxu0 %v1834
        %v2041 = vpop.f32.mrb[0].mxu0
        %v2042 = vadd.f32 0.0, %v2041
        %v2043 = vpop.f32.mrb[0].mxu0
        %2044 = vmatprep.mubr.f32.mxu0 0.0
        %2045 = vmatmul.mubr.f32.gmra.mrb[0].mxu0 %v1837
        %v2046 = vpop.f32.mrb[0].mxu0
        %v2047 = vadd.f32 0.0, %v2046
        %v2048 = vpop.f32.mrb[0].mxu0
        %2049 = vmatprep.mubr.f32.mxu0 0.0
        %2050 = vmatmul.mubr.f32.gmra.mrb[0].mxu0 %v1840
        %v2051 = vpop.f32.mrb[0].mxu0
        %v2052 = vadd.f32 0.0, %v2051
        %v2053 = vpop.f32.mrb[0].mxu0
        %2054 = vmatprep.mubr.f32.mxu0 0.0
        %2055 = vmatmul.mubr.f32.gmra.mrb[0].mxu0 %v1843
        %v2056 = vpop.f32.mrb[0].mxu0
        %v2057 = vadd.f32 0.0, %v2056
        %v2058 = vpop.f32.mrb[0].mxu0
        %2059 = vmatprep.mubr.f32.mxu0 0.0
        %2060 = vmatmul.mubr.f32.gmra.mrb[0].mxu0 %v1846
        %v2061 = vpop.f32.mrb[0].mxu0
        %v2062 = vadd.f32 0.0, %v2061
        %v2063 = vpop.f32.mrb[0].mxu0
        %2064 = vmatprep.mubr.f32.mxu0 0.0
        %2065 = vmatmul.mubr.f32.gmra.mrb[0].mxu0 %v1849
        %v2066 = vpop.f32.mrb[0].mxu0
        %v2067 = vadd.f32 0.0, %v2066
        %v2068 = vpop.f32.mrb[0].mxu0
        %2069 = vmatprep.mubr.f32.mxu0 0.0
        %2070 = vmatmul.mubr.f32.gmra.mrb[0].mxu0 %v1852
        %v2071 = vpop.f32.mrb[0].mxu0
        %v2072 = vadd.f32 0.0, %v2071
        %v2073 = vpop.f32.mrb[0].mxu0
        %2074 = vmatprep.mubr.f32.mxu0 0.0
        %2075 = vmatmul.mubr.f32.gmra.mrb[0].mxu0 %v1855
        %v2076 = vpop.f32.mrb[0].mxu0
        %v2077 = vadd.f32 0.0, %v2076
        %v2078 = vpop.f32.mrb[0].mxu0
        %2079 = vmatprep.mubr.f32.mxu0 0.0
        %2080 = vmatmul.mubr.f32.gmra.mrb[0].mxu0 %v1858
        %v2081 = vpop.f32.mrb[0].mxu0
        %v2082 = vadd.f32 0.0, %v2081
        %v2083 = vpop.f32.mrb[0].mxu0
        %2084 = vdwg.mxu0
        %v2085 = vadd.f32 %v1566, %v1927
        %v2086 = vadd.f32 %v1571, %v1932
        %v2087 = vadd.f32 %v1576, %v1937
        %v2088 = vadd.f32 %v1581, %v1942
        %v2089 = vadd.f32 %v1586, %v1947
        %v2090 = vadd.f32 %v1591, %v1952
        %v2091 = vadd.f32 %v1596, %v1957
        %v2092 = vadd.f32 %v1601, %v1962
        %v2093 = vadd.f32 %v1606, %v1967
        %v2094 = vadd.f32 %v1611, %v1972
        %v2095 = vadd.f32 %v1616, %v1977
        %v2096 = vadd.f32 %v1621, %v1982
        %v2097 = vadd.f32 %v1626, %v1987
        %v2098 = vadd.f32 %v1631, %v1992
        %v2099 = vadd.f32 %v1636, %v1997
        %v2100 = vadd.f32 %v1641, %v2002
        %v2101 = vadd.f32 %v1646, %v2007
        %v2102 = vadd.f32 %v1651, %v2012
        %v2103 = vadd.f32 %v1656, %v2017
        %v2104 = vadd.f32 %v1661, %v2022
        %v2105 = vadd.f32 %v1666, %v2027
        %v2106 = vadd.f32 %v1671, %v2032
        %v2107 = vadd.f32 %v1676, %v2037
        %v2108 = vadd.f32 %v1681, %v2042
        %v2109 = vadd.f32 %v1686, %v2047
        %v2110 = vadd.f32 %v1691, %v2052
        %v2111 = vadd.f32 %v1696, %v2057
        %v2112 = vadd.f32 %v1701, %v2062
        %v2113 = vadd.f32 %v1706, %v2067
        %v2114 = vadd.f32 %v1711, %v2072
        %v2115 = vadd.f32 %v1716, %v2077
        %v2116 = vadd.f32 %v1721, %v2082
        %v2117 = vld [vmem:[%s969 + $0x7] sm:$0xff]
        %v2118 = vld [vmem:[%s969 + $0xf] sm:$0xff]
        %v2119 = vld [vmem:[%s969 + $0x27] sm:$0xff]
        %v2120 = vld [vmem:[%s969 + $0x2f] sm:$0xff]
        %v2121 = vld [vmem:[%s969 + $0x47] sm:$0xff]
        %v2122 = vld [vmem:[%s969 + $0x4f] sm:$0xff]
        %v2123 = vld [vmem:[%s969 + $0x67] sm:$0xff]
        %v2124 = vld [vmem:[%s969 + $0x6f] sm:$0xff]
        %v2125 = vld [vmem:[%s969 + $0x87] sm:$0xff]
        %v2126 = vld [vmem:[%s969 + $0x8f] sm:$0xff]
        %v2127 = vld [vmem:[%s969 + $0xa7] sm:$0xff]
        %v2128 = vld [vmem:[%s969 + $0xaf] sm:$0xff]
        %v2129 = vld [vmem:[%s969 + $0xc7] sm:$0xff]
        %v2130 = vld [vmem:[%s969 + $0xcf] sm:$0xff]
        %v2131 = vld [vmem:[%s969 + $0xe7] sm:$0xff]
        %v2132 = vld [vmem:[%s969 + $0xef] sm:$0xff]
        %v2133 = vld [vmem:[%s969 + $0x107] sm:$0xff]
        %v2134 = vld [vmem:[%s969 + $0x10f] sm:$0xff]
        %v2135 = vld [vmem:[%s969 + $0x127] sm:$0xff]
        %v2136 = vld [vmem:[%s969 + $0x12f] sm:$0xff]
        %v2137 = vld [vmem:[%s969 + $0x147] sm:$0xff]
        %v2138 = vld [vmem:[%s969 + $0x14f] sm:$0xff]
        %v2139 = vld [vmem:[%s969 + $0x167] sm:$0xff]
        %v2140 = vld [vmem:[%s969 + $0x16f] sm:$0xff]
        %v2141 = vld [vmem:[%s969 + $0x187] sm:$0xff]
        %v2142 = vld [vmem:[%s969 + $0x18f] sm:$0xff]
        %v2143 = vld [vmem:[%s969 + $0x1a7] sm:$0xff]
        %v2144 = vld [vmem:[%s969 + $0x1af] sm:$0xff]
        %v2145 = vld [vmem:[%s969 + $0x1c7] sm:$0xff]
        %v2146 = vld [vmem:[%s969 + $0x1cf] sm:$0xff]
        %v2147 = vld [vmem:[%s969 + $0x1e7] sm:$0xff]
        %v2148 = vld [vmem:[%s969 + $0x1ef] sm:$0xff]
        %v2149 = vld [vmem:[%s5 + $0xc0] sm:$0xff]
        %v2150 = vld [vmem:[%s5 + $0xc8] sm:$0xff]
        %v2151 = vld [vmem:[%s5 + $0xd0] sm:$0xff]
        %v2152 = vld [vmem:[%s5 + $0xd8] sm:$0xff]
        %v2153 = vld [vmem:[%s5 + $0xe0] sm:$0xff]
        %v2154 = vld [vmem:[%s5 + $0xe8] sm:$0xff]
        %v2155 = vld [vmem:[%s5 + $0xf0] sm:$0xff]
        %v2156 = vld [vmem:[%s5 + $0xf8] sm:$0xff]
        %v2158 = vsel %vm542, %v2117, 0
        %v2161 = vsel %vm542, %v2118, 0
        %v2164 = vsel %vm542, %v2119, 0
        %v2167 = vsel %vm542, %v2120, 0
        %v2170 = vsel %vm542, %v2121, 0
        %v2173 = vsel %vm542, %v2122, 0
        %v2176 = vsel %vm542, %v2123, 0
        %v2179 = vsel %vm542, %v2124, 0
        %v2182 = vsel %vm542, %v2125, 0
        %v2185 = vsel %vm542, %v2126, 0
        %v2188 = vsel %vm542, %v2127, 0
        %v2191 = vsel %vm542, %v2128, 0
        %v2194 = vsel %vm542, %v2129, 0
        %v2197 = vsel %vm542, %v2130, 0
        %v2200 = vsel %vm542, %v2131, 0
        %v2203 = vsel %vm542, %v2132, 0
        %v2206 = vsel %vm542, %v2133, 0
        %v2209 = vsel %vm542, %v2134, 0
        %v2212 = vsel %vm542, %v2135, 0
        %v2215 = vsel %vm542, %v2136, 0
        %v2218 = vsel %vm542, %v2137, 0
        %v2221 = vsel %vm542, %v2138, 0
        %v2224 = vsel %vm542, %v2139, 0
        %v2227 = vsel %vm542, %v2140, 0
        %v2230 = vsel %vm542, %v2141, 0
        %v2233 = vsel %vm542, %v2142, 0
        %v2236 = vsel %vm542, %v2143, 0
        %v2239 = vsel %vm542, %v2144, 0
        %v2242 = vsel %vm542, %v2145, 0
        %v2245 = vsel %vm542, %v2146, 0
        %v2248 = vsel %vm542, %v2147, 0
        %v2251 = vsel %vm542, %v2148, 0
        %2253 = vmatprep.subr.mxu0 0.0
        %2254 = vmatpush1.msra.mxu0 %v2149
        %2255 = vmatprep.subr.mxu0 0.0
        %2256 = vmatpush1.msra.mxu0 %v2150
        %2257 = vmatprep.subr.mxu0 0.0
        %2258 = vmatpush1.msra.mxu0 %v2151
        %2259 = vmatprep.subr.mxu0 0.0
        %2260 = vmatpush1.msra.mxu0 %v2152
        %2261 = vmatprep.subr.mxu0 0.0
        %2262 = vmatpush1.msra.mxu0 %v2153
        %2263 = vmatprep.subr.mxu0 0.0
        %2264 = vmatpush1.msra.mxu0 %v2154
        %2265 = vmatprep.subr.mxu0 0.0
        %2266 = vmatpush1.msra.mxu0 %v2155
        %2267 = vmatprep.subr.mxu0 0.0
        %2268 = vmatpush1.msra.mxu0 %v2156
        %2269 = vmatprep.subr.mxu0 0.0
        %2270 = vmatpush1.msra.mxu0 0.0
        %2271 = vmatprep.subr.mxu0 0.0
        %2272 = vmatpush1.msra.mxu0 0.0
        %2273 = vmatprep.subr.mxu0 0.0
        %2274 = vmatpush1.msra.mxu0 0.0
        %2275 = vmatprep.subr.mxu0 0.0
        %2276 = vmatpush1.msra.mxu0 0.0
        %2277 = vmatprep.subr.mxu0 0.0
        %2278 = vmatpush1.msra.mxu0 0.0
        %2279 = vmatprep.subr.mxu0 0.0
        %2280 = vmatpush1.msra.mxu0 0.0
        %2281 = vmatprep.subr.mxu0 0.0
        %2282 = vmatpush1.msra.mxu0 0.0
        %2283 = vmatprep.subr.mxu0 0.0
        %2284 = vmatpush1.msra.mxu0 0.0
        %2285 = vmatprep.subr.mxu0 0.0
        %2286 = vmatpush1.msra.mxu0 0.0
        %2287 = vmatprep.subr.mxu0 0.0
        %2288 = vmatpush1.msra.mxu0 0.0
        %2289 = vmatprep.subr.mxu0 0.0
        %2290 = vmatpush1.msra.mxu0 0.0
        %2291 = vmatprep.subr.mxu0 0.0
        %2292 = vmatpush1.msra.mxu0 0.0
        %2293 = vmatprep.subr.mxu0 0.0
        %2294 = vmatpush1.msra.mxu0 0.0
        %2295 = vmatprep.subr.mxu0 0.0
        %2296 = vmatpush1.msra.mxu0 0.0
        %2297 = vmatprep.subr.mxu0 0.0
        %2298 = vmatpush1.msra.mxu0 0.0
        %2299 = vmatprep.subr.mxu0 0.0
        %2300 = vmatpush1.msra.mxu0 0.0
        %2301 = vmatprep.subr.mxu0 0.0
        %2302 = vmatpush1.msra.mxu0 0.0
        %2303 = vmatprep.subr.mxu0 0.0
        %2304 = vmatpush1.msra.mxu0 0.0
        %2305 = vmatprep.subr.mxu0 0.0
        %2306 = vmatpush1.msra.mxu0 0.0
        %2307 = vmatprep.subr.mxu0 0.0
        %2308 = vmatpush1.msra.mxu0 0.0
        %2309 = vmatprep.subr.mxu0 0.0
        %2310 = vmatpush1.msra.mxu0 0.0
        %2311 = vmatprep.subr.mxu0 0.0
        %2312 = vmatpush1.msra.mxu0 0.0
        %2313 = vmatprep.subr.mxu0 0.0
        %2314 = vmatpush1.msra.mxu0 0.0
        %2315 = vmatprep.subr.mxu0 0.0
        %2316 = vmatpush1.msra.mxu0 0.0
        %2317 = vmatprep.mubr.f32.mxu0 0.0
        %2318 = vmatmul.mubr.f32.gmra.mrb[0].mxu0 %v2158
        %v2319 = vpop.f32.mrb[0].mxu0
        %v2320 = vadd.f32 0.0, %v2319
        %v2321 = vpop.f32.mrb[0].mxu0
        %2322 = vmatprep.mubr.f32.mxu0 0.0
        %2323 = vmatmul.mubr.f32.gmra.mrb[0].mxu0 %v2161
        %v2324 = vpop.f32.mrb[0].mxu0
        %v2325 = vadd.f32 0.0, %v2324
        %v2326 = vpop.f32.mrb[0].mxu0
        %2327 = vmatprep.mubr.f32.mxu0 0.0
        %2328 = vmatmul.mubr.f32.gmra.mrb[0].mxu0 %v2164
        %v2329 = vpop.f32.mrb[0].mxu0
        %v2330 = vadd.f32 0.0, %v2329
        %v2331 = vpop.f32.mrb[0].mxu0
        %2332 = vmatprep.mubr.f32.mxu0 0.0
        %2333 = vmatmul.mubr.f32.gmra.mrb[0].mxu0 %v2167
        %v2334 = vpop.f32.mrb[0].mxu0
        %v2335 = vadd.f32 0.0, %v2334
        %v2336 = vpop.f32.mrb[0].mxu0
        %2337 = vmatprep.mubr.f32.mxu0 0.0
        %2338 = vmatmul.mubr.f32.gmra.mrb[0].mxu0 %v2170
        %v2339 = vpop.f32.mrb[0].mxu0
        %v2340 = vadd.f32 0.0, %v2339
        %v2341 = vpop.f32.mrb[0].mxu0
        %2342 = vmatprep.mubr.f32.mxu0 0.0
        %2343 = vmatmul.mubr.f32.gmra.mrb[0].mxu0 %v2173
        %v2344 = vpop.f32.mrb[0].mxu0
        %v2345 = vadd.f32 0.0, %v2344
        %v2346 = vpop.f32.mrb[0].mxu0
        %2347 = vmatprep.mubr.f32.mxu0 0.0
        %2348 = vmatmul.mubr.f32.gmra.mrb[0].mxu0 %v2176
        %v2349 = vpop.f32.mrb[0].mxu0
        %v2350 = vadd.f32 0.0, %v2349
        %v2351 = vpop.f32.mrb[0].mxu0
        %2352 = vmatprep.mubr.f32.mxu0 0.0
        %2353 = vmatmul.mubr.f32.gmra.mrb[0].mxu0 %v2179
        %v2354 = vpop.f32.mrb[0].mxu0
        %v2355 = vadd.f32 0.0, %v2354
        %v2356 = vpop.f32.mrb[0].mxu0
        %2357 = vmatprep.mubr.f32.mxu0 0.0
        %2358 = vmatmul.mubr.f32.gmra.mrb[0].mxu0 %v2182
        %v2359 = vpop.f32.mrb[0].mxu0
        %v2360 = vadd.f32 0.0, %v2359
        %v2361 = vpop.f32.mrb[0].mxu0
        %2362 = vmatprep.mubr.f32.mxu0 0.0
        %2363 = vmatmul.mubr.f32.gmra.mrb[0].mxu0 %v2185
        %v2364 = vpop.f32.mrb[0].mxu0
        %v2365 = vadd.f32 0.0, %v2364
        %v2366 = vpop.f32.mrb[0].mxu0
        %2367 = vmatprep.mubr.f32.mxu0 0.0
        %2368 = vmatmul.mubr.f32.gmra.mrb[0].mxu0 %v2188
        %v2369 = vpop.f32.mrb[0].mxu0
        %v2370 = vadd.f32 0.0, %v2369
        %v2371 = vpop.f32.mrb[0].mxu0
        %2372 = vmatprep.mubr.f32.mxu0 0.0
        %2373 = vmatmul.mubr.f32.gmra.mrb[0].mxu0 %v2191
        %v2374 = vpop.f32.mrb[0].mxu0
        %v2375 = vadd.f32 0.0, %v2374
        %v2376 = vpop.f32.mrb[0].mxu0
        %2377 = vmatprep.mubr.f32.mxu0 0.0
        %2378 = vmatmul.mubr.f32.gmra.mrb[0].mxu0 %v2194
        %v2379 = vpop.f32.mrb[0].mxu0
        %v2380 = vadd.f32 0.0, %v2379
        %v2381 = vpop.f32.mrb[0].mxu0
        %2382 = vmatprep.mubr.f32.mxu0 0.0
        %2383 = vmatmul.mubr.f32.gmra.mrb[0].mxu0 %v2197
        %v2384 = vpop.f32.mrb[0].mxu0
        %v2385 = vadd.f32 0.0, %v2384
        %v2386 = vpop.f32.mrb[0].mxu0
        %2387 = vmatprep.mubr.f32.mxu0 0.0
        %2388 = vmatmul.mubr.f32.gmra.mrb[0].mxu0 %v2200
        %v2389 = vpop.f32.mrb[0].mxu0
        %v2390 = vadd.f32 0.0, %v2389
        %v2391 = vpop.f32.mrb[0].mxu0
        %2392 = vmatprep.mubr.f32.mxu0 0.0
        %2393 = vmatmul.mubr.f32.gmra.mrb[0].mxu0 %v2203
        %v2394 = vpop.f32.mrb[0].mxu0
        %v2395 = vadd.f32 0.0, %v2394
        %v2396 = vpop.f32.mrb[0].mxu0
        %2397 = vmatprep.mubr.f32.mxu0 0.0
        %2398 = vmatmul.mubr.f32.gmra.mrb[0].mxu0 %v2206
        %v2399 = vpop.f32.mrb[0].mxu0
        %v2400 = vadd.f32 0.0, %v2399
        %v2401 = vpop.f32.mrb[0].mxu0
        %2402 = vmatprep.mubr.f32.mxu0 0.0
        %2403 = vmatmul.mubr.f32.gmra.mrb[0].mxu0 %v2209
        %v2404 = vpop.f32.mrb[0].mxu0
        %v2405 = vadd.f32 0.0, %v2404
        %v2406 = vpop.f32.mrb[0].mxu0
        %2407 = vmatprep.mubr.f32.mxu0 0.0
        %2408 = vmatmul.mubr.f32.gmra.mrb[0].mxu0 %v2212
        %v2409 = vpop.f32.mrb[0].mxu0
        %v2410 = vadd.f32 0.0, %v2409
        %v2411 = vpop.f32.mrb[0].mxu0
        %2412 = vmatprep.mubr.f32.mxu0 0.0
        %2413 = vmatmul.mubr.f32.gmra.mrb[0].mxu0 %v2215
        %v2414 = vpop.f32.mrb[0].mxu0
        %v2415 = vadd.f32 0.0, %v2414
        %v2416 = vpop.f32.mrb[0].mxu0
        %2417 = vmatprep.mubr.f32.mxu0 0.0
        %2418 = vmatmul.mubr.f32.gmra.mrb[0].mxu0 %v2218
        %v2419 = vpop.f32.mrb[0].mxu0
        %v2420 = vadd.f32 0.0, %v2419
        %v2421 = vpop.f32.mrb[0].mxu0
        %2422 = vmatprep.mubr.f32.mxu0 0.0
        %2423 = vmatmul.mubr.f32.gmra.mrb[0].mxu0 %v2221
        %v2424 = vpop.f32.mrb[0].mxu0
        %v2425 = vadd.f32 0.0, %v2424
        %v2426 = vpop.f32.mrb[0].mxu0
        %2427 = vmatprep.mubr.f32.mxu0 0.0
        %2428 = vmatmul.mubr.f32.gmra.mrb[0].mxu0 %v2224
        %v2429 = vpop.f32.mrb[0].mxu0
        %v2430 = vadd.f32 0.0, %v2429
        %v2431 = vpop.f32.mrb[0].mxu0
        %2432 = vmatprep.mubr.f32.mxu0 0.0
        %2433 = vmatmul.mubr.f32.gmra.mrb[0].mxu0 %v2227
        %v2434 = vpop.f32.mrb[0].mxu0
        %v2435 = vadd.f32 0.0, %v2434
        %v2436 = vpop.f32.mrb[0].mxu0
        %2437 = vmatprep.mubr.f32.mxu0 0.0
        %2438 = vmatmul.mubr.f32.gmra.mrb[0].mxu0 %v2230
        %v2439 = vpop.f32.mrb[0].mxu0
        %v2440 = vadd.f32 0.0, %v2439
        %v2441 = vpop.f32.mrb[0].mxu0
        %2442 = vmatprep.mubr.f32.mxu0 0.0
        %2443 = vmatmul.mubr.f32.gmra.mrb[0].mxu0 %v2233
        %v2444 = vpop.f32.mrb[0].mxu0
        %v2445 = vadd.f32 0.0, %v2444
        %v2446 = vpop.f32.mrb[0].mxu0
        %2447 = vmatprep.mubr.f32.mxu0 0.0
        %2448 = vmatmul.mubr.f32.gmra.mrb[0].mxu0 %v2236
        %v2449 = vpop.f32.mrb[0].mxu0
        %v2450 = vadd.f32 0.0, %v2449
        %v2451 = vpop.f32.mrb[0].mxu0
        %2452 = vmatprep.mubr.f32.mxu0 0.0
        %2453 = vmatmul.mubr.f32.gmra.mrb[0].mxu0 %v2239
        %v2454 = vpop.f32.mrb[0].mxu0
        %v2455 = vadd.f32 0.0, %v2454
        %v2456 = vpop.f32.mrb[0].mxu0
        %2457 = vmatprep.mubr.f32.mxu0 0.0
        %2458 = vmatmul.mubr.f32.gmra.mrb[0].mxu0 %v2242
        %v2459 = vpop.f32.mrb[0].mxu0
        %v2460 = vadd.f32 0.0, %v2459
        %v2461 = vpop.f32.mrb[0].mxu0
        %2462 = vmatprep.mubr.f32.mxu0 0.0
        %2463 = vmatmul.mubr.f32.gmra.mrb[0].mxu0 %v2245
        %v2464 = vpop.f32.mrb[0].mxu0
        %v2465 = vadd.f32 0.0, %v2464
        %v2466 = vpop.f32.mrb[0].mxu0
        %2467 = vmatprep.mubr.f32.mxu0 0.0
        %2468 = vmatmul.mubr.f32.gmra.mrb[0].mxu0 %v2248
        %v2469 = vpop.f32.mrb[0].mxu0
        %v2470 = vadd.f32 0.0, %v2469
        %v2471 = vpop.f32.mrb[0].mxu0
        %2472 = vmatprep.mubr.f32.mxu0 0.0
        %2473 = vmatmul.mubr.f32.gmra.mrb[0].mxu0 %v2251
        %v2474 = vpop.f32.mrb[0].mxu0
        %v2475 = vadd.f32 0.0, %v2474
        %v2476 = vpop.f32.mrb[0].mxu0
        %2477 = vdwg.mxu0
        %v2478 = vadd.f32 %v2085, %v2320
        %v2479 = vadd.f32 %v2086, %v2325
        %v2480 = vadd.f32 %v2087, %v2330
        %v2481 = vadd.f32 %v2088, %v2335
        %v2482 = vadd.f32 %v2089, %v2340
        %v2483 = vadd.f32 %v2090, %v2345
        %v2484 = vadd.f32 %v2091, %v2350
        %v2485 = vadd.f32 %v2092, %v2355
        %v2486 = vadd.f32 %v2093, %v2360
        %v2487 = vadd.f32 %v2094, %v2365
        %v2488 = vadd.f32 %v2095, %v2370
        %v2489 = vadd.f32 %v2096, %v2375
        %v2490 = vadd.f32 %v2097, %v2380
        %v2491 = vadd.f32 %v2098, %v2385
        %v2492 = vadd.f32 %v2099, %v2390
        %v2493 = vadd.f32 %v2100, %v2395
        %v2494 = vadd.f32 %v2101, %v2400
        %v2495 = vadd.f32 %v2102, %v2405
        %v2496 = vadd.f32 %v2103, %v2410
        %v2497 = vadd.f32 %v2104, %v2415
        %v2498 = vadd.f32 %v2105, %v2420
        %v2499 = vadd.f32 %v2106, %v2425
        %v2500 = vadd.f32 %v2107, %v2430
        %v2501 = vadd.f32 %v2108, %v2435
        %v2502 = vadd.f32 %v2109, %v2440
        %v2503 = vadd.f32 %v2110, %v2445
        %v2504 = vadd.f32 %v2111, %v2450
        %v2505 = vadd.f32 %v2112, %v2455
        %v2506 = vadd.f32 %v2113, %v2460
        %v2507 = vadd.f32 %v2114, %v2465
        %v2508 = vadd.f32 %v2115, %v2470
        %v2509 = vadd.f32 %v2116, %v2475
        %v2510 = vld [vmem:[%s969 + $0x8] sm:$0xff]
        %v2511 = vld [vmem:[%s969 + $0x10] sm:$0xff]
        %v2512 = vld [vmem:[%s969 + $0x28] sm:$0xff]
        %v2513 = vld [vmem:[%s969 + $0x30] sm:$0xff]
        %v2514 = vld [vmem:[%s969 + $0x48] sm:$0xff]
        %v2515 = vld [vmem:[%s969 + $0x50] sm:$0xff]
        %v2516 = vld [vmem:[%s969 + $0x68] sm:$0xff]
        %v2517 = vld [vmem:[%s969 + $0x70] sm:$0xff]
        %v2518 = vld [vmem:[%s969 + $0x88] sm:$0xff]
        %v2519 = vld [vmem:[%s969 + $0x90] sm:$0xff]
        %v2520 = vld [vmem:[%s969 + $0xa8] sm:$0xff]
        %v2521 = vld [vmem:[%s969 + $0xb0] sm:$0xff]
        %v2522 = vld [vmem:[%s969 + $0xc8] sm:$0xff]
        %v2523 = vld [vmem:[%s969 + $0xd0] sm:$0xff]
        %v2524 = vld [vmem:[%s969 + $0xe8] sm:$0xff]
        %v2525 = vld [vmem:[%s969 + $0xf0] sm:$0xff]
        %v2526 = vld [vmem:[%s969 + $0x108] sm:$0xff]
        %v2527 = vld [vmem:[%s969 + $0x110] sm:$0xff]
        %v2528 = vld [vmem:[%s969 + $0x128] sm:$0xff]
        %v2529 = vld [vmem:[%s969 + $0x130] sm:$0xff]
        %v2530 = vld [vmem:[%s969 + $0x148] sm:$0xff]
        %v2531 = vld [vmem:[%s969 + $0x150] sm:$0xff]
        %v2532 = vld [vmem:[%s969 + $0x168] sm:$0xff]
        %v2533 = vld [vmem:[%s969 + $0x170] sm:$0xff]
        %v2534 = vld [vmem:[%s969 + $0x188] sm:$0xff]
        %v2535 = vld [vmem:[%s969 + $0x190] sm:$0xff]
        %v2536 = vld [vmem:[%s969 + $0x1a8] sm:$0xff]
        %v2537 = vld [vmem:[%s969 + $0x1b0] sm:$0xff]
        %v2538 = vld [vmem:[%s969 + $0x1c8] sm:$0xff]
        %v2539 = vld [vmem:[%s969 + $0x1d0] sm:$0xff]
        %v2540 = vld [vmem:[%s969 + $0x1e8] sm:$0xff]
        %v2541 = vld [vmem:[%s969 + $0x1f0] sm:$0xff]
        %v2542 = vld [vmem:[%s5 + $0x100] sm:$0xff]
        %v2543 = vld [vmem:[%s5 + $0x108] sm:$0xff]
        %v2544 = vld [vmem:[%s5 + $0x110] sm:$0xff]
        %v2545 = vld [vmem:[%s5 + $0x118] sm:$0xff]
        %v2546 = vld [vmem:[%s5 + $0x120] sm:$0xff]
        %v2547 = vld [vmem:[%s5 + $0x128] sm:$0xff]
        %v2548 = vld [vmem:[%s5 + $0x130] sm:$0xff]
        %v2549 = vld [vmem:[%s5 + $0x138] sm:$0xff]
        %v2551 = vsel %vm542, %v2510, 0
        %v2554 = vsel %vm542, %v2511, 0
        %v2557 = vsel %vm542, %v2512, 0
        %v2560 = vsel %vm542, %v2513, 0
        %v2563 = vsel %vm542, %v2514, 0
        %v2566 = vsel %vm542, %v2515, 0
        %v2569 = vsel %vm542, %v2516, 0
        %v2572 = vsel %vm542, %v2517, 0
        %v2575 = vsel %vm542, %v2518, 0
        %v2578 = vsel %vm542, %v2519, 0
        %v2581 = vsel %vm542, %v2520, 0
        %v2584 = vsel %vm542, %v2521, 0
        %v2587 = vsel %vm542, %v2522, 0
        %v2590 = vsel %vm542, %v2523, 0
        %v2593 = vsel %vm542, %v2524, 0
        %v2596 = vsel %vm542, %v2525, 0
        %v2599 = vsel %vm542, %v2526, 0
        %v2602 = vsel %vm542, %v2527, 0
        %v2605 = vsel %vm542, %v2528, 0
        %v2608 = vsel %vm542, %v2529, 0
        %v2611 = vsel %vm542, %v2530, 0
        %v2614 = vsel %vm542, %v2531, 0
        %v2617 = vsel %vm542, %v2532, 0
        %v2620 = vsel %vm542, %v2533, 0
        %v2623 = vsel %vm542, %v2534, 0
        %v2626 = vsel %vm542, %v2535, 0
        %v2629 = vsel %vm542, %v2536, 0
        %v2632 = vsel %vm542, %v2537, 0
        %v2635 = vsel %vm542, %v2538, 0
        %v2638 = vsel %vm542, %v2539, 0
        %v2641 = vsel %vm542, %v2540, 0
        %v2644 = vsel %vm542, %v2541, 0
        %2646 = vmatprep.subr.mxu0 0.0
        %2647 = vmatpush1.msra.mxu0 %v2542
        %2648 = vmatprep.subr.mxu0 0.0
        %2649 = vmatpush1.msra.mxu0 %v2543
        %2650 = vmatprep.subr.mxu0 0.0
        %2651 = vmatpush1.msra.mxu0 %v2544
        %2652 = vmatprep.subr.mxu0 0.0
        %2653 = vmatpush1.msra.mxu0 %v2545
        %2654 = vmatprep.subr.mxu0 0.0
        %2655 = vmatpush1.msra.mxu0 %v2546
        %2656 = vmatprep.subr.mxu0 0.0
        %2657 = vmatpush1.msra.mxu0 %v2547
        %2658 = vmatprep.subr.mxu0 0.0
        %2659 = vmatpush1.msra.mxu0 %v2548
        %2660 = vmatprep.subr.mxu0 0.0
        %2661 = vmatpush1.msra.mxu0 %v2549
        %2662 = vmatprep.subr.mxu0 0.0
        %2663 = vmatpush1.msra.mxu0 0.0
        %2664 = vmatprep.subr.mxu0 0.0
        %2665 = vmatpush1.msra.mxu0 0.0
        %2666 = vmatprep.subr.mxu0 0.0
        %2667 = vmatpush1.msra.mxu0 0.0
        %2668 = vmatprep.subr.mxu0 0.0
        %2669 = vmatpush1.msra.mxu0 0.0
        %2670 = vmatprep.subr.mxu0 0.0
        %2671 = vmatpush1.msra.mxu0 0.0
        %2672 = vmatprep.subr.mxu0 0.0
        %2673 = vmatpush1.msra.mxu0 0.0
        %2674 = vmatprep.subr.mxu0 0.0
        %2675 = vmatpush1.msra.mxu0 0.0
        %2676 = vmatprep.subr.mxu0 0.0
        %2677 = vmatpush1.msra.mxu0 0.0
        %2678 = vmatprep.subr.mxu0 0.0
        %2679 = vmatpush1.msra.mxu0 0.0
        %2680 = vmatprep.subr.mxu0 0.0
        %2681 = vmatpush1.msra.mxu0 0.0
        %2682 = vmatprep.subr.mxu0 0.0
        %2683 = vmatpush1.msra.mxu0 0.0
        %2684 = vmatprep.subr.mxu0 0.0
        %2685 = vmatpush1.msra.mxu0 0.0
        %2686 = vmatprep.subr.mxu0 0.0
        %2687 = vmatpush1.msra.mxu0 0.0
        %2688 = vmatprep.subr.mxu0 0.0
        %2689 = vmatpush1.msra.mxu0 0.0
        %2690 = vmatprep.subr.mxu0 0.0
        %2691 = vmatpush1.msra.mxu0 0.0
        %2692 = vmatprep.subr.mxu0 0.0
        %2693 = vmatpush1.msra.mxu0 0.0
        %2694 = vmatprep.subr.mxu0 0.0
        %2695 = vmatpush1.msra.mxu0 0.0
        %2696 = vmatprep.subr.mxu0 0.0
        %2697 = vmatpush1.msra.mxu0 0.0
        %2698 = vmatprep.subr.mxu0 0.0
        %2699 = vmatpush1.msra.mxu0 0.0
        %2700 = vmatprep.subr.mxu0 0.0
        %2701 = vmatpush1.msra.mxu0 0.0
        %2702 = vmatprep.subr.mxu0 0.0
        %2703 = vmatpush1.msra.mxu0 0.0
        %2704 = vmatprep.subr.mxu0 0.0
        %2705 = vmatpush1.msra.mxu0 0.0
        %2706 = vmatprep.subr.mxu0 0.0
        %2707 = vmatpush1.msra.mxu0 0.0
        %2708 = vmatprep.subr.mxu0 0.0
        %2709 = vmatpush1.msra.mxu0 0.0
        %2710 = vmatprep.mubr.f32.mxu0 0.0
        %2711 = vmatmul.mubr.f32.gmra.mrb[0].mxu0 %v2551
        %v2712 = vpop.f32.mrb[0].mxu0
        %v2713 = vadd.f32 0.0, %v2712
        %v2714 = vpop.f32.mrb[0].mxu0
        %2715 = vmatprep.mubr.f32.mxu0 0.0
        %2716 = vmatmul.mubr.f32.gmra.mrb[0].mxu0 %v2554
        %v2717 = vpop.f32.mrb[0].mxu0
        %v2718 = vadd.f32 0.0, %v2717
        %v2719 = vpop.f32.mrb[0].mxu0
        %2720 = vmatprep.mubr.f32.mxu0 0.0
        %2721 = vmatmul.mubr.f32.gmra.mrb[0].mxu0 %v2557
        %v2722 = vpop.f32.mrb[0].mxu0
        %v2723 = vadd.f32 0.0, %v2722
        %v2724 = vpop.f32.mrb[0].mxu0
        %2725 = vmatprep.mubr.f32.mxu0 0.0
        %2726 = vmatmul.mubr.f32.gmra.mrb[0].mxu0 %v2560
        %v2727 = vpop.f32.mrb[0].mxu0
        %v2728 = vadd.f32 0.0, %v2727
        %v2729 = vpop.f32.mrb[0].mxu0
        %2730 = vmatprep.mubr.f32.mxu0 0.0
        %2731 = vmatmul.mubr.f32.gmra.mrb[0].mxu0 %v2563
        %v2732 = vpop.f32.mrb[0].mxu0
        %v2733 = vadd.f32 0.0, %v2732
        %v2734 = vpop.f32.mrb[0].mxu0
        %2735 = vmatprep.mubr.f32.mxu0 0.0
        %2736 = vmatmul.mubr.f32.gmra.mrb[0].mxu0 %v2566
        %v2737 = vpop.f32.mrb[0].mxu0
        %v2738 = vadd.f32 0.0, %v2737
        %v2739 = vpop.f32.mrb[0].mxu0
        %2740 = vmatprep.mubr.f32.mxu0 0.0
        %2741 = vmatmul.mubr.f32.gmra.mrb[0].mxu0 %v2569
        %v2742 = vpop.f32.mrb[0].mxu0
        %v2743 = vadd.f32 0.0, %v2742
        %v2744 = vpop.f32.mrb[0].mxu0
        %2745 = vmatprep.mubr.f32.mxu0 0.0
        %2746 = vmatmul.mubr.f32.gmra.mrb[0].mxu0 %v2572
        %v2747 = vpop.f32.mrb[0].mxu0
        %v2748 = vadd.f32 0.0, %v2747
        %v2749 = vpop.f32.mrb[0].mxu0
        %2750 = vmatprep.mubr.f32.mxu0 0.0
        %2751 = vmatmul.mubr.f32.gmra.mrb[0].mxu0 %v2575
        %v2752 = vpop.f32.mrb[0].mxu0
        %v2753 = vadd.f32 0.0, %v2752
        %v2754 = vpop.f32.mrb[0].mxu0
        %2755 = vmatprep.mubr.f32.mxu0 0.0
        %2756 = vmatmul.mubr.f32.gmra.mrb[0].mxu0 %v2578
        %v2757 = vpop.f32.mrb[0].mxu0
        %v2758 = vadd.f32 0.0, %v2757
        %v2759 = vpop.f32.mrb[0].mxu0
        %2760 = vmatprep.mubr.f32.mxu0 0.0
        %2761 = vmatmul.mubr.f32.gmra.mrb[0].mxu0 %v2581
        %v2762 = vpop.f32.mrb[0].mxu0
        %v2763 = vadd.f32 0.0, %v2762
        %v2764 = vpop.f32.mrb[0].mxu0
        %2765 = vmatprep.mubr.f32.mxu0 0.0
        %2766 = vmatmul.mubr.f32.gmra.mrb[0].mxu0 %v2584
        %v2767 = vpop.f32.mrb[0].mxu0
        %v2768 = vadd.f32 0.0, %v2767
        %v2769 = vpop.f32.mrb[0].mxu0
        %2770 = vmatprep.mubr.f32.mxu0 0.0
        %2771 = vmatmul.mubr.f32.gmra.mrb[0].mxu0 %v2587
        %v2772 = vpop.f32.mrb[0].mxu0
        %v2773 = vadd.f32 0.0, %v2772
        %v2774 = vpop.f32.mrb[0].mxu0
        %2775 = vmatprep.mubr.f32.mxu0 0.0
        %2776 = vmatmul.mubr.f32.gmra.mrb[0].mxu0 %v2590
        %v2777 = vpop.f32.mrb[0].mxu0
        %v2778 = vadd.f32 0.0, %v2777
        %v2779 = vpop.f32.mrb[0].mxu0
        %2780 = vmatprep.mubr.f32.mxu0 0.0
        %2781 = vmatmul.mubr.f32.gmra.mrb[0].mxu0 %v2593
        %v2782 = vpop.f32.mrb[0].mxu0
        %v2783 = vadd.f32 0.0, %v2782
        %v2784 = vpop.f32.mrb[0].mxu0
        %2785 = vmatprep.mubr.f32.mxu0 0.0
        %2786 = vmatmul.mubr.f32.gmra.mrb[0].mxu0 %v2596
        %v2787 = vpop.f32.mrb[0].mxu0
        %v2788 = vadd.f32 0.0, %v2787
        %v2789 = vpop.f32.mrb[0].mxu0
        %2790 = vmatprep.mubr.f32.mxu0 0.0
        %2791 = vmatmul.mubr.f32.gmra.mrb[0].mxu0 %v2599
        %v2792 = vpop.f32.mrb[0].mxu0
        %v2793 = vadd.f32 0.0, %v2792
        %v2794 = vpop.f32.mrb[0].mxu0
        %2795 = vmatprep.mubr.f32.mxu0 0.0
        %2796 = vmatmul.mubr.f32.gmra.mrb[0].mxu0 %v2602
        %v2797 = vpop.f32.mrb[0].mxu0
        %v2798 = vadd.f32 0.0, %v2797
        %v2799 = vpop.f32.mrb[0].mxu0
        %2800 = vmatprep.mubr.f32.mxu0 0.0
        %2801 = vmatmul.mubr.f32.gmra.mrb[0].mxu0 %v2605
        %v2802 = vpop.f32.mrb[0].mxu0
        %v2803 = vadd.f32 0.0, %v2802
        %v2804 = vpop.f32.mrb[0].mxu0
        %2805 = vmatprep.mubr.f32.mxu0 0.0
        %2806 = vmatmul.mubr.f32.gmra.mrb[0].mxu0 %v2608
        %v2807 = vpop.f32.mrb[0].mxu0
        %v2808 = vadd.f32 0.0, %v2807
        %v2809 = vpop.f32.mrb[0].mxu0
        %2810 = vmatprep.mubr.f32.mxu0 0.0
        %2811 = vmatmul.mubr.f32.gmra.mrb[0].mxu0 %v2611
        %v2812 = vpop.f32.mrb[0].mxu0
        %v2813 = vadd.f32 0.0, %v2812
        %v2814 = vpop.f32.mrb[0].mxu0
        %2815 = vmatprep.mubr.f32.mxu0 0.0
        %2816 = vmatmul.mubr.f32.gmra.mrb[0].mxu0 %v2614
        %v2817 = vpop.f32.mrb[0].mxu0
        %v2818 = vadd.f32 0.0, %v2817
        %v2819 = vpop.f32.mrb[0].mxu0
        %2820 = vmatprep.mubr.f32.mxu0 0.0
        %2821 = vmatmul.mubr.f32.gmra.mrb[0].mxu0 %v2617
        %v2822 = vpop.f32.mrb[0].mxu0
        %v2823 = vadd.f32 0.0, %v2822
        %v2824 = vpop.f32.mrb[0].mxu0
        %2825 = vmatprep.mubr.f32.mxu0 0.0
        %2826 = vmatmul.mubr.f32.gmra.mrb[0].mxu0 %v2620
        %v2827 = vpop.f32.mrb[0].mxu0
        %v2828 = vadd.f32 0.0, %v2827
        %v2829 = vpop.f32.mrb[0].mxu0
        %2830 = vmatprep.mubr.f32.mxu0 0.0
        %2831 = vmatmul.mubr.f32.gmra.mrb[0].mxu0 %v2623
        %v2832 = vpop.f32.mrb[0].mxu0
        %v2833 = vadd.f32 0.0, %v2832
        %v2834 = vpop.f32.mrb[0].mxu0
        %2835 = vmatprep.mubr.f32.mxu0 0.0
        %2836 = vmatmul.mubr.f32.gmra.mrb[0].mxu0 %v2626
        %v2837 = vpop.f32.mrb[0].mxu0
        %v2838 = vadd.f32 0.0, %v2837
        %v2839 = vpop.f32.mrb[0].mxu0
        %2840 = vmatprep.mubr.f32.mxu0 0.0
        %2841 = vmatmul.mubr.f32.gmra.mrb[0].mxu0 %v2629
        %v2842 = vpop.f32.mrb[0].mxu0
        %v2843 = vadd.f32 0.0, %v2842
        %v2844 = vpop.f32.mrb[0].mxu0
        %2845 = vmatprep.mubr.f32.mxu0 0.0
        %2846 = vmatmul.mubr.f32.gmra.mrb[0].mxu0 %v2632
        %v2847 = vpop.f32.mrb[0].mxu0
        %v2848 = vadd.f32 0.0, %v2847
        %v2849 = vpop.f32.mrb[0].mxu0
        %2850 = vmatprep.mubr.f32.mxu0 0.0
        %2851 = vmatmul.mubr.f32.gmra.mrb[0].mxu0 %v2635
        %v2852 = vpop.f32.mrb[0].mxu0
        %v2853 = vadd.f32 0.0, %v2852
        %v2854 = vpop.f32.mrb[0].mxu0
        %2855 = vmatprep.mubr.f32.mxu0 0.0
        %2856 = vmatmul.mubr.f32.gmra.mrb[0].mxu0 %v2638
        %v2857 = vpop.f32.mrb[0].mxu0
        %v2858 = vadd.f32 0.0, %v2857
        %v2859 = vpop.f32.mrb[0].mxu0
        %2860 = vmatprep.mubr.f32.mxu0 0.0
        %2861 = vmatmul.mubr.f32.gmra.mrb[0].mxu0 %v2641
        %v2862 = vpop.f32.mrb[0].mxu0
        %v2863 = vadd.f32 0.0, %v2862
        %v2864 = vpop.f32.mrb[0].mxu0
        %2865 = vmatprep.mubr.f32.mxu0 0.0
        %2866 = vmatmul.mubr.f32.gmra.mrb[0].mxu0 %v2644
        %v2867 = vpop.f32.mrb[0].mxu0
        %v2868 = vadd.f32 0.0, %v2867
        %v2869 = vpop.f32.mrb[0].mxu0
        %2870 = vdwg.mxu0
        %v2871 = vadd.f32 %v2478, %v2713
        %v2872 = vadd.f32 %v2479, %v2718
        %v2873 = vadd.f32 %v2480, %v2723
        %v2874 = vadd.f32 %v2481, %v2728
        %v2875 = vadd.f32 %v2482, %v2733
        %v2876 = vadd.f32 %v2483, %v2738
        %v2877 = vadd.f32 %v2484, %v2743
        %v2878 = vadd.f32 %v2485, %v2748
        %v2879 = vadd.f32 %v2486, %v2753
        %v2880 = vadd.f32 %v2487, %v2758
        %v2881 = vadd.f32 %v2488, %v2763
        %v2882 = vadd.f32 %v2489, %v2768
        %v2883 = vadd.f32 %v2490, %v2773
        %v2884 = vadd.f32 %v2491, %v2778
        %v2885 = vadd.f32 %v2492, %v2783
        %v2886 = vadd.f32 %v2493, %v2788
        %v2887 = vadd.f32 %v2494, %v2793
        %v2888 = vadd.f32 %v2495, %v2798
        %v2889 = vadd.f32 %v2496, %v2803
        %v2890 = vadd.f32 %v2497, %v2808
        %v2891 = vadd.f32 %v2498, %v2813
        %v2892 = vadd.f32 %v2499, %v2818
        %v2893 = vadd.f32 %v2500, %v2823
        %v2894 = vadd.f32 %v2501, %v2828
        %v2895 = vadd.f32 %v2502, %v2833
        %v2896 = vadd.f32 %v2503, %v2838
        %v2897 = vadd.f32 %v2504, %v2843
        %v2898 = vadd.f32 %v2505, %v2848
        %v2899 = vadd.f32 %v2506, %v2853
        %v2900 = vadd.f32 %v2507, %v2858
        %v2901 = vadd.f32 %v2508, %v2863
        %v2902 = vadd.f32 %v2509, %v2868
        %v2903 = vld [vmem:[%s969 + $0x9] sm:$0xff]
        %v2904 = vld [vmem:[%s969 + $0x11] sm:$0xff]
        %v2905 = vld [vmem:[%s969 + $0x29] sm:$0xff]
        %v2906 = vld [vmem:[%s969 + $0x31] sm:$0xff]
        %v2907 = vld [vmem:[%s969 + $0x49] sm:$0xff]
        %v2908 = vld [vmem:[%s969 + $0x51] sm:$0xff]
        %v2909 = vld [vmem:[%s969 + $0x69] sm:$0xff]
        %v2910 = vld [vmem:[%s969 + $0x71] sm:$0xff]
        %v2911 = vld [vmem:[%s969 + $0x89] sm:$0xff]
        %v2912 = vld [vmem:[%s969 + $0x91] sm:$0xff]
        %v2913 = vld [vmem:[%s969 + $0xa9] sm:$0xff]
        %v2914 = vld [vmem:[%s969 + $0xb1] sm:$0xff]
        %v2915 = vld [vmem:[%s969 + $0xc9] sm:$0xff]
        %v2916 = vld [vmem:[%s969 + $0xd1] sm:$0xff]
        %v2917 = vld [vmem:[%s969 + $0xe9] sm:$0xff]
        %v2918 = vld [vmem:[%s969 + $0xf1] sm:$0xff]
        %v2919 = vld [vmem:[%s969 + $0x109] sm:$0xff]
        %v2920 = vld [vmem:[%s969 + $0x111] sm:$0xff]
        %v2921 = vld [vmem:[%s969 + $0x129] sm:$0xff]
        %v2922 = vld [vmem:[%s969 + $0x131] sm:$0xff]
        %v2923 = vld [vmem:[%s969 + $0x149] sm:$0xff]
        %v2924 = vld [vmem:[%s969 + $0x151] sm:$0xff]
        %v2925 = vld [vmem:[%s969 + $0x169] sm:$0xff]
        %v2926 = vld [vmem:[%s969 + $0x171] sm:$0xff]
        %v2927 = vld [vmem:[%s969 + $0x189] sm:$0xff]
        %v2928 = vld [vmem:[%s969 + $0x191] sm:$0xff]
        %v2929 = vld [vmem:[%s969 + $0x1a9] sm:$0xff]
        %v2930 = vld [vmem:[%s969 + $0x1b1] sm:$0xff]
        %v2931 = vld [vmem:[%s969 + $0x1c9] sm:$0xff]
        %v2932 = vld [vmem:[%s969 + $0x1d1] sm:$0xff]
        %v2933 = vld [vmem:[%s969 + $0x1e9] sm:$0xff]
        %v2934 = vld [vmem:[%s969 + $0x1f1] sm:$0xff]
        %v2935 = vld [vmem:[%s5 + $0x140] sm:$0xff]
        %v2936 = vld [vmem:[%s5 + $0x148] sm:$0xff]
        %v2937 = vld [vmem:[%s5 + $0x150] sm:$0xff]
        %v2938 = vld [vmem:[%s5 + $0x158] sm:$0xff]
        %v2939 = vld [vmem:[%s5 + $0x160] sm:$0xff]
        %v2940 = vld [vmem:[%s5 + $0x168] sm:$0xff]
        %v2941 = vld [vmem:[%s5 + $0x170] sm:$0xff]
        %v2942 = vld [vmem:[%s5 + $0x178] sm:$0xff]
        %v2944 = vsel %vm542, %v2903, 0
        %v2947 = vsel %vm542, %v2904, 0
        %v2950 = vsel %vm542, %v2905, 0
        %v2953 = vsel %vm542, %v2906, 0
        %v2956 = vsel %vm542, %v2907, 0
        %v2959 = vsel %vm542, %v2908, 0
        %v2962 = vsel %vm542, %v2909, 0
        %v2965 = vsel %vm542, %v2910, 0
        %v2968 = vsel %vm542, %v2911, 0
        %v2971 = vsel %vm542, %v2912, 0
        %v2974 = vsel %vm542, %v2913, 0
        %v2977 = vsel %vm542, %v2914, 0
        %v2980 = vsel %vm542, %v2915, 0
        %v2983 = vsel %vm542, %v2916, 0
        %v2986 = vsel %vm542, %v2917, 0
        %v2989 = vsel %vm542, %v2918, 0
        %v2992 = vsel %vm542, %v2919, 0
        %v2995 = vsel %vm542, %v2920, 0
        %v2998 = vsel %vm542, %v2921, 0
        %v3001 = vsel %vm542, %v2922, 0
        %v3004 = vsel %vm542, %v2923, 0
        %v3007 = vsel %vm542, %v2924, 0
        %v3010 = vsel %vm542, %v2925, 0
        %v3013 = vsel %vm542, %v2926, 0
        %v3016 = vsel %vm542, %v2927, 0
        %v3019 = vsel %vm542, %v2928, 0
        %v3022 = vsel %vm542, %v2929, 0
        %v3025 = vsel %vm542, %v2930, 0
        %v3028 = vsel %vm542, %v2931, 0
        %v3031 = vsel %vm542, %v2932, 0
        %v3034 = vsel %vm542, %v2933, 0
        %v3037 = vsel %vm542, %v2934, 0
        %3039 = vmatprep.subr.mxu0 0.0
        %3040 = vmatpush1.msra.mxu0 %v2935
        %3041 = vmatprep.subr.mxu0 0.0
        %3042 = vmatpush1.msra.mxu0 %v2936
        %3043 = vmatprep.subr.mxu0 0.0
        %3044 = vmatpush1.msra.mxu0 %v2937
        %3045 = vmatprep.subr.mxu0 0.0
        %3046 = vmatpush1.msra.mxu0 %v2938
        %3047 = vmatprep.subr.mxu0 0.0
        %3048 = vmatpush1.msra.mxu0 %v2939
        %3049 = vmatprep.subr.mxu0 0.0
        %3050 = vmatpush1.msra.mxu0 %v2940
        %3051 = vmatprep.subr.mxu0 0.0
        %3052 = vmatpush1.msra.mxu0 %v2941
        %3053 = vmatprep.subr.mxu0 0.0
        %3054 = vmatpush1.msra.mxu0 %v2942
        %3055 = vmatprep.subr.mxu0 0.0
        %3056 = vmatpush1.msra.mxu0 0.0
        %3057 = vmatprep.subr.mxu0 0.0
        %3058 = vmatpush1.msra.mxu0 0.0
        %3059 = vmatprep.subr.mxu0 0.0
        %3060 = vmatpush1.msra.mxu0 0.0
        %3061 = vmatprep.subr.mxu0 0.0
        %3062 = vmatpush1.msra.mxu0 0.0
        %3063 = vmatprep.subr.mxu0 0.0
        %3064 = vmatpush1.msra.mxu0 0.0
        %3065 = vmatprep.subr.mxu0 0.0
        %3066 = vmatpush1.msra.mxu0 0.0
        %3067 = vmatprep.subr.mxu0 0.0
        %3068 = vmatpush1.msra.mxu0 0.0
        %3069 = vmatprep.subr.mxu0 0.0
        %3070 = vmatpush1.msra.mxu0 0.0
        %3071 = vmatprep.subr.mxu0 0.0
        %3072 = vmatpush1.msra.mxu0 0.0
        %3073 = vmatprep.subr.mxu0 0.0
        %3074 = vmatpush1.msra.mxu0 0.0
        %3075 = vmatprep.subr.mxu0 0.0
        %3076 = vmatpush1.msra.mxu0 0.0
        %3077 = vmatprep.subr.mxu0 0.0
        %3078 = vmatpush1.msra.mxu0 0.0
        %3079 = vmatprep.subr.mxu0 0.0
        %3080 = vmatpush1.msra.mxu0 0.0
        %3081 = vmatprep.subr.mxu0 0.0
        %3082 = vmatpush1.msra.mxu0 0.0
        %3083 = vmatprep.subr.mxu0 0.0
        %3084 = vmatpush1.msra.mxu0 0.0
        %3085 = vmatprep.subr.mxu0 0.0
        %3086 = vmatpush1.msra.mxu0 0.0
        %3087 = vmatprep.subr.mxu0 0.0
        %3088 = vmatpush1.msra.mxu0 0.0
        %3089 = vmatprep.subr.mxu0 0.0
        %3090 = vmatpush1.msra.mxu0 0.0
        %3091 = vmatprep.subr.mxu0 0.0
        %3092 = vmatpush1.msra.mxu0 0.0
        %3093 = vmatprep.subr.mxu0 0.0
        %3094 = vmatpush1.msra.mxu0 0.0
        %3095 = vmatprep.subr.mxu0 0.0
        %3096 = vmatpush1.msra.mxu0 0.0
        %3097 = vmatprep.subr.mxu0 0.0
        %3098 = vmatpush1.msra.mxu0 0.0
        %3099 = vmatprep.subr.mxu0 0.0
        %3100 = vmatpush1.msra.mxu0 0.0
        %3101 = vmatprep.subr.mxu0 0.0
        %3102 = vmatpush1.msra.mxu0 0.0
        %3103 = vmatprep.mubr.f32.mxu0 0.0
        %3104 = vmatmul.mubr.f32.gmra.mrb[0].mxu0 %v2944
        %v3105 = vpop.f32.mrb[0].mxu0
        %v3106 = vadd.f32 0.0, %v3105
        %v3107 = vpop.f32.mrb[0].mxu0
        %3108 = vmatprep.mubr.f32.mxu0 0.0
        %3109 = vmatmul.mubr.f32.gmra.mrb[0].mxu0 %v2947
        %v3110 = vpop.f32.mrb[0].mxu0
        %v3111 = vadd.f32 0.0, %v3110
        %v3112 = vpop.f32.mrb[0].mxu0
        %3113 = vmatprep.mubr.f32.mxu0 0.0
        %3114 = vmatmul.mubr.f32.gmra.mrb[0].mxu0 %v2950
        %v3115 = vpop.f32.mrb[0].mxu0
        %v3116 = vadd.f32 0.0, %v3115
        %v3117 = vpop.f32.mrb[0].mxu0
        %3118 = vmatprep.mubr.f32.mxu0 0.0
        %3119 = vmatmul.mubr.f32.gmra.mrb[0].mxu0 %v2953
        %v3120 = vpop.f32.mrb[0].mxu0
        %v3121 = vadd.f32 0.0, %v3120
        %v3122 = vpop.f32.mrb[0].mxu0
        %3123 = vmatprep.mubr.f32.mxu0 0.0
        %3124 = vmatmul.mubr.f32.gmra.mrb[0].mxu0 %v2956
        %v3125 = vpop.f32.mrb[0].mxu0
        %v3126 = vadd.f32 0.0, %v3125
        %v3127 = vpop.f32.mrb[0].mxu0
        %3128 = vmatprep.mubr.f32.mxu0 0.0
        %3129 = vmatmul.mubr.f32.gmra.mrb[0].mxu0 %v2959
        %v3130 = vpop.f32.mrb[0].mxu0
        %v3131 = vadd.f32 0.0, %v3130
        %v3132 = vpop.f32.mrb[0].mxu0
        %3133 = vmatprep.mubr.f32.mxu0 0.0
        %3134 = vmatmul.mubr.f32.gmra.mrb[0].mxu0 %v2962
        %v3135 = vpop.f32.mrb[0].mxu0
        %v3136 = vadd.f32 0.0, %v3135
        %v3137 = vpop.f32.mrb[0].mxu0
        %3138 = vmatprep.mubr.f32.mxu0 0.0
        %3139 = vmatmul.mubr.f32.gmra.mrb[0].mxu0 %v2965
        %v3140 = vpop.f32.mrb[0].mxu0
        %v3141 = vadd.f32 0.0, %v3140
        %v3142 = vpop.f32.mrb[0].mxu0
        %3143 = vmatprep.mubr.f32.mxu0 0.0
        %3144 = vmatmul.mubr.f32.gmra.mrb[0].mxu0 %v2968
        %v3145 = vpop.f32.mrb[0].mxu0
        %v3146 = vadd.f32 0.0, %v3145
        %v3147 = vpop.f32.mrb[0].mxu0
        %3148 = vmatprep.mubr.f32.mxu0 0.0
        %3149 = vmatmul.mubr.f32.gmra.mrb[0].mxu0 %v2971
        %v3150 = vpop.f32.mrb[0].mxu0
        %v3151 = vadd.f32 0.0, %v3150
        %v3152 = vpop.f32.mrb[0].mxu0
        %3153 = vmatprep.mubr.f32.mxu0 0.0
        %3154 = vmatmul.mubr.f32.gmra.mrb[0].mxu0 %v2974
        %v3155 = vpop.f32.mrb[0].mxu0
        %v3156 = vadd.f32 0.0, %v3155
        %v3157 = vpop.f32.mrb[0].mxu0
        %3158 = vmatprep.mubr.f32.mxu0 0.0
        %3159 = vmatmul.mubr.f32.gmra.mrb[0].mxu0 %v2977
        %v3160 = vpop.f32.mrb[0].mxu0
        %v3161 = vadd.f32 0.0, %v3160
        %v3162 = vpop.f32.mrb[0].mxu0
        %3163 = vmatprep.mubr.f32.mxu0 0.0
        %3164 = vmatmul.mubr.f32.gmra.mrb[0].mxu0 %v2980
        %v3165 = vpop.f32.mrb[0].mxu0
        %v3166 = vadd.f32 0.0, %v3165
        %v3167 = vpop.f32.mrb[0].mxu0
        %3168 = vmatprep.mubr.f32.mxu0 0.0
        %3169 = vmatmul.mubr.f32.gmra.mrb[0].mxu0 %v2983
        %v3170 = vpop.f32.mrb[0].mxu0
        %v3171 = vadd.f32 0.0, %v3170
        %v3172 = vpop.f32.mrb[0].mxu0
        %3173 = vmatprep.mubr.f32.mxu0 0.0
        %3174 = vmatmul.mubr.f32.gmra.mrb[0].mxu0 %v2986
        %v3175 = vpop.f32.mrb[0].mxu0
        %v3176 = vadd.f32 0.0, %v3175
        %v3177 = vpop.f32.mrb[0].mxu0
        %3178 = vmatprep.mubr.f32.mxu0 0.0
        %3179 = vmatmul.mubr.f32.gmra.mrb[0].mxu0 %v2989
        %v3180 = vpop.f32.mrb[0].mxu0
        %v3181 = vadd.f32 0.0, %v3180
        %v3182 = vpop.f32.mrb[0].mxu0
        %3183 = vmatprep.mubr.f32.mxu0 0.0
        %3184 = vmatmul.mubr.f32.gmra.mrb[0].mxu0 %v2992
        %v3185 = vpop.f32.mrb[0].mxu0
        %v3186 = vadd.f32 0.0, %v3185
        %v3187 = vpop.f32.mrb[0].mxu0
        %3188 = vmatprep.mubr.f32.mxu0 0.0
        %3189 = vmatmul.mubr.f32.gmra.mrb[0].mxu0 %v2995
        %v3190 = vpop.f32.mrb[0].mxu0
        %v3191 = vadd.f32 0.0, %v3190
        %v3192 = vpop.f32.mrb[0].mxu0
        %3193 = vmatprep.mubr.f32.mxu0 0.0
        %3194 = vmatmul.mubr.f32.gmra.mrb[0].mxu0 %v2998
        %v3195 = vpop.f32.mrb[0].mxu0
        %v3196 = vadd.f32 0.0, %v3195
        %v3197 = vpop.f32.mrb[0].mxu0
        %3198 = vmatprep.mubr.f32.mxu0 0.0
        %3199 = vmatmul.mubr.f32.gmra.mrb[0].mxu0 %v3001
        %v3200 = vpop.f32.mrb[0].mxu0
        %v3201 = vadd.f32 0.0, %v3200
        %v3202 = vpop.f32.mrb[0].mxu0
        %3203 = vmatprep.mubr.f32.mxu0 0.0
        %3204 = vmatmul.mubr.f32.gmra.mrb[0].mxu0 %v3004
        %v3205 = vpop.f32.mrb[0].mxu0
        %v3206 = vadd.f32 0.0, %v3205
        %v3207 = vpop.f32.mrb[0].mxu0
        %3208 = vmatprep.mubr.f32.mxu0 0.0
        %3209 = vmatmul.mubr.f32.gmra.mrb[0].mxu0 %v3007
        %v3210 = vpop.f32.mrb[0].mxu0
        %v3211 = vadd.f32 0.0, %v3210
        %v3212 = vpop.f32.mrb[0].mxu0
        %3213 = vmatprep.mubr.f32.mxu0 0.0
        %3214 = vmatmul.mubr.f32.gmra.mrb[0].mxu0 %v3010
        %v3215 = vpop.f32.mrb[0].mxu0
        %v3216 = vadd.f32 0.0, %v3215
        %v3217 = vpop.f32.mrb[0].mxu0
        %3218 = vmatprep.mubr.f32.mxu0 0.0
        %3219 = vmatmul.mubr.f32.gmra.mrb[0].mxu0 %v3013
        %v3220 = vpop.f32.mrb[0].mxu0
        %v3221 = vadd.f32 0.0, %v3220
        %v3222 = vpop.f32.mrb[0].mxu0
        %3223 = vmatprep.mubr.f32.mxu0 0.0
        %3224 = vmatmul.mubr.f32.gmra.mrb[0].mxu0 %v3016
        %v3225 = vpop.f32.mrb[0].mxu0
        %v3226 = vadd.f32 0.0, %v3225
        %v3227 = vpop.f32.mrb[0].mxu0
        %3228 = vmatprep.mubr.f32.mxu0 0.0
        %3229 = vmatmul.mubr.f32.gmra.mrb[0].mxu0 %v3019
        %v3230 = vpop.f32.mrb[0].mxu0
        %v3231 = vadd.f32 0.0, %v3230
        %v3232 = vpop.f32.mrb[0].mxu0
        %3233 = vmatprep.mubr.f32.mxu0 0.0
        %3234 = vmatmul.mubr.f32.gmra.mrb[0].mxu0 %v3022
        %v3235 = vpop.f32.mrb[0].mxu0
        %v3236 = vadd.f32 0.0, %v3235
        %v3237 = vpop.f32.mrb[0].mxu0
        %3238 = vmatprep.mubr.f32.mxu0 0.0
        %3239 = vmatmul.mubr.f32.gmra.mrb[0].mxu0 %v3025
        %v3240 = vpop.f32.mrb[0].mxu0
        %v3241 = vadd.f32 0.0, %v3240
        %v3242 = vpop.f32.mrb[0].mxu0
        %3243 = vmatprep.mubr.f32.mxu0 0.0
        %3244 = vmatmul.mubr.f32.gmra.mrb[0].mxu0 %v3028
        %v3245 = vpop.f32.mrb[0].mxu0
        %v3246 = vadd.f32 0.0, %v3245
        %v3247 = vpop.f32.mrb[0].mxu0
        %3248 = vmatprep.mubr.f32.mxu0 0.0
        %3249 = vmatmul.mubr.f32.gmra.mrb[0].mxu0 %v3031
        %v3250 = vpop.f32.mrb[0].mxu0
        %v3251 = vadd.f32 0.0, %v3250
        %v3252 = vpop.f32.mrb[0].mxu0
        %3253 = vmatprep.mubr.f32.mxu0 0.0
        %3254 = vmatmul.mubr.f32.gmra.mrb[0].mxu0 %v3034
        %v3255 = vpop.f32.mrb[0].mxu0
        %v3256 = vadd.f32 0.0, %v3255
        %v3257 = vpop.f32.mrb[0].mxu0
        %3258 = vmatprep.mubr.f32.mxu0 0.0
        %3259 = vmatmul.mubr.f32.gmra.mrb[0].mxu0 %v3037
        %v3260 = vpop.f32.mrb[0].mxu0
        %v3261 = vadd.f32 0.0, %v3260
        %v3262 = vpop.f32.mrb[0].mxu0
        %3263 = vdwg.mxu0
        %v3264 = vadd.f32 %v2871, %v3106
        %v3265 = vadd.f32 %v2872, %v3111
        %v3266 = vadd.f32 %v2873, %v3116
        %v3267 = vadd.f32 %v2874, %v3121
        %v3268 = vadd.f32 %v2875, %v3126
        %v3269 = vadd.f32 %v2876, %v3131
        %v3270 = vadd.f32 %v2877, %v3136
        %v3271 = vadd.f32 %v2878, %v3141
        %v3272 = vadd.f32 %v2879, %v3146
        %v3273 = vadd.f32 %v2880, %v3151
        %v3274 = vadd.f32 %v2881, %v3156
        %v3275 = vadd.f32 %v2882, %v3161
        %v3276 = vadd.f32 %v2883, %v3166
        %v3277 = vadd.f32 %v2884, %v3171
        %v3278 = vadd.f32 %v2885, %v3176
        %v3279 = vadd.f32 %v2886, %v3181
        %v3280 = vadd.f32 %v2887, %v3186
        %v3281 = vadd.f32 %v2888, %v3191
        %v3282 = vadd.f32 %v2889, %v3196
        %v3283 = vadd.f32 %v2890, %v3201
        %v3284 = vadd.f32 %v2891, %v3206
        %v3285 = vadd.f32 %v2892, %v3211
        %v3286 = vadd.f32 %v2893, %v3216
        %v3287 = vadd.f32 %v2894, %v3221
        %v3288 = vadd.f32 %v2895, %v3226
        %v3289 = vadd.f32 %v2896, %v3231
        %v3290 = vadd.f32 %v2897, %v3236
        %v3291 = vadd.f32 %v2898, %v3241
        %v3292 = vadd.f32 %v2899, %v3246
        %v3293 = vadd.f32 %v2900, %v3251
        %v3294 = vadd.f32 %v2901, %v3256
        %v3295 = vadd.f32 %v2902, %v3261
        %s3296 = scalar_lea.vmem [#allocation2], 64
        %v3297 = vld [vmem:[%s3296 + $0x7] sm:$0xff]
        %v3298 = vld [vmem:[%s3296 + $0xf] sm:$0xff]
        %v3299 = vld [vmem:[%s3296 + $0x27] sm:$0xff]
        %v3300 = vld [vmem:[%s3296 + $0x2f] sm:$0xff]
        %v3301 = vld [vmem:[%s3296 + $0x47] sm:$0xff]
        %v3302 = vld [vmem:[%s3296 + $0x4f] sm:$0xff]
        %v3303 = vld [vmem:[%s3296 + $0x67] sm:$0xff]
        %v3304 = vld [vmem:[%s3296 + $0x6f] sm:$0xff]
        %v3305 = vld [vmem:[%s3296 + $0x87] sm:$0xff]
        %v3306 = vld [vmem:[%s3296 + $0x8f] sm:$0xff]
        %v3307 = vld [vmem:[%s3296 + $0xa7] sm:$0xff]
        %v3308 = vld [vmem:[%s3296 + $0xaf] sm:$0xff]
        %v3309 = vld [vmem:[%s3296 + $0xc7] sm:$0xff]
        %v3310 = vld [vmem:[%s3296 + $0xcf] sm:$0xff]
        %v3311 = vld [vmem:[%s3296 + $0xe7] sm:$0xff]
        %v3312 = vld [vmem:[%s3296 + $0xef] sm:$0xff]
        %v3313 = vld [vmem:[%s3296 + $0x107] sm:$0xff]
        %v3314 = vld [vmem:[%s3296 + $0x10f] sm:$0xff]
        %v3315 = vld [vmem:[%s3296 + $0x127] sm:$0xff]
        %v3316 = vld [vmem:[%s3296 + $0x12f] sm:$0xff]
        %v3317 = vld [vmem:[%s3296 + $0x147] sm:$0xff]
        %v3318 = vld [vmem:[%s3296 + $0x14f] sm:$0xff]
        %v3319 = vld [vmem:[%s3296 + $0x167] sm:$0xff]
        %v3320 = vld [vmem:[%s3296 + $0x16f] sm:$0xff]
        %v3321 = vld [vmem:[%s3296 + $0x187] sm:$0xff]
        %v3322 = vld [vmem:[%s3296 + $0x18f] sm:$0xff]
        %v3323 = vld [vmem:[%s3296 + $0x1a7] sm:$0xff]
        %v3324 = vld [vmem:[%s3296 + $0x1af] sm:$0xff]
        %v3325 = vld [vmem:[%s3296 + $0x1c7] sm:$0xff]
        %v3326 = vld [vmem:[%s3296 + $0x1cf] sm:$0xff]
        %v3327 = vld [vmem:[%s3296 + $0x1e7] sm:$0xff]
        %v3328 = vld [vmem:[%s3296 + $0x1ef] sm:$0xff]
        %v3329 = vld [vmem:[%s5 + $0x180] sm:$0xff]
        %v3330 = vld [vmem:[%s5 + $0x188] sm:$0xff]
        %v3331 = vld [vmem:[%s5 + $0x190] sm:$0xff]
        %v3332 = vld [vmem:[%s5 + $0x198] sm:$0xff]
        %v3333 = vld [vmem:[%s5 + $0x1a0] sm:$0xff]
        %v3334 = vld [vmem:[%s5 + $0x1a8] sm:$0xff]
        %v3335 = vld [vmem:[%s5 + $0x1b0] sm:$0xff]
        %v3336 = vld [vmem:[%s5 + $0x1b8] sm:$0xff]
        %v3338 = vsel %vm542, %v3297, 0
        %v3341 = vsel %vm542, %v3298, 0
        %v3344 = vsel %vm542, %v3299, 0
        %v3347 = vsel %vm542, %v3300, 0
        %v3350 = vsel %vm542, %v3301, 0
        %v3353 = vsel %vm542, %v3302, 0
        %v3356 = vsel %vm542, %v3303, 0
        %v3359 = vsel %vm542, %v3304, 0
        %v3362 = vsel %vm542, %v3305, 0
        %v3365 = vsel %vm542, %v3306, 0
        %v3368 = vsel %vm542, %v3307, 0
        %v3371 = vsel %vm542, %v3308, 0
        %v3374 = vsel %vm542, %v3309, 0
        %v3377 = vsel %vm542, %v3310, 0
        %v3380 = vsel %vm542, %v3311, 0
        %v3383 = vsel %vm542, %v3312, 0
        %v3386 = vsel %vm542, %v3313, 0
        %v3389 = vsel %vm542, %v3314, 0
        %v3392 = vsel %vm542, %v3315, 0
        %v3395 = vsel %vm542, %v3316, 0
        %v3398 = vsel %vm542, %v3317, 0
        %v3401 = vsel %vm542, %v3318, 0
        %v3404 = vsel %vm542, %v3319, 0
        %v3407 = vsel %vm542, %v3320, 0
        %v3410 = vsel %vm542, %v3321, 0
        %v3413 = vsel %vm542, %v3322, 0
        %v3416 = vsel %vm542, %v3323, 0
        %v3419 = vsel %vm542, %v3324, 0
        %v3422 = vsel %vm542, %v3325, 0
        %v3425 = vsel %vm542, %v3326, 0
        %v3428 = vsel %vm542, %v3327, 0
        %v3431 = vsel %vm542, %v3328, 0
        %3433 = vmatprep.subr.mxu0 0.0
        %3434 = vmatpush1.msra.mxu0 %v3329
        %3435 = vmatprep.subr.mxu0 0.0
        %3436 = vmatpush1.msra.mxu0 %v3330
        %3437 = vmatprep.subr.mxu0 0.0
        %3438 = vmatpush1.msra.mxu0 %v3331
        %3439 = vmatprep.subr.mxu0 0.0
        %3440 = vmatpush1.msra.mxu0 %v3332
        %3441 = vmatprep.subr.mxu0 0.0
        %3442 = vmatpush1.msra.mxu0 %v3333
        %3443 = vmatprep.subr.mxu0 0.0
        %3444 = vmatpush1.msra.mxu0 %v3334
        %3445 = vmatprep.subr.mxu0 0.0
        %3446 = vmatpush1.msra.mxu0 %v3335
        %3447 = vmatprep.subr.mxu0 0.0
        %3448 = vmatpush1.msra.mxu0 %v3336
        %3449 = vmatprep.subr.mxu0 0.0
        %3450 = vmatpush1.msra.mxu0 0.0
        %3451 = vmatprep.subr.mxu0 0.0
        %3452 = vmatpush1.msra.mxu0 0.0
        %3453 = vmatprep.subr.mxu0 0.0
        %3454 = vmatpush1.msra.mxu0 0.0
        %3455 = vmatprep.subr.mxu0 0.0
        %3456 = vmatpush1.msra.mxu0 0.0
        %3457 = vmatprep.subr.mxu0 0.0
        %3458 = vmatpush1.msra.mxu0 0.0
        %3459 = vmatprep.subr.mxu0 0.0
        %3460 = vmatpush1.msra.mxu0 0.0
        %3461 = vmatprep.subr.mxu0 0.0
        %3462 = vmatpush1.msra.mxu0 0.0
        %3463 = vmatprep.subr.mxu0 0.0
        %3464 = vmatpush1.msra.mxu0 0.0
        %3465 = vmatprep.subr.mxu0 0.0
        %3466 = vmatpush1.msra.mxu0 0.0
        %3467 = vmatprep.subr.mxu0 0.0
        %3468 = vmatpush1.msra.mxu0 0.0
        %3469 = vmatprep.subr.mxu0 0.0
        %3470 = vmatpush1.msra.mxu0 0.0
        %3471 = vmatprep.subr.mxu0 0.0
        %3472 = vmatpush1.msra.mxu0 0.0
        %3473 = vmatprep.subr.mxu0 0.0
        %3474 = vmatpush1.msra.mxu0 0.0
        %3475 = vmatprep.subr.mxu0 0.0
        %3476 = vmatpush1.msra.mxu0 0.0
        %3477 = vmatprep.subr.mxu0 0.0
        %3478 = vmatpush1.msra.mxu0 0.0
        %3479 = vmatprep.subr.mxu0 0.0
        %3480 = vmatpush1.msra.mxu0 0.0
        %3481 = vmatprep.subr.mxu0 0.0
        %3482 = vmatpush1.msra.mxu0 0.0
        %3483 = vmatprep.subr.mxu0 0.0
        %3484 = vmatpush1.msra.mxu0 0.0
        %3485 = vmatprep.subr.mxu0 0.0
        %3486 = vmatpush1.msra.mxu0 0.0
        %3487 = vmatprep.subr.mxu0 0.0
        %3488 = vmatpush1.msra.mxu0 0.0
        %3489 = vmatprep.subr.mxu0 0.0
        %3490 = vmatpush1.msra.mxu0 0.0
        %3491 = vmatprep.subr.mxu0 0.0
        %3492 = vmatpush1.msra.mxu0 0.0
        %3493 = vmatprep.subr.mxu0 0.0
        %3494 = vmatpush1.msra.mxu0 0.0
        %3495 = vmatprep.subr.mxu0 0.0
        %3496 = vmatpush1.msra.mxu0 0.0
        %3497 = vmatprep.mubr.f32.mxu0 0.0
        %3498 = vmatmul.mubr.f32.gmra.mrb[0].mxu0 %v3338
        %v3499 = vpop.f32.mrb[0].mxu0
        %v3500 = vadd.f32 0.0, %v3499
        %v3501 = vpop.f32.mrb[0].mxu0
        %3502 = vmatprep.mubr.f32.mxu0 0.0
        %3503 = vmatmul.mubr.f32.gmra.mrb[0].mxu0 %v3341
        %v3504 = vpop.f32.mrb[0].mxu0
        %v3505 = vadd.f32 0.0, %v3504
        %v3506 = vpop.f32.mrb[0].mxu0
        %3507 = vmatprep.mubr.f32.mxu0 0.0
        %3508 = vmatmul.mubr.f32.gmra.mrb[0].mxu0 %v3344
        %v3509 = vpop.f32.mrb[0].mxu0
        %v3510 = vadd.f32 0.0, %v3509
        %v3511 = vpop.f32.mrb[0].mxu0
        %3512 = vmatprep.mubr.f32.mxu0 0.0
        %3513 = vmatmul.mubr.f32.gmra.mrb[0].mxu0 %v3347
        %v3514 = vpop.f32.mrb[0].mxu0
        %v3515 = vadd.f32 0.0, %v3514
        %v3516 = vpop.f32.mrb[0].mxu0
        %3517 = vmatprep.mubr.f32.mxu0 0.0
        %3518 = vmatmul.mubr.f32.gmra.mrb[0].mxu0 %v3350
        %v3519 = vpop.f32.mrb[0].mxu0
        %v3520 = vadd.f32 0.0, %v3519
        %v3521 = vpop.f32.mrb[0].mxu0
        %3522 = vmatprep.mubr.f32.mxu0 0.0
        %3523 = vmatmul.mubr.f32.gmra.mrb[0].mxu0 %v3353
        %v3524 = vpop.f32.mrb[0].mxu0
        %v3525 = vadd.f32 0.0, %v3524
        %v3526 = vpop.f32.mrb[0].mxu0
        %3527 = vmatprep.mubr.f32.mxu0 0.0
        %3528 = vmatmul.mubr.f32.gmra.mrb[0].mxu0 %v3356
        %v3529 = vpop.f32.mrb[0].mxu0
        %v3530 = vadd.f32 0.0, %v3529
        %v3531 = vpop.f32.mrb[0].mxu0
        %3532 = vmatprep.mubr.f32.mxu0 0.0
        %3533 = vmatmul.mubr.f32.gmra.mrb[0].mxu0 %v3359
        %v3534 = vpop.f32.mrb[0].mxu0
        %v3535 = vadd.f32 0.0, %v3534
        %v3536 = vpop.f32.mrb[0].mxu0
        %3537 = vmatprep.mubr.f32.mxu0 0.0
        %3538 = vmatmul.mubr.f32.gmra.mrb[0].mxu0 %v3362
        %v3539 = vpop.f32.mrb[0].mxu0
        %v3540 = vadd.f32 0.0, %v3539
        %v3541 = vpop.f32.mrb[0].mxu0
        %3542 = vmatprep.mubr.f32.mxu0 0.0
        %3543 = vmatmul.mubr.f32.gmra.mrb[0].mxu0 %v3365
        %v3544 = vpop.f32.mrb[0].mxu0
        %v3545 = vadd.f32 0.0, %v3544
        %v3546 = vpop.f32.mrb[0].mxu0
        %3547 = vmatprep.mubr.f32.mxu0 0.0
        %3548 = vmatmul.mubr.f32.gmra.mrb[0].mxu0 %v3368
        %v3549 = vpop.f32.mrb[0].mxu0
        %v3550 = vadd.f32 0.0, %v3549
        %v3551 = vpop.f32.mrb[0].mxu0
        %3552 = vmatprep.mubr.f32.mxu0 0.0
        %3553 = vmatmul.mubr.f32.gmra.mrb[0].mxu0 %v3371
        %v3554 = vpop.f32.mrb[0].mxu0
        %v3555 = vadd.f32 0.0, %v3554
        %v3556 = vpop.f32.mrb[0].mxu0
        %3557 = vmatprep.mubr.f32.mxu0 0.0
        %3558 = vmatmul.mubr.f32.gmra.mrb[0].mxu0 %v3374
        %v3559 = vpop.f32.mrb[0].mxu0
        %v3560 = vadd.f32 0.0, %v3559
        %v3561 = vpop.f32.mrb[0].mxu0
        %3562 = vmatprep.mubr.f32.mxu0 0.0
        %3563 = vmatmul.mubr.f32.gmra.mrb[0].mxu0 %v3377
        %v3564 = vpop.f32.mrb[0].mxu0
        %v3565 = vadd.f32 0.0, %v3564
        %v3566 = vpop.f32.mrb[0].mxu0
        %3567 = vmatprep.mubr.f32.mxu0 0.0
        %3568 = vmatmul.mubr.f32.gmra.mrb[0].mxu0 %v3380
        %v3569 = vpop.f32.mrb[0].mxu0
        %v3570 = vadd.f32 0.0, %v3569
        %v3571 = vpop.f32.mrb[0].mxu0
        %3572 = vmatprep.mubr.f32.mxu0 0.0
        %3573 = vmatmul.mubr.f32.gmra.mrb[0].mxu0 %v3383
        %v3574 = vpop.f32.mrb[0].mxu0
        %v3575 = vadd.f32 0.0, %v3574
        %v3576 = vpop.f32.mrb[0].mxu0
        %3577 = vmatprep.mubr.f32.mxu0 0.0
        %3578 = vmatmul.mubr.f32.gmra.mrb[0].mxu0 %v3386
        %v3579 = vpop.f32.mrb[0].mxu0
        %v3580 = vadd.f32 0.0, %v3579
        %v3581 = vpop.f32.mrb[0].mxu0
        %3582 = vmatprep.mubr.f32.mxu0 0.0
        %3583 = vmatmul.mubr.f32.gmra.mrb[0].mxu0 %v3389
        %v3584 = vpop.f32.mrb[0].mxu0
        %v3585 = vadd.f32 0.0, %v3584
        %v3586 = vpop.f32.mrb[0].mxu0
        %3587 = vmatprep.mubr.f32.mxu0 0.0
        %3588 = vmatmul.mubr.f32.gmra.mrb[0].mxu0 %v3392
        %v3589 = vpop.f32.mrb[0].mxu0
        %v3590 = vadd.f32 0.0, %v3589
        %v3591 = vpop.f32.mrb[0].mxu0
        %3592 = vmatprep.mubr.f32.mxu0 0.0
        %3593 = vmatmul.mubr.f32.gmra.mrb[0].mxu0 %v3395
        %v3594 = vpop.f32.mrb[0].mxu0
        %v3595 = vadd.f32 0.0, %v3594
        %v3596 = vpop.f32.mrb[0].mxu0
        %3597 = vmatprep.mubr.f32.mxu0 0.0
        %3598 = vmatmul.mubr.f32.gmra.mrb[0].mxu0 %v3398
        %v3599 = vpop.f32.mrb[0].mxu0
        %v3600 = vadd.f32 0.0, %v3599
        %v3601 = vpop.f32.mrb[0].mxu0
        %3602 = vmatprep.mubr.f32.mxu0 0.0
        %3603 = vmatmul.mubr.f32.gmra.mrb[0].mxu0 %v3401
        %v3604 = vpop.f32.mrb[0].mxu0
        %v3605 = vadd.f32 0.0, %v3604
        %v3606 = vpop.f32.mrb[0].mxu0
        %3607 = vmatprep.mubr.f32.mxu0 0.0
        %3608 = vmatmul.mubr.f32.gmra.mrb[0].mxu0 %v3404
        %v3609 = vpop.f32.mrb[0].mxu0
        %v3610 = vadd.f32 0.0, %v3609
        %v3611 = vpop.f32.mrb[0].mxu0
        %3612 = vmatprep.mubr.f32.mxu0 0.0
        %3613 = vmatmul.mubr.f32.gmra.mrb[0].mxu0 %v3407
        %v3614 = vpop.f32.mrb[0].mxu0
        %v3615 = vadd.f32 0.0, %v3614
        %v3616 = vpop.f32.mrb[0].mxu0
        %3617 = vmatprep.mubr.f32.mxu0 0.0
        %3618 = vmatmul.mubr.f32.gmra.mrb[0].mxu0 %v3410
        %v3619 = vpop.f32.mrb[0].mxu0
        %v3620 = vadd.f32 0.0, %v3619
        %v3621 = vpop.f32.mrb[0].mxu0
        %3622 = vmatprep.mubr.f32.mxu0 0.0
        %3623 = vmatmul.mubr.f32.gmra.mrb[0].mxu0 %v3413
        %v3624 = vpop.f32.mrb[0].mxu0
        %v3625 = vadd.f32 0.0, %v3624
        %v3626 = vpop.f32.mrb[0].mxu0
        %3627 = vmatprep.mubr.f32.mxu0 0.0
        %3628 = vmatmul.mubr.f32.gmra.mrb[0].mxu0 %v3416
        %v3629 = vpop.f32.mrb[0].mxu0
        %v3630 = vadd.f32 0.0, %v3629
        %v3631 = vpop.f32.mrb[0].mxu0
        %3632 = vmatprep.mubr.f32.mxu0 0.0
        %3633 = vmatmul.mubr.f32.gmra.mrb[0].mxu0 %v3419
        %v3634 = vpop.f32.mrb[0].mxu0
        %v3635 = vadd.f32 0.0, %v3634
        %v3636 = vpop.f32.mrb[0].mxu0
        %3637 = vmatprep.mubr.f32.mxu0 0.0
        %3638 = vmatmul.mubr.f32.gmra.mrb[0].mxu0 %v3422
        %v3639 = vpop.f32.mrb[0].mxu0
        %v3640 = vadd.f32 0.0, %v3639
        %v3641 = vpop.f32.mrb[0].mxu0
        %3642 = vmatprep.mubr.f32.mxu0 0.0
        %3643 = vmatmul.mubr.f32.gmra.mrb[0].mxu0 %v3425
        %v3644 = vpop.f32.mrb[0].mxu0
        %v3645 = vadd.f32 0.0, %v3644
        %v3646 = vpop.f32.mrb[0].mxu0
        %3647 = vmatprep.mubr.f32.mxu0 0.0
        %3648 = vmatmul.mubr.f32.gmra.mrb[0].mxu0 %v3428
        %v3649 = vpop.f32.mrb[0].mxu0
        %v3650 = vadd.f32 0.0, %v3649
        %v3651 = vpop.f32.mrb[0].mxu0
        %3652 = vmatprep.mubr.f32.mxu0 0.0
        %3653 = vmatmul.mubr.f32.gmra.mrb[0].mxu0 %v3431
        %v3654 = vpop.f32.mrb[0].mxu0
        %v3655 = vadd.f32 0.0, %v3654
        %v3656 = vpop.f32.mrb[0].mxu0
        %3657 = vdwg.mxu0
        %v3658 = vadd.f32 %v3264, %v3500
        %v3659 = vadd.f32 %v3265, %v3505
        %v3660 = vadd.f32 %v3266, %v3510
        %v3661 = vadd.f32 %v3267, %v3515
        %v3662 = vadd.f32 %v3268, %v3520
        %v3663 = vadd.f32 %v3269, %v3525
        %v3664 = vadd.f32 %v3270, %v3530
        %v3665 = vadd.f32 %v3271, %v3535
        %v3666 = vadd.f32 %v3272, %v3540
        %v3667 = vadd.f32 %v3273, %v3545
        %v3668 = vadd.f32 %v3274, %v3550
        %v3669 = vadd.f32 %v3275, %v3555
        %v3670 = vadd.f32 %v3276, %v3560
        %v3671 = vadd.f32 %v3277, %v3565
        %v3672 = vadd.f32 %v3278, %v3570
        %v3673 = vadd.f32 %v3279, %v3575
        %v3674 = vadd.f32 %v3280, %v3580
        %v3675 = vadd.f32 %v3281, %v3585
        %v3676 = vadd.f32 %v3282, %v3590
        %v3677 = vadd.f32 %v3283, %v3595
        %v3678 = vadd.f32 %v3284, %v3600
        %v3679 = vadd.f32 %v3285, %v3605
        %v3680 = vadd.f32 %v3286, %v3610
        %v3681 = vadd.f32 %v3287, %v3615
        %v3682 = vadd.f32 %v3288, %v3620
        %v3683 = vadd.f32 %v3289, %v3625
        %v3684 = vadd.f32 %v3290, %v3630
        %v3685 = vadd.f32 %v3291, %v3635
        %v3686 = vadd.f32 %v3292, %v3640
        %v3687 = vadd.f32 %v3293, %v3645
        %v3688 = vadd.f32 %v3294, %v3650
        %v3689 = vadd.f32 %v3295, %v3655
        %v3690 = vld [vmem:[%s3296 + $0x8] sm:$0xff]
        %v3691 = vld [vmem:[%s3296 + $0x10] sm:$0xff]
        %v3692 = vld [vmem:[%s3296 + $0x28] sm:$0xff]
        %v3693 = vld [vmem:[%s3296 + $0x30] sm:$0xff]
        %v3694 = vld [vmem:[%s3296 + $0x48] sm:$0xff]
        %v3695 = vld [vmem:[%s3296 + $0x50] sm:$0xff]
        %v3696 = vld [vmem:[%s3296 + $0x68] sm:$0xff]
        %v3697 = vld [vmem:[%s3296 + $0x70] sm:$0xff]
        %v3698 = vld [vmem:[%s3296 + $0x88] sm:$0xff]
        %v3699 = vld [vmem:[%s3296 + $0x90] sm:$0xff]
        %v3700 = vld [vmem:[%s3296 + $0xa8] sm:$0xff]
        %v3701 = vld [vmem:[%s3296 + $0xb0] sm:$0xff]
        %v3702 = vld [vmem:[%s3296 + $0xc8] sm:$0xff]
        %v3703 = vld [vmem:[%s3296 + $0xd0] sm:$0xff]
        %v3704 = vld [vmem:[%s3296 + $0xe8] sm:$0xff]
        %v3705 = vld [vmem:[%s3296 + $0xf0] sm:$0xff]
        %v3706 = vld [vmem:[%s3296 + $0x108] sm:$0xff]
        %v3707 = vld [vmem:[%s3296 + $0x110] sm:$0xff]
        %v3708 = vld [vmem:[%s3296 + $0x128] sm:$0xff]
        %v3709 = vld [vmem:[%s3296 + $0x130] sm:$0xff]
        %v3710 = vld [vmem:[%s3296 + $0x148] sm:$0xff]
        %v3711 = vld [vmem:[%s3296 + $0x150] sm:$0xff]
        %v3712 = vld [vmem:[%s3296 + $0x168] sm:$0xff]
        %v3713 = vld [vmem:[%s3296 + $0x170] sm:$0xff]
        %v3714 = vld [vmem:[%s3296 + $0x188] sm:$0xff]
        %v3715 = vld [vmem:[%s3296 + $0x190] sm:$0xff]
        %v3716 = vld [vmem:[%s3296 + $0x1a8] sm:$0xff]
        %v3717 = vld [vmem:[%s3296 + $0x1b0] sm:$0xff]
        %v3718 = vld [vmem:[%s3296 + $0x1c8] sm:$0xff]
        %v3719 = vld [vmem:[%s3296 + $0x1d0] sm:$0xff]
        %v3720 = vld [vmem:[%s3296 + $0x1e8] sm:$0xff]
        %v3721 = vld [vmem:[%s3296 + $0x1f0] sm:$0xff]
        %v3722 = vld [vmem:[%s5 + $0x1c0] sm:$0xff]
        %v3723 = vld [vmem:[%s5 + $0x1c8] sm:$0xff]
        %v3724 = vld [vmem:[%s5 + $0x1d0] sm:$0xff]
        %v3725 = vld [vmem:[%s5 + $0x1d8] sm:$0xff]
        %v3726 = vld [vmem:[%s5 + $0x1e0] sm:$0xff]
        %v3727 = vld [vmem:[%s5 + $0x1e8] sm:$0xff]
        %v3728 = vld [vmem:[%s5 + $0x1f0] sm:$0xff]
        %v3729 = vld [vmem:[%s5 + $0x1f8] sm:$0xff]
        %v3731 = vsel %vm542, %v3690, 0
        %v3734 = vsel %vm542, %v3691, 0
        %v3737 = vsel %vm542, %v3692, 0
        %v3740 = vsel %vm542, %v3693, 0
        %v3743 = vsel %vm542, %v3694, 0
        %v3746 = vsel %vm542, %v3695, 0
        %v3749 = vsel %vm542, %v3696, 0
        %v3752 = vsel %vm542, %v3697, 0
        %v3755 = vsel %vm542, %v3698, 0
        %v3758 = vsel %vm542, %v3699, 0
        %v3761 = vsel %vm542, %v3700, 0
        %v3764 = vsel %vm542, %v3701, 0
        %v3767 = vsel %vm542, %v3702, 0
        %v3770 = vsel %vm542, %v3703, 0
        %v3773 = vsel %vm542, %v3704, 0
        %v3776 = vsel %vm542, %v3705, 0
        %v3779 = vsel %vm542, %v3706, 0
        %v3782 = vsel %vm542, %v3707, 0
        %v3785 = vsel %vm542, %v3708, 0
        %v3788 = vsel %vm542, %v3709, 0
        %v3791 = vsel %vm542, %v3710, 0
        %v3794 = vsel %vm542, %v3711, 0
        %v3797 = vsel %vm542, %v3712, 0
        %v3800 = vsel %vm542, %v3713, 0
        %v3803 = vsel %vm542, %v3714, 0
        %v3806 = vsel %vm542, %v3715, 0
        %v3809 = vsel %vm542, %v3716, 0
        %v3812 = vsel %vm542, %v3717, 0
        %v3815 = vsel %vm542, %v3718, 0
        %v3818 = vsel %vm542, %v3719, 0
        %v3821 = vsel %vm542, %v3720, 0
        %v3824 = vsel %vm542, %v3721, 0
        %3826 = vmatprep.subr.mxu0 0.0
        %3827 = vmatpush1.msra.mxu0 %v3722
        %3828 = vmatprep.subr.mxu0 0.0
        %3829 = vmatpush1.msra.mxu0 %v3723
        %3830 = vmatprep.subr.mxu0 0.0
        %3831 = vmatpush1.msra.mxu0 %v3724
        %3832 = vmatprep.subr.mxu0 0.0
        %3833 = vmatpush1.msra.mxu0 %v3725
        %3834 = vmatprep.subr.mxu0 0.0
        %3835 = vmatpush1.msra.mxu0 %v3726
        %3836 = vmatprep.subr.mxu0 0.0
        %3837 = vmatpush1.msra.mxu0 %v3727
        %3838 = vmatprep.subr.mxu0 0.0
        %3839 = vmatpush1.msra.mxu0 %v3728
        %3840 = vmatprep.subr.mxu0 0.0
        %3841 = vmatpush1.msra.mxu0 %v3729
        %3842 = vmatprep.subr.mxu0 0.0
        %3843 = vmatpush1.msra.mxu0 0.0
        %3844 = vmatprep.subr.mxu0 0.0
        %3845 = vmatpush1.msra.mxu0 0.0
        %3846 = vmatprep.subr.mxu0 0.0
        %3847 = vmatpush1.msra.mxu0 0.0
        %3848 = vmatprep.subr.mxu0 0.0
        %3849 = vmatpush1.msra.mxu0 0.0
        %3850 = vmatprep.subr.mxu0 0.0
        %3851 = vmatpush1.msra.mxu0 0.0
        %3852 = vmatprep.subr.mxu0 0.0
        %3853 = vmatpush1.msra.mxu0 0.0
        %3854 = vmatprep.subr.mxu0 0.0
        %3855 = vmatpush1.msra.mxu0 0.0
        %3856 = vmatprep.subr.mxu0 0.0
        %3857 = vmatpush1.msra.mxu0 0.0
        %3858 = vmatprep.subr.mxu0 0.0
        %3859 = vmatpush1.msra.mxu0 0.0
        %3860 = vmatprep.subr.mxu0 0.0
        %3861 = vmatpush1.msra.mxu0 0.0
        %3862 = vmatprep.subr.mxu0 0.0
        %3863 = vmatpush1.msra.mxu0 0.0
        %3864 = vmatprep.subr.mxu0 0.0
        %3865 = vmatpush1.msra.mxu0 0.0
        %3866 = vmatprep.subr.mxu0 0.0
        %3867 = vmatpush1.msra.mxu0 0.0
        %3868 = vmatprep.subr.mxu0 0.0
        %3869 = vmatpush1.msra.mxu0 0.0
        %3870 = vmatprep.subr.mxu0 0.0
        %3871 = vmatpush1.msra.mxu0 0.0
        %3872 = vmatprep.subr.mxu0 0.0
        %3873 = vmatpush1.msra.mxu0 0.0
        %3874 = vmatprep.subr.mxu0 0.0
        %3875 = vmatpush1.msra.mxu0 0.0
        %3876 = vmatprep.subr.mxu0 0.0
        %3877 = vmatpush1.msra.mxu0 0.0
        %3878 = vmatprep.subr.mxu0 0.0
        %3879 = vmatpush1.msra.mxu0 0.0
        %3880 = vmatprep.subr.mxu0 0.0
        %3881 = vmatpush1.msra.mxu0 0.0
        %3882 = vmatprep.subr.mxu0 0.0
        %3883 = vmatpush1.msra.mxu0 0.0
        %3884 = vmatprep.subr.mxu0 0.0
        %3885 = vmatpush1.msra.mxu0 0.0
        %3886 = vmatprep.subr.mxu0 0.0
        %3887 = vmatpush1.msra.mxu0 0.0
        %3888 = vmatprep.subr.mxu0 0.0
        %3889 = vmatpush1.msra.mxu0 0.0
        %3890 = vmatprep.mubr.f32.mxu0 0.0
        %3891 = vmatmul.mubr.f32.gmra.mrb[0].mxu0 %v3731
        %v3892 = vpop.f32.mrb[0].mxu0
        %v3893 = vadd.f32 0.0, %v3892
        %v3894 = vpop.f32.mrb[0].mxu0
        %3895 = vmatprep.mubr.f32.mxu0 0.0
        %3896 = vmatmul.mubr.f32.gmra.mrb[0].mxu0 %v3734
        %v3897 = vpop.f32.mrb[0].mxu0
        %v3898 = vadd.f32 0.0, %v3897
        %v3899 = vpop.f32.mrb[0].mxu0
        %3900 = vmatprep.mubr.f32.mxu0 0.0
        %3901 = vmatmul.mubr.f32.gmra.mrb[0].mxu0 %v3737
        %v3902 = vpop.f32.mrb[0].mxu0
        %v3903 = vadd.f32 0.0, %v3902
        %v3904 = vpop.f32.mrb[0].mxu0
        %3905 = vmatprep.mubr.f32.mxu0 0.0
        %3906 = vmatmul.mubr.f32.gmra.mrb[0].mxu0 %v3740
        %v3907 = vpop.f32.mrb[0].mxu0
        %v3908 = vadd.f32 0.0, %v3907
        %v3909 = vpop.f32.mrb[0].mxu0
        %3910 = vmatprep.mubr.f32.mxu0 0.0
        %3911 = vmatmul.mubr.f32.gmra.mrb[0].mxu0 %v3743
        %v3912 = vpop.f32.mrb[0].mxu0
        %v3913 = vadd.f32 0.0, %v3912
        %v3914 = vpop.f32.mrb[0].mxu0
        %3915 = vmatprep.mubr.f32.mxu0 0.0
        %3916 = vmatmul.mubr.f32.gmra.mrb[0].mxu0 %v3746
        %v3917 = vpop.f32.mrb[0].mxu0
        %v3918 = vadd.f32 0.0, %v3917
        %v3919 = vpop.f32.mrb[0].mxu0
        %3920 = vmatprep.mubr.f32.mxu0 0.0
        %3921 = vmatmul.mubr.f32.gmra.mrb[0].mxu0 %v3749
        %v3922 = vpop.f32.mrb[0].mxu0
        %v3923 = vadd.f32 0.0, %v3922
        %v3924 = vpop.f32.mrb[0].mxu0
        %3925 = vmatprep.mubr.f32.mxu0 0.0
        %3926 = vmatmul.mubr.f32.gmra.mrb[0].mxu0 %v3752
        %v3927 = vpop.f32.mrb[0].mxu0
        %v3928 = vadd.f32 0.0, %v3927
        %v3929 = vpop.f32.mrb[0].mxu0
        %3930 = vmatprep.mubr.f32.mxu0 0.0
        %3931 = vmatmul.mubr.f32.gmra.mrb[0].mxu0 %v3755
        %v3932 = vpop.f32.mrb[0].mxu0
        %v3933 = vadd.f32 0.0, %v3932
        %v3934 = vpop.f32.mrb[0].mxu0
        %3935 = vmatprep.mubr.f32.mxu0 0.0
        %3936 = vmatmul.mubr.f32.gmra.mrb[0].mxu0 %v3758
        %v3937 = vpop.f32.mrb[0].mxu0
        %v3938 = vadd.f32 0.0, %v3937
        %v3939 = vpop.f32.mrb[0].mxu0
        %3940 = vmatprep.mubr.f32.mxu0 0.0
        %3941 = vmatmul.mubr.f32.gmra.mrb[0].mxu0 %v3761
        %v3942 = vpop.f32.mrb[0].mxu0
        %v3943 = vadd.f32 0.0, %v3942
        %v3944 = vpop.f32.mrb[0].mxu0
        %3945 = vmatprep.mubr.f32.mxu0 0.0
        %3946 = vmatmul.mubr.f32.gmra.mrb[0].mxu0 %v3764
        %v3947 = vpop.f32.mrb[0].mxu0
        %v3948 = vadd.f32 0.0, %v3947
        %v3949 = vpop.f32.mrb[0].mxu0
        %3950 = vmatprep.mubr.f32.mxu0 0.0
        %3951 = vmatmul.mubr.f32.gmra.mrb[0].mxu0 %v3767
        %v3952 = vpop.f32.mrb[0].mxu0
        %v3953 = vadd.f32 0.0, %v3952
        %v3954 = vpop.f32.mrb[0].mxu0
        %3955 = vmatprep.mubr.f32.mxu0 0.0
        %3956 = vmatmul.mubr.f32.gmra.mrb[0].mxu0 %v3770
        %v3957 = vpop.f32.mrb[0].mxu0
        %v3958 = vadd.f32 0.0, %v3957
        %v3959 = vpop.f32.mrb[0].mxu0
        %3960 = vmatprep.mubr.f32.mxu0 0.0
        %3961 = vmatmul.mubr.f32.gmra.mrb[0].mxu0 %v3773
        %v3962 = vpop.f32.mrb[0].mxu0
        %v3963 = vadd.f32 0.0, %v3962
        %v3964 = vpop.f32.mrb[0].mxu0
        %3965 = vmatprep.mubr.f32.mxu0 0.0
        %3966 = vmatmul.mubr.f32.gmra.mrb[0].mxu0 %v3776
        %v3967 = vpop.f32.mrb[0].mxu0
        %v3968 = vadd.f32 0.0, %v3967
        %v3969 = vpop.f32.mrb[0].mxu0
        %3970 = vmatprep.mubr.f32.mxu0 0.0
        %3971 = vmatmul.mubr.f32.gmra.mrb[0].mxu0 %v3779
        %v3972 = vpop.f32.mrb[0].mxu0
        %v3973 = vadd.f32 0.0, %v3972
        %v3974 = vpop.f32.mrb[0].mxu0
        %3975 = vmatprep.mubr.f32.mxu0 0.0
        %3976 = vmatmul.mubr.f32.gmra.mrb[0].mxu0 %v3782
        %v3977 = vpop.f32.mrb[0].mxu0
        %v3978 = vadd.f32 0.0, %v3977
        %v3979 = vpop.f32.mrb[0].mxu0
        %3980 = vmatprep.mubr.f32.mxu0 0.0
        %3981 = vmatmul.mubr.f32.gmra.mrb[0].mxu0 %v3785
        %v3982 = vpop.f32.mrb[0].mxu0
        %v3983 = vadd.f32 0.0, %v3982
        %v3984 = vpop.f32.mrb[0].mxu0
        %3985 = vmatprep.mubr.f32.mxu0 0.0
        %3986 = vmatmul.mubr.f32.gmra.mrb[0].mxu0 %v3788
        %v3987 = vpop.f32.mrb[0].mxu0
        %v3988 = vadd.f32 0.0, %v3987
        %v3989 = vpop.f32.mrb[0].mxu0
        %3990 = vmatprep.mubr.f32.mxu0 0.0
        %3991 = vmatmul.mubr.f32.gmra.mrb[0].mxu0 %v3791
        %v3992 = vpop.f32.mrb[0].mxu0
        %v3993 = vadd.f32 0.0, %v3992
        %v3994 = vpop.f32.mrb[0].mxu0
        %3995 = vmatprep.mubr.f32.mxu0 0.0
        %3996 = vmatmul.mubr.f32.gmra.mrb[0].mxu0 %v3794
        %v3997 = vpop.f32.mrb[0].mxu0
        %v3998 = vadd.f32 0.0, %v3997
        %v3999 = vpop.f32.mrb[0].mxu0
        %4000 = vmatprep.mubr.f32.mxu0 0.0
        %4001 = vmatmul.mubr.f32.gmra.mrb[0].mxu0 %v3797
        %v4002 = vpop.f32.mrb[0].mxu0
        %v4003 = vadd.f32 0.0, %v4002
        %v4004 = vpop.f32.mrb[0].mxu0
        %4005 = vmatprep.mubr.f32.mxu0 0.0
        %4006 = vmatmul.mubr.f32.gmra.mrb[0].mxu0 %v3800
        %v4007 = vpop.f32.mrb[0].mxu0
        %v4008 = vadd.f32 0.0, %v4007
        %v4009 = vpop.f32.mrb[0].mxu0
        %4010 = vmatprep.mubr.f32.mxu0 0.0
        %4011 = vmatmul.mubr.f32.gmra.mrb[0].mxu0 %v3803
        %v4012 = vpop.f32.mrb[0].mxu0
        %v4013 = vadd.f32 0.0, %v4012
        %v4014 = vpop.f32.mrb[0].mxu0
        %4015 = vmatprep.mubr.f32.mxu0 0.0
        %4016 = vmatmul.mubr.f32.gmra.mrb[0].mxu0 %v3806
        %v4017 = vpop.f32.mrb[0].mxu0
        %v4018 = vadd.f32 0.0, %v4017
        %v4019 = vpop.f32.mrb[0].mxu0
        %4020 = vmatprep.mubr.f32.mxu0 0.0
        %4021 = vmatmul.mubr.f32.gmra.mrb[0].mxu0 %v3809
        %v4022 = vpop.f32.mrb[0].mxu0
        %v4023 = vadd.f32 0.0, %v4022
        %v4024 = vpop.f32.mrb[0].mxu0
        %4025 = vmatprep.mubr.f32.mxu0 0.0
        %4026 = vmatmul.mubr.f32.gmra.mrb[0].mxu0 %v3812
        %v4027 = vpop.f32.mrb[0].mxu0
        %v4028 = vadd.f32 0.0, %v4027
        %v4029 = vpop.f32.mrb[0].mxu0
        %4030 = vmatprep.mubr.f32.mxu0 0.0
        %4031 = vmatmul.mubr.f32.gmra.mrb[0].mxu0 %v3815
        %v4032 = vpop.f32.mrb[0].mxu0
        %v4033 = vadd.f32 0.0, %v4032
        %v4034 = vpop.f32.mrb[0].mxu0
        %4035 = vmatprep.mubr.f32.mxu0 0.0
        %4036 = vmatmul.mubr.f32.gmra.mrb[0].mxu0 %v3818
        %v4037 = vpop.f32.mrb[0].mxu0
        %v4038 = vadd.f32 0.0, %v4037
        %v4039 = vpop.f32.mrb[0].mxu0
        %4040 = vmatprep.mubr.f32.mxu0 0.0
        %4041 = vmatmul.mubr.f32.gmra.mrb[0].mxu0 %v3821
        %v4042 = vpop.f32.mrb[0].mxu0
        %v4043 = vadd.f32 0.0, %v4042
        %v4044 = vpop.f32.mrb[0].mxu0
        %4045 = vmatprep.mubr.f32.mxu0 0.0
        %4046 = vmatmul.mubr.f32.gmra.mrb[0].mxu0 %v3824
        %v4047 = vpop.f32.mrb[0].mxu0
        %v4048 = vadd.f32 0.0, %v4047
        %v4049 = vpop.f32.mrb[0].mxu0
        %4050 = vdwg.mxu0
        %v4051 = vadd.f32 %v3658, %v3893
        %v4052 = vadd.f32 %v3659, %v3898
        %v4053 = vadd.f32 %v3660, %v3903
        %v4054 = vadd.f32 %v3661, %v3908
        %v4055 = vadd.f32 %v3662, %v3913
        %v4056 = vadd.f32 %v3663, %v3918
        %v4057 = vadd.f32 %v3664, %v3923
        %v4058 = vadd.f32 %v3665, %v3928
        %v4059 = vadd.f32 %v3666, %v3933
        %v4060 = vadd.f32 %v3667, %v3938
        %v4061 = vadd.f32 %v3668, %v3943
        %v4062 = vadd.f32 %v3669, %v3948
        %v4063 = vadd.f32 %v3670, %v3953
        %v4064 = vadd.f32 %v3671, %v3958
        %v4065 = vadd.f32 %v3672, %v3963
        %v4066 = vadd.f32 %v3673, %v3968
        %v4067 = vadd.f32 %v3674, %v3973
        %v4068 = vadd.f32 %v3675, %v3978
        %v4069 = vadd.f32 %v3676, %v3983
        %v4070 = vadd.f32 %v3677, %v3988
        %v4071 = vadd.f32 %v3678, %v3993
        %v4072 = vadd.f32 %v3679, %v3998
        %v4073 = vadd.f32 %v3680, %v4003
        %v4074 = vadd.f32 %v3681, %v4008
        %v4075 = vadd.f32 %v3682, %v4013
        %v4076 = vadd.f32 %v3683, %v4018
        %v4077 = vadd.f32 %v3684, %v4023
        %v4078 = vadd.f32 %v3685, %v4028
        %v4079 = vadd.f32 %v3686, %v4033
        %v4080 = vadd.f32 %v3687, %v4038
        %v4081 = vadd.f32 %v3688, %v4043
        %v4082 = vadd.f32 %v3689, %v4048
        %v4083 = vld [vmem:[%s3296 + $0x9] sm:$0xff]
        %v4084 = vld [vmem:[%s3296 + $0x11] sm:$0xff]
        %v4085 = vld [vmem:[%s3296 + $0x29] sm:$0xff]
        %v4086 = vld [vmem:[%s3296 + $0x31] sm:$0xff]
        %v4087 = vld [vmem:[%s3296 + $0x49] sm:$0xff]
        %v4088 = vld [vmem:[%s3296 + $0x51] sm:$0xff]
        %v4089 = vld [vmem:[%s3296 + $0x69] sm:$0xff]
        %v4090 = vld [vmem:[%s3296 + $0x71] sm:$0xff]
        %v4091 = vld [vmem:[%s3296 + $0x89] sm:$0xff]
        %v4092 = vld [vmem:[%s3296 + $0x91] sm:$0xff]
        %v4093 = vld [vmem:[%s3296 + $0xa9] sm:$0xff]
        %v4094 = vld [vmem:[%s3296 + $0xb1] sm:$0xff]
        %v4095 = vld [vmem:[%s3296 + $0xc9] sm:$0xff]
        %v4096 = vld [vmem:[%s3296 + $0xd1] sm:$0xff]
        %v4097 = vld [vmem:[%s3296 + $0xe9] sm:$0xff]
        %v4098 = vld [vmem:[%s3296 + $0xf1] sm:$0xff]
        %v4099 = vld [vmem:[%s3296 + $0x109] sm:$0xff]
        %v4100 = vld [vmem:[%s3296 + $0x111] sm:$0xff]
        %v4101 = vld [vmem:[%s3296 + $0x129] sm:$0xff]
        %v4102 = vld [vmem:[%s3296 + $0x131] sm:$0xff]
        %v4103 = vld [vmem:[%s3296 + $0x149] sm:$0xff]
        %v4104 = vld [vmem:[%s3296 + $0x151] sm:$0xff]
        %v4105 = vld [vmem:[%s3296 + $0x169] sm:$0xff]
        %v4106 = vld [vmem:[%s3296 + $0x171] sm:$0xff]
        %v4107 = vld [vmem:[%s3296 + $0x189] sm:$0xff]
        %v4108 = vld [vmem:[%s3296 + $0x191] sm:$0xff]
        %v4109 = vld [vmem:[%s3296 + $0x1a9] sm:$0xff]
        %v4110 = vld [vmem:[%s3296 + $0x1b1] sm:$0xff]
        %v4111 = vld [vmem:[%s3296 + $0x1c9] sm:$0xff]
        %v4112 = vld [vmem:[%s3296 + $0x1d1] sm:$0xff]
        %v4113 = vld [vmem:[%s3296 + $0x1e9] sm:$0xff]
        %v4114 = vld [vmem:[%s3296 + $0x1f1] sm:$0xff]
        %v4115 = vld [vmem:[%s5 + $0x200] sm:$0xff]
        %v4116 = vld [vmem:[%s5 + $0x208] sm:$0xff]
        %v4117 = vld [vmem:[%s5 + $0x210] sm:$0xff]
        %v4118 = vld [vmem:[%s5 + $0x218] sm:$0xff]
        %v4119 = vld [vmem:[%s5 + $0x220] sm:$0xff]
        %v4120 = vld [vmem:[%s5 + $0x228] sm:$0xff]
        %v4121 = vld [vmem:[%s5 + $0x230] sm:$0xff]
        %v4122 = vld [vmem:[%s5 + $0x238] sm:$0xff]
        %v4124 = vsel %vm542, %v4083, 0
        %v4127 = vsel %vm542, %v4084, 0
        %v4130 = vsel %vm542, %v4085, 0
        %v4133 = vsel %vm542, %v4086, 0
        %v4136 = vsel %vm542, %v4087, 0
        %v4139 = vsel %vm542, %v4088, 0
        %v4142 = vsel %vm542, %v4089, 0
        %v4145 = vsel %vm542, %v4090, 0
        %v4148 = vsel %vm542, %v4091, 0
        %v4151 = vsel %vm542, %v4092, 0
        %v4154 = vsel %vm542, %v4093, 0
        %v4157 = vsel %vm542, %v4094, 0
        %v4160 = vsel %vm542, %v4095, 0
        %v4163 = vsel %vm542, %v4096, 0
        %v4166 = vsel %vm542, %v4097, 0
        %v4169 = vsel %vm542, %v4098, 0
        %v4172 = vsel %vm542, %v4099, 0
        %v4175 = vsel %vm542, %v4100, 0
        %v4178 = vsel %vm542, %v4101, 0
        %v4181 = vsel %vm542, %v4102, 0
        %v4184 = vsel %vm542, %v4103, 0
        %v4187 = vsel %vm542, %v4104, 0
        %v4190 = vsel %vm542, %v4105, 0
        %v4193 = vsel %vm542, %v4106, 0
        %v4196 = vsel %vm542, %v4107, 0
        %v4199 = vsel %vm542, %v4108, 0
        %v4202 = vsel %vm542, %v4109, 0
        %v4205 = vsel %vm542, %v4110, 0
        %v4208 = vsel %vm542, %v4111, 0
        %v4211 = vsel %vm542, %v4112, 0
        %v4214 = vsel %vm542, %v4113, 0
        %v4217 = vsel %vm542, %v4114, 0
        %4219 = vmatprep.subr.mxu0 0.0
        %4220 = vmatpush1.msra.mxu0 %v4115
        %4221 = vmatprep.subr.mxu0 0.0
        %4222 = vmatpush1.msra.mxu0 %v4116
        %4223 = vmatprep.subr.mxu0 0.0
        %4224 = vmatpush1.msra.mxu0 %v4117
        %4225 = vmatprep.subr.mxu0 0.0
        %4226 = vmatpush1.msra.mxu0 %v4118
        %4227 = vmatprep.subr.mxu0 0.0
        %4228 = vmatpush1.msra.mxu0 %v4119
        %4229 = vmatprep.subr.mxu0 0.0
        %4230 = vmatpush1.msra.mxu0 %v4120
        %4231 = vmatprep.subr.mxu0 0.0
        %4232 = vmatpush1.msra.mxu0 %v4121
        %4233 = vmatprep.subr.mxu0 0.0
        %4234 = vmatpush1.msra.mxu0 %v4122
        %4235 = vmatprep.subr.mxu0 0.0
        %4236 = vmatpush1.msra.mxu0 0.0
        %4237 = vmatprep.subr.mxu0 0.0
        %4238 = vmatpush1.msra.mxu0 0.0
        %4239 = vmatprep.subr.mxu0 0.0
        %4240 = vmatpush1.msra.mxu0 0.0
        %4241 = vmatprep.subr.mxu0 0.0
        %4242 = vmatpush1.msra.mxu0 0.0
        %4243 = vmatprep.subr.mxu0 0.0
        %4244 = vmatpush1.msra.mxu0 0.0
        %4245 = vmatprep.subr.mxu0 0.0
        %4246 = vmatpush1.msra.mxu0 0.0
        %4247 = vmatprep.subr.mxu0 0.0
        %4248 = vmatpush1.msra.mxu0 0.0
        %4249 = vmatprep.subr.mxu0 0.0
        %4250 = vmatpush1.msra.mxu0 0.0
        %4251 = vmatprep.subr.mxu0 0.0
        %4252 = vmatpush1.msra.mxu0 0.0
        %4253 = vmatprep.subr.mxu0 0.0
        %4254 = vmatpush1.msra.mxu0 0.0
        %4255 = vmatprep.subr.mxu0 0.0
        %4256 = vmatpush1.msra.mxu0 0.0
        %4257 = vmatprep.subr.mxu0 0.0
        %4258 = vmatpush1.msra.mxu0 0.0
        %4259 = vmatprep.subr.mxu0 0.0
        %4260 = vmatpush1.msra.mxu0 0.0
        %4261 = vmatprep.subr.mxu0 0.0
        %4262 = vmatpush1.msra.mxu0 0.0
        %4263 = vmatprep.subr.mxu0 0.0
        %4264 = vmatpush1.msra.mxu0 0.0
        %4265 = vmatprep.subr.mxu0 0.0
        %4266 = vmatpush1.msra.mxu0 0.0
        %4267 = vmatprep.subr.mxu0 0.0
        %4268 = vmatpush1.msra.mxu0 0.0
        %4269 = vmatprep.subr.mxu0 0.0
        %4270 = vmatpush1.msra.mxu0 0.0
        %4271 = vmatprep.subr.mxu0 0.0
        %4272 = vmatpush1.msra.mxu0 0.0
        %4273 = vmatprep.subr.mxu0 0.0
        %4274 = vmatpush1.msra.mxu0 0.0
        %4275 = vmatprep.subr.mxu0 0.0
        %4276 = vmatpush1.msra.mxu0 0.0
        %4277 = vmatprep.subr.mxu0 0.0
        %4278 = vmatpush1.msra.mxu0 0.0
        %4279 = vmatprep.subr.mxu0 0.0
        %4280 = vmatpush1.msra.mxu0 0.0
        %4281 = vmatprep.subr.mxu0 0.0
        %4282 = vmatpush1.msra.mxu0 0.0
        %4283 = vmatprep.mubr.f32.mxu0 0.0
        %4284 = vmatmul.mubr.f32.gmra.mrb[0].mxu0 %v4124
        %v4285 = vpop.f32.mrb[0].mxu0
        %v4286 = vadd.f32 0.0, %v4285
        %v4287 = vpop.f32.mrb[0].mxu0
        %4288 = vmatprep.mubr.f32.mxu0 0.0
        %4289 = vmatmul.mubr.f32.gmra.mrb[0].mxu0 %v4127
        %v4290 = vpop.f32.mrb[0].mxu0
        %v4291 = vadd.f32 0.0, %v4290
        %v4292 = vpop.f32.mrb[0].mxu0
        %4293 = vmatprep.mubr.f32.mxu0 0.0
        %4294 = vmatmul.mubr.f32.gmra.mrb[0].mxu0 %v4130
        %v4295 = vpop.f32.mrb[0].mxu0
        %v4296 = vadd.f32 0.0, %v4295
        %v4297 = vpop.f32.mrb[0].mxu0
        %4298 = vmatprep.mubr.f32.mxu0 0.0
        %4299 = vmatmul.mubr.f32.gmra.mrb[0].mxu0 %v4133
        %v4300 = vpop.f32.mrb[0].mxu0
        %v4301 = vadd.f32 0.0, %v4300
        %v4302 = vpop.f32.mrb[0].mxu0
        %4303 = vmatprep.mubr.f32.mxu0 0.0
        %4304 = vmatmul.mubr.f32.gmra.mrb[0].mxu0 %v4136
        %v4305 = vpop.f32.mrb[0].mxu0
        %v4306 = vadd.f32 0.0, %v4305
        %v4307 = vpop.f32.mrb[0].mxu0
        %4308 = vmatprep.mubr.f32.mxu0 0.0
        %4309 = vmatmul.mubr.f32.gmra.mrb[0].mxu0 %v4139
        %v4310 = vpop.f32.mrb[0].mxu0
        %v4311 = vadd.f32 0.0, %v4310
        %v4312 = vpop.f32.mrb[0].mxu0
        %4313 = vmatprep.mubr.f32.mxu0 0.0
        %4314 = vmatmul.mubr.f32.gmra.mrb[0].mxu0 %v4142
        %v4315 = vpop.f32.mrb[0].mxu0
        %v4316 = vadd.f32 0.0, %v4315
        %v4317 = vpop.f32.mrb[0].mxu0
        %4318 = vmatprep.mubr.f32.mxu0 0.0
        %4319 = vmatmul.mubr.f32.gmra.mrb[0].mxu0 %v4145
        %v4320 = vpop.f32.mrb[0].mxu0
        %v4321 = vadd.f32 0.0, %v4320
        %v4322 = vpop.f32.mrb[0].mxu0
        %4323 = vmatprep.mubr.f32.mxu0 0.0
        %4324 = vmatmul.mubr.f32.gmra.mrb[0].mxu0 %v4148
        %v4325 = vpop.f32.mrb[0].mxu0
        %v4326 = vadd.f32 0.0, %v4325
        %v4327 = vpop.f32.mrb[0].mxu0
        %4328 = vmatprep.mubr.f32.mxu0 0.0
        %4329 = vmatmul.mubr.f32.gmra.mrb[0].mxu0 %v4151
        %v4330 = vpop.f32.mrb[0].mxu0
        %v4331 = vadd.f32 0.0, %v4330
        %v4332 = vpop.f32.mrb[0].mxu0
        %4333 = vmatprep.mubr.f32.mxu0 0.0
        %4334 = vmatmul.mubr.f32.gmra.mrb[0].mxu0 %v4154
        %v4335 = vpop.f32.mrb[0].mxu0
        %v4336 = vadd.f32 0.0, %v4335
        %v4337 = vpop.f32.mrb[0].mxu0
        %4338 = vmatprep.mubr.f32.mxu0 0.0
        %4339 = vmatmul.mubr.f32.gmra.mrb[0].mxu0 %v4157
        %v4340 = vpop.f32.mrb[0].mxu0
        %v4341 = vadd.f32 0.0, %v4340
        %v4342 = vpop.f32.mrb[0].mxu0
        %4343 = vmatprep.mubr.f32.mxu0 0.0
        %4344 = vmatmul.mubr.f32.gmra.mrb[0].mxu0 %v4160
        %v4345 = vpop.f32.mrb[0].mxu0
        %v4346 = vadd.f32 0.0, %v4345
        %v4347 = vpop.f32.mrb[0].mxu0
        %4348 = vmatprep.mubr.f32.mxu0 0.0
        %4349 = vmatmul.mubr.f32.gmra.mrb[0].mxu0 %v4163
        %v4350 = vpop.f32.mrb[0].mxu0
        %v4351 = vadd.f32 0.0, %v4350
        %v4352 = vpop.f32.mrb[0].mxu0
        %4353 = vmatprep.mubr.f32.mxu0 0.0
        %4354 = vmatmul.mubr.f32.gmra.mrb[0].mxu0 %v4166
        %v4355 = vpop.f32.mrb[0].mxu0
        %v4356 = vadd.f32 0.0, %v4355
        %v4357 = vpop.f32.mrb[0].mxu0
        %4358 = vmatprep.mubr.f32.mxu0 0.0
        %4359 = vmatmul.mubr.f32.gmra.mrb[0].mxu0 %v4169
        %v4360 = vpop.f32.mrb[0].mxu0
        %v4361 = vadd.f32 0.0, %v4360
        %v4362 = vpop.f32.mrb[0].mxu0
        %4363 = vmatprep.mubr.f32.mxu0 0.0
        %4364 = vmatmul.mubr.f32.gmra.mrb[0].mxu0 %v4172
        %v4365 = vpop.f32.mrb[0].mxu0
        %v4366 = vadd.f32 0.0, %v4365
        %v4367 = vpop.f32.mrb[0].mxu0
        %4368 = vmatprep.mubr.f32.mxu0 0.0
        %4369 = vmatmul.mubr.f32.gmra.mrb[0].mxu0 %v4175
        %v4370 = vpop.f32.mrb[0].mxu0
        %v4371 = vadd.f32 0.0, %v4370
        %v4372 = vpop.f32.mrb[0].mxu0
        %4373 = vmatprep.mubr.f32.mxu0 0.0
        %4374 = vmatmul.mubr.f32.gmra.mrb[0].mxu0 %v4178
        %v4375 = vpop.f32.mrb[0].mxu0
        %v4376 = vadd.f32 0.0, %v4375
        %v4377 = vpop.f32.mrb[0].mxu0
        %4378 = vmatprep.mubr.f32.mxu0 0.0
        %4379 = vmatmul.mubr.f32.gmra.mrb[0].mxu0 %v4181
        %v4380 = vpop.f32.mrb[0].mxu0
        %v4381 = vadd.f32 0.0, %v4380
        %v4382 = vpop.f32.mrb[0].mxu0
        %4383 = vmatprep.mubr.f32.mxu0 0.0
        %4384 = vmatmul.mubr.f32.gmra.mrb[0].mxu0 %v4184
        %v4385 = vpop.f32.mrb[0].mxu0
        %v4386 = vadd.f32 0.0, %v4385
        %v4387 = vpop.f32.mrb[0].mxu0
        %4388 = vmatprep.mubr.f32.mxu0 0.0
        %4389 = vmatmul.mubr.f32.gmra.mrb[0].mxu0 %v4187
        %v4390 = vpop.f32.mrb[0].mxu0
        %v4391 = vadd.f32 0.0, %v4390
        %v4392 = vpop.f32.mrb[0].mxu0
        %4393 = vmatprep.mubr.f32.mxu0 0.0
        %4394 = vmatmul.mubr.f32.gmra.mrb[0].mxu0 %v4190
        %v4395 = vpop.f32.mrb[0].mxu0
        %v4396 = vadd.f32 0.0, %v4395
        %v4397 = vpop.f32.mrb[0].mxu0
        %4398 = vmatprep.mubr.f32.mxu0 0.0
        %4399 = vmatmul.mubr.f32.gmra.mrb[0].mxu0 %v4193
        %v4400 = vpop.f32.mrb[0].mxu0
        %v4401 = vadd.f32 0.0, %v4400
        %v4402 = vpop.f32.mrb[0].mxu0
        %4403 = vmatprep.mubr.f32.mxu0 0.0
        %4404 = vmatmul.mubr.f32.gmra.mrb[0].mxu0 %v4196
        %v4405 = vpop.f32.mrb[0].mxu0
        %v4406 = vadd.f32 0.0, %v4405
        %v4407 = vpop.f32.mrb[0].mxu0
        %4408 = vmatprep.mubr.f32.mxu0 0.0
        %4409 = vmatmul.mubr.f32.gmra.mrb[0].mxu0 %v4199
        %v4410 = vpop.f32.mrb[0].mxu0
        %v4411 = vadd.f32 0.0, %v4410
        %v4412 = vpop.f32.mrb[0].mxu0
        %4413 = vmatprep.mubr.f32.mxu0 0.0
        %4414 = vmatmul.mubr.f32.gmra.mrb[0].mxu0 %v4202
        %v4415 = vpop.f32.mrb[0].mxu0
        %v4416 = vadd.f32 0.0, %v4415
        %v4417 = vpop.f32.mrb[0].mxu0
        %4418 = vmatprep.mubr.f32.mxu0 0.0
        %4419 = vmatmul.mubr.f32.gmra.mrb[0].mxu0 %v4205
        %v4420 = vpop.f32.mrb[0].mxu0
        %v4421 = vadd.f32 0.0, %v4420
        %v4422 = vpop.f32.mrb[0].mxu0
        %4423 = vmatprep.mubr.f32.mxu0 0.0
        %4424 = vmatmul.mubr.f32.gmra.mrb[0].mxu0 %v4208
        %v4425 = vpop.f32.mrb[0].mxu0
        %v4426 = vadd.f32 0.0, %v4425
        %v4427 = vpop.f32.mrb[0].mxu0
        %4428 = vmatprep.mubr.f32.mxu0 0.0
        %4429 = vmatmul.mubr.f32.gmra.mrb[0].mxu0 %v4211
        %v4430 = vpop.f32.mrb[0].mxu0
        %v4431 = vadd.f32 0.0, %v4430
        %v4432 = vpop.f32.mrb[0].mxu0
        %4433 = vmatprep.mubr.f32.mxu0 0.0
        %4434 = vmatmul.mubr.f32.gmra.mrb[0].mxu0 %v4214
        %v4435 = vpop.f32.mrb[0].mxu0
        %v4436 = vadd.f32 0.0, %v4435
        %v4437 = vpop.f32.mrb[0].mxu0
        %4438 = vmatprep.mubr.f32.mxu0 0.0
        %4439 = vmatmul.mubr.f32.gmra.mrb[0].mxu0 %v4217
        %v4440 = vpop.f32.mrb[0].mxu0
        %v4441 = vadd.f32 0.0, %v4440
        %v4442 = vpop.f32.mrb[0].mxu0
        %4443 = vdwg.mxu0
        %v4444 = vadd.f32 %v4051, %v4286
        %v4445 = vadd.f32 %v4052, %v4291
        %v4446 = vadd.f32 %v4053, %v4296
        %v4447 = vadd.f32 %v4054, %v4301
        %v4448 = vadd.f32 %v4055, %v4306
        %v4449 = vadd.f32 %v4056, %v4311
        %v4450 = vadd.f32 %v4057, %v4316
        %v4451 = vadd.f32 %v4058, %v4321
        %v4452 = vadd.f32 %v4059, %v4326
        %v4453 = vadd.f32 %v4060, %v4331
        %v4454 = vadd.f32 %v4061, %v4336
        %v4455 = vadd.f32 %v4062, %v4341
        %v4456 = vadd.f32 %v4063, %v4346
        %v4457 = vadd.f32 %v4064, %v4351
        %v4458 = vadd.f32 %v4065, %v4356
        %v4459 = vadd.f32 %v4066, %v4361
        %v4460 = vadd.f32 %v4067, %v4366
        %v4461 = vadd.f32 %v4068, %v4371
        %v4462 = vadd.f32 %v4069, %v4376
        %v4463 = vadd.f32 %v4070, %v4381
        %v4464 = vadd.f32 %v4071, %v4386
        %v4465 = vadd.f32 %v4072, %v4391
        %v4466 = vadd.f32 %v4073, %v4396
        %v4467 = vadd.f32 %v4074, %v4401
        %v4468 = vadd.f32 %v4075, %v4406
        %v4469 = vadd.f32 %v4076, %v4411
        %v4470 = vadd.f32 %v4077, %v4416
        %v4471 = vadd.f32 %v4078, %v4421
        %v4472 = vadd.f32 %v4079, %v4426
        %v4473 = vadd.f32 %v4080, %v4431
        %v4474 = vadd.f32 %v4081, %v4436
        %v4475 = vadd.f32 %v4082, %v4441
        %v4476 = vld [vmem:[%s6] sm:$0x1]
        %v4478 = vlaneseq
        %v4479 = vshrl.u32 %v4478, 7
        %v4480 = vsub.s32 0, %v4479
        %v4481 = vrot.slane %v4476, %v4480
        %v4483 = vadd.f32 %v4444, %v4481
        %v4484 = vadd.f32 %v4445, %v4481
        %v4485 = vadd.f32 %v4446, %v4481
        %v4486 = vadd.f32 %v4447, %v4481
        %v4487 = vadd.f32 %v4448, %v4481
        %v4488 = vadd.f32 %v4449, %v4481
        %v4489 = vadd.f32 %v4450, %v4481
        %v4490 = vadd.f32 %v4451, %v4481
        %v4491 = vadd.f32 %v4452, %v4481
        %v4492 = vadd.f32 %v4453, %v4481
        %v4493 = vadd.f32 %v4454, %v4481
        %v4494 = vadd.f32 %v4455, %v4481
        %v4495 = vadd.f32 %v4456, %v4481
        %v4496 = vadd.f32 %v4457, %v4481
        %v4497 = vadd.f32 %v4458, %v4481
        %v4498 = vadd.f32 %v4459, %v4481
        %v4499 = vadd.f32 %v4460, %v4481
        %v4500 = vadd.f32 %v4461, %v4481
        %v4501 = vadd.f32 %v4462, %v4481
        %v4502 = vadd.f32 %v4463, %v4481
        %v4503 = vadd.f32 %v4464, %v4481
        %v4504 = vadd.f32 %v4465, %v4481
        %v4505 = vadd.f32 %v4466, %v4481
        %v4506 = vadd.f32 %v4467, %v4481
        %v4507 = vadd.f32 %v4468, %v4481
        %v4508 = vadd.f32 %v4469, %v4481
        %v4509 = vadd.f32 %v4470, %v4481
        %v4510 = vadd.f32 %v4471, %v4481
        %v4511 = vadd.f32 %v4472, %v4481
        %v4512 = vadd.f32 %v4473, %v4481
        %v4513 = vadd.f32 %v4474, %v4481
        %v4514 = vadd.f32 %v4475, %v4481
        %v4515 = vmax.f32 %v4483, 0.0
        %v4516 = vmax.f32 %v4484, 0.0
        %v4517 = vmax.f32 %v4485, 0.0
        %v4518 = vmax.f32 %v4486, 0.0
        %v4519 = vmax.f32 %v4487, 0.0
        %v4520 = vmax.f32 %v4488, 0.0
        %v4521 = vmax.f32 %v4489, 0.0
        %v4522 = vmax.f32 %v4490, 0.0
        %v4523 = vmax.f32 %v4491, 0.0
        %v4524 = vmax.f32 %v4492, 0.0
        %v4525 = vmax.f32 %v4493, 0.0
        %v4526 = vmax.f32 %v4494, 0.0
        %v4527 = vmax.f32 %v4495, 0.0
        %v4528 = vmax.f32 %v4496, 0.0
        %v4529 = vmax.f32 %v4497, 0.0
        %v4530 = vmax.f32 %v4498, 0.0
        %v4531 = vmax.f32 %v4499, 0.0
        %v4532 = vmax.f32 %v4500, 0.0
        %v4533 = vmax.f32 %v4501, 0.0
        %v4534 = vmax.f32 %v4502, 0.0
        %v4535 = vmax.f32 %v4503, 0.0
        %v4536 = vmax.f32 %v4504, 0.0
        %v4537 = vmax.f32 %v4505, 0.0
        %v4538 = vmax.f32 %v4506, 0.0
        %v4539 = vmax.f32 %v4507, 0.0
        %v4540 = vmax.f32 %v4508, 0.0
        %v4541 = vmax.f32 %v4509, 0.0
        %v4542 = vmax.f32 %v4510, 0.0
        %v4543 = vmax.f32 %v4511, 0.0
        %v4544 = vmax.f32 %v4512, 0.0
        %v4545 = vmax.f32 %v4513, 0.0
        %v4546 = vmax.f32 %v4514, 0.0
        %v4547 = vld [vmem:[%s7] sm:$0xff]
        %v4548 = vld [vmem:[%s7 + $0x8] sm:$0xff]
        %v4549 = vld [vmem:[%s7 + $0x10] sm:$0xff]
        %v4550 = vld [vmem:[%s7 + $0x18] sm:$0xff]
        %v4551 = vld [vmem:[%s7 + $0x20] sm:$0xff]
        %v4552 = vld [vmem:[%s7 + $0x28] sm:$0xff]
        %v4553 = vld [vmem:[%s7 + $0x30] sm:$0xff]
        %v4554 = vld [vmem:[%s7 + $0x38] sm:$0xff]
        %v4555 = vld [vmem:[%s8] sm:$0x1]
        %v4557 = vlaneseq
        %v4558 = vshrl.u32 %v4557, 7
        %v4559 = vsub.s32 0, %v4558
        %v4560 = vrot.slane %v4555, %v4559
        %v4563 = vsel %vm542, %v4515, 0
        %v4566 = vsel %vm542, %v4516, 0
        %v4569 = vsel %vm542, %v4517, 0
        %v4572 = vsel %vm542, %v4518, 0
        %v4575 = vsel %vm542, %v4519, 0
        %v4578 = vsel %vm542, %v4520, 0
        %v4581 = vsel %vm542, %v4521, 0
        %v4584 = vsel %vm542, %v4522, 0
        %v4587 = vsel %vm542, %v4523, 0
        %v4590 = vsel %vm542, %v4524, 0
        %v4593 = vsel %vm542, %v4525, 0
        %v4596 = vsel %vm542, %v4526, 0
        %v4599 = vsel %vm542, %v4527, 0
        %v4602 = vsel %vm542, %v4528, 0
        %v4605 = vsel %vm542, %v4529, 0
        %v4608 = vsel %vm542, %v4530, 0
        %v4611 = vsel %vm542, %v4531, 0
        %v4614 = vsel %vm542, %v4532, 0
        %v4617 = vsel %vm542, %v4533, 0
        %v4620 = vsel %vm542, %v4534, 0
        %v4623 = vsel %vm542, %v4535, 0
        %v4626 = vsel %vm542, %v4536, 0
        %v4629 = vsel %vm542, %v4537, 0
        %v4632 = vsel %vm542, %v4538, 0
        %v4635 = vsel %vm542, %v4539, 0
        %v4638 = vsel %vm542, %v4540, 0
        %v4641 = vsel %vm542, %v4541, 0
        %v4644 = vsel %vm542, %v4542, 0
        %v4647 = vsel %vm542, %v4543, 0
        %v4650 = vsel %vm542, %v4544, 0
        %v4653 = vsel %vm542, %v4545, 0
        %v4656 = vsel %vm542, %v4546, 0
        %4658 = vmatprep.subr.mxu0 0.0
        %4659 = vmatpush1.msra.mxu0 %v4547
        %4660 = vmatprep.subr.mxu0 0.0
        %4661 = vmatpush1.msra.mxu0 %v4548
        %4662 = vmatprep.subr.mxu0 0.0
        %4663 = vmatpush1.msra.mxu0 %v4549
        %4664 = vmatprep.subr.mxu0 0.0
        %4665 = vmatpush1.msra.mxu0 %v4550
        %4666 = vmatprep.subr.mxu0 0.0
        %4667 = vmatpush1.msra.mxu0 %v4551
        %4668 = vmatprep.subr.mxu0 0.0
        %4669 = vmatpush1.msra.mxu0 %v4552
        %4670 = vmatprep.subr.mxu0 0.0
        %4671 = vmatpush1.msra.mxu0 %v4553
        %4672 = vmatprep.subr.mxu0 0.0
        %4673 = vmatpush1.msra.mxu0 %v4554
        %4674 = vmatprep.subr.mxu0 0.0
        %4675 = vmatpush1.msra.mxu0 0.0
        %4676 = vmatprep.subr.mxu0 0.0
        %4677 = vmatpush1.msra.mxu0 0.0
        %4678 = vmatprep.subr.mxu0 0.0
        %4679 = vmatpush1.msra.mxu0 0.0
        %4680 = vmatprep.subr.mxu0 0.0
        %4681 = vmatpush1.msra.mxu0 0.0
        %4682 = vmatprep.subr.mxu0 0.0
        %4683 = vmatpush1.msra.mxu0 0.0
        %4684 = vmatprep.subr.mxu0 0.0
        %4685 = vmatpush1.msra.mxu0 0.0
        %4686 = vmatprep.subr.mxu0 0.0
        %4687 = vmatpush1.msra.mxu0 0.0
        %4688 = vmatprep.subr.mxu0 0.0
        %4689 = vmatpush1.msra.mxu0 0.0
        %4690 = vmatprep.subr.mxu0 0.0
        %4691 = vmatpush1.msra.mxu0 0.0
        %4692 = vmatprep.subr.mxu0 0.0
        %4693 = vmatpush1.msra.mxu0 0.0
        %4694 = vmatprep.subr.mxu0 0.0
        %4695 = vmatpush1.msra.mxu0 0.0
        %4696 = vmatprep.subr.mxu0 0.0
        %4697 = vmatpush1.msra.mxu0 0.0
        %4698 = vmatprep.subr.mxu0 0.0
        %4699 = vmatpush1.msra.mxu0 0.0
        %4700 = vmatprep.subr.mxu0 0.0
        %4701 = vmatpush1.msra.mxu0 0.0
        %4702 = vmatprep.subr.mxu0 0.0
        %4703 = vmatpush1.msra.mxu0 0.0
        %4704 = vmatprep.subr.mxu0 0.0
        %4705 = vmatpush1.msra.mxu0 0.0
        %4706 = vmatprep.subr.mxu0 0.0
        %4707 = vmatpush1.msra.mxu0 0.0
        %4708 = vmatprep.subr.mxu0 0.0
        %4709 = vmatpush1.msra.mxu0 0.0
        %4710 = vmatprep.subr.mxu0 0.0
        %4711 = vmatpush1.msra.mxu0 0.0
        %4712 = vmatprep.subr.mxu0 0.0
        %4713 = vmatpush1.msra.mxu0 0.0
        %4714 = vmatprep.subr.mxu0 0.0
        %4715 = vmatpush1.msra.mxu0 0.0
        %4716 = vmatprep.subr.mxu0 0.0
        %4717 = vmatpush1.msra.mxu0 0.0
        %4718 = vmatprep.subr.mxu0 0.0
        %4719 = vmatpush1.msra.mxu0 0.0
        %4720 = vmatprep.subr.mxu0 0.0
        %4721 = vmatpush1.msra.mxu0 0.0
        %4722 = vmatprep.mubr.f32.mxu0 0.0
        %4723 = vmatmul.mubr.f32.gmra.mrb[0].mxu0 %v4563
        %v4724 = vpop.f32.mrb[0].mxu0
        %v4725 = vadd.f32 %v4560, %v4724
        %v4726 = vpop.f32.mrb[0].mxu0
        %4727 = vmatprep.mubr.f32.mxu0 0.0
        %4728 = vmatmul.mubr.f32.gmra.mrb[0].mxu0 %v4566
        %v4729 = vpop.f32.mrb[0].mxu0
        %v4730 = vadd.f32 %v4560, %v4729
        %v4731 = vpop.f32.mrb[0].mxu0
        %4732 = vmatprep.mubr.f32.mxu0 0.0
        %4733 = vmatmul.mubr.f32.gmra.mrb[0].mxu0 %v4569
        %v4734 = vpop.f32.mrb[0].mxu0
        %v4735 = vadd.f32 %v4560, %v4734
        %v4736 = vpop.f32.mrb[0].mxu0
        %4737 = vmatprep.mubr.f32.mxu0 0.0
        %4738 = vmatmul.mubr.f32.gmra.mrb[0].mxu0 %v4572
        %v4739 = vpop.f32.mrb[0].mxu0
        %v4740 = vadd.f32 %v4560, %v4739
        %v4741 = vpop.f32.mrb[0].mxu0
        %4742 = vmatprep.mubr.f32.mxu0 0.0
        %4743 = vmatmul.mubr.f32.gmra.mrb[0].mxu0 %v4575
        %v4744 = vpop.f32.mrb[0].mxu0
        %v4745 = vadd.f32 %v4560, %v4744
        %v4746 = vpop.f32.mrb[0].mxu0
        %4747 = vmatprep.mubr.f32.mxu0 0.0
        %4748 = vmatmul.mubr.f32.gmra.mrb[0].mxu0 %v4578
        %v4749 = vpop.f32.mrb[0].mxu0
        %v4750 = vadd.f32 %v4560, %v4749
        %v4751 = vpop.f32.mrb[0].mxu0
        %4752 = vmatprep.mubr.f32.mxu0 0.0
        %4753 = vmatmul.mubr.f32.gmra.mrb[0].mxu0 %v4581
        %v4754 = vpop.f32.mrb[0].mxu0
        %v4755 = vadd.f32 %v4560, %v4754
        %v4756 = vpop.f32.mrb[0].mxu0
        %4757 = vmatprep.mubr.f32.mxu0 0.0
        %4758 = vmatmul.mubr.f32.gmra.mrb[0].mxu0 %v4584
        %v4759 = vpop.f32.mrb[0].mxu0
        %v4760 = vadd.f32 %v4560, %v4759
        %v4761 = vpop.f32.mrb[0].mxu0
        %4762 = vmatprep.mubr.f32.mxu0 0.0
        %4763 = vmatmul.mubr.f32.gmra.mrb[0].mxu0 %v4587
        %v4764 = vpop.f32.mrb[0].mxu0
        %v4765 = vadd.f32 %v4560, %v4764
        %v4766 = vpop.f32.mrb[0].mxu0
        %4767 = vmatprep.mubr.f32.mxu0 0.0
        %4768 = vmatmul.mubr.f32.gmra.mrb[0].mxu0 %v4590
        %v4769 = vpop.f32.mrb[0].mxu0
        %v4770 = vadd.f32 %v4560, %v4769
        %v4771 = vpop.f32.mrb[0].mxu0
        %4772 = vmatprep.mubr.f32.mxu0 0.0
        %4773 = vmatmul.mubr.f32.gmra.mrb[0].mxu0 %v4593
        %v4774 = vpop.f32.mrb[0].mxu0
        %v4775 = vadd.f32 %v4560, %v4774
        %v4776 = vpop.f32.mrb[0].mxu0
        %4777 = vmatprep.mubr.f32.mxu0 0.0
        %4778 = vmatmul.mubr.f32.gmra.mrb[0].mxu0 %v4596
        %v4779 = vpop.f32.mrb[0].mxu0
        %v4780 = vadd.f32 %v4560, %v4779
        %v4781 = vpop.f32.mrb[0].mxu0
        %4782 = vmatprep.mubr.f32.mxu0 0.0
        %4783 = vmatmul.mubr.f32.gmra.mrb[0].mxu0 %v4599
        %v4784 = vpop.f32.mrb[0].mxu0
        %v4785 = vadd.f32 %v4560, %v4784
        %v4786 = vpop.f32.mrb[0].mxu0
        %4787 = vmatprep.mubr.f32.mxu0 0.0
        %4788 = vmatmul.mubr.f32.gmra.mrb[0].mxu0 %v4602
        %v4789 = vpop.f32.mrb[0].mxu0
        %v4790 = vadd.f32 %v4560, %v4789
        %v4791 = vpop.f32.mrb[0].mxu0
        %4792 = vmatprep.mubr.f32.mxu0 0.0
        %4793 = vmatmul.mubr.f32.gmra.mrb[0].mxu0 %v4605
        %v4794 = vpop.f32.mrb[0].mxu0
        %v4795 = vadd.f32 %v4560, %v4794
        %v4796 = vpop.f32.mrb[0].mxu0
        %4797 = vmatprep.mubr.f32.mxu0 0.0
        %4798 = vmatmul.mubr.f32.gmra.mrb[0].mxu0 %v4608
        %v4799 = vpop.f32.mrb[0].mxu0
        %v4800 = vadd.f32 %v4560, %v4799
        %v4801 = vpop.f32.mrb[0].mxu0
        %4802 = vmatprep.mubr.f32.mxu0 0.0
        %4803 = vmatmul.mubr.f32.gmra.mrb[0].mxu0 %v4611
        %v4804 = vpop.f32.mrb[0].mxu0
        %v4805 = vadd.f32 %v4560, %v4804
        %v4806 = vpop.f32.mrb[0].mxu0
        %4807 = vmatprep.mubr.f32.mxu0 0.0
        %4808 = vmatmul.mubr.f32.gmra.mrb[0].mxu0 %v4614
        %v4809 = vpop.f32.mrb[0].mxu0
        %v4810 = vadd.f32 %v4560, %v4809
        %v4811 = vpop.f32.mrb[0].mxu0
        %4812 = vmatprep.mubr.f32.mxu0 0.0
        %4813 = vmatmul.mubr.f32.gmra.mrb[0].mxu0 %v4617
        %v4814 = vpop.f32.mrb[0].mxu0
        %v4815 = vadd.f32 %v4560, %v4814
        %v4816 = vpop.f32.mrb[0].mxu0
        %4817 = vmatprep.mubr.f32.mxu0 0.0
        %4818 = vmatmul.mubr.f32.gmra.mrb[0].mxu0 %v4620
        %v4819 = vpop.f32.mrb[0].mxu0
        %v4820 = vadd.f32 %v4560, %v4819
        %v4821 = vpop.f32.mrb[0].mxu0
        %4822 = vmatprep.mubr.f32.mxu0 0.0
        %4823 = vmatmul.mubr.f32.gmra.mrb[0].mxu0 %v4623
        %v4824 = vpop.f32.mrb[0].mxu0
        %v4825 = vadd.f32 %v4560, %v4824
        %v4826 = vpop.f32.mrb[0].mxu0
        %4827 = vmatprep.mubr.f32.mxu0 0.0
        %4828 = vmatmul.mubr.f32.gmra.mrb[0].mxu0 %v4626
        %v4829 = vpop.f32.mrb[0].mxu0
        %v4830 = vadd.f32 %v4560, %v4829
        %v4831 = vpop.f32.mrb[0].mxu0
        %4832 = vmatprep.mubr.f32.mxu0 0.0
        %4833 = vmatmul.mubr.f32.gmra.mrb[0].mxu0 %v4629
        %v4834 = vpop.f32.mrb[0].mxu0
        %v4835 = vadd.f32 %v4560, %v4834
        %v4836 = vpop.f32.mrb[0].mxu0
        %4837 = vmatprep.mubr.f32.mxu0 0.0
        %4838 = vmatmul.mubr.f32.gmra.mrb[0].mxu0 %v4632
        %v4839 = vpop.f32.mrb[0].mxu0
        %v4840 = vadd.f32 %v4560, %v4839
        %v4841 = vpop.f32.mrb[0].mxu0
        %4842 = vmatprep.mubr.f32.mxu0 0.0
        %4843 = vmatmul.mubr.f32.gmra.mrb[0].mxu0 %v4635
        %v4844 = vpop.f32.mrb[0].mxu0
        %v4845 = vadd.f32 %v4560, %v4844
        %v4846 = vpop.f32.mrb[0].mxu0
        %4847 = vmatprep.mubr.f32.mxu0 0.0
        %4848 = vmatmul.mubr.f32.gmra.mrb[0].mxu0 %v4638
        %v4849 = vpop.f32.mrb[0].mxu0
        %v4850 = vadd.f32 %v4560, %v4849
        %v4851 = vpop.f32.mrb[0].mxu0
        %4852 = vmatprep.mubr.f32.mxu0 0.0
        %4853 = vmatmul.mubr.f32.gmra.mrb[0].mxu0 %v4641
        %v4854 = vpop.f32.mrb[0].mxu0
        %v4855 = vadd.f32 %v4560, %v4854
        %v4856 = vpop.f32.mrb[0].mxu0
        %4857 = vmatprep.mubr.f32.mxu0 0.0
        %4858 = vmatmul.mubr.f32.gmra.mrb[0].mxu0 %v4644
        %v4859 = vpop.f32.mrb[0].mxu0
        %v4860 = vadd.f32 %v4560, %v4859
        %v4861 = vpop.f32.mrb[0].mxu0
        %4862 = vmatprep.mubr.f32.mxu0 0.0
        %4863 = vmatmul.mubr.f32.gmra.mrb[0].mxu0 %v4647
        %v4864 = vpop.f32.mrb[0].mxu0
        %v4865 = vadd.f32 %v4560, %v4864
        %v4866 = vpop.f32.mrb[0].mxu0
        %4867 = vmatprep.mubr.f32.mxu0 0.0
        %4868 = vmatmul.mubr.f32.gmra.mrb[0].mxu0 %v4650
        %v4869 = vpop.f32.mrb[0].mxu0
        %v4870 = vadd.f32 %v4560, %v4869
        %v4871 = vpop.f32.mrb[0].mxu0
        %4872 = vmatprep.mubr.f32.mxu0 0.0
        %4873 = vmatmul.mubr.f32.gmra.mrb[0].mxu0 %v4653
        %v4874 = vpop.f32.mrb[0].mxu0
        %v4875 = vadd.f32 %v4560, %v4874
        %v4876 = vpop.f32.mrb[0].mxu0
        %4877 = vmatprep.mubr.f32.mxu0 0.0
        %4878 = vmatmul.mubr.f32.gmra.mrb[0].mxu0 %v4656
        %v4879 = vpop.f32.mrb[0].mxu0
        %v4880 = vadd.f32 %v4560, %v4879
        %v4881 = vpop.f32.mrb[0].mxu0
        %4882 = vdwg.mxu0
        %v4883 = vld [vmem:[%s9] sm:$0xff]
        %v4884 = vld [vmem:[%s9 + $0x8] sm:$0xff]
        %v4885 = vld [vmem:[%s9 + $0x10] sm:$0xff]
        %v4886 = vld [vmem:[%s9 + $0x18] sm:$0xff]
        %v4887 = vld [vmem:[%s9 + $0x20] sm:$0xff]
        %v4888 = vld [vmem:[%s9 + $0x28] sm:$0xff]
        %v4889 = vld [vmem:[%s9 + $0x30] sm:$0xff]
        %v4890 = vld [vmem:[%s9 + $0x38] sm:$0xff]
        %v4892 = vsel %vm542, %v385, 0
        %v4895 = vsel %vm542, %v386, 0
        %v4898 = vsel %vm542, %v387, 0
        %v4901 = vsel %vm542, %v388, 0
        %v4904 = vsel %vm542, %v389, 0
        %v4907 = vsel %vm542, %v390, 0
        %v4910 = vsel %vm542, %v391, 0
        %v4913 = vsel %vm542, %v392, 0
        %v4916 = vsel %vm542, %v393, 0
        %v4919 = vsel %vm542, %v394, 0
        %v4922 = vsel %vm542, %v395, 0
        %v4925 = vsel %vm542, %v396, 0
        %v4928 = vsel %vm542, %v397, 0
        %v4931 = vsel %vm542, %v398, 0
        %v4934 = vsel %vm542, %v399, 0
        %v4937 = vsel %vm542, %v400, 0
        %v4940 = vsel %vm542, %v401, 0
        %v4943 = vsel %vm542, %v402, 0
        %v4946 = vsel %vm542, %v403, 0
        %v4949 = vsel %vm542, %v404, 0
        %v4952 = vsel %vm542, %v405, 0
        %v4955 = vsel %vm542, %v406, 0
        %v4958 = vsel %vm542, %v407, 0
        %v4961 = vsel %vm542, %v408, 0
        %v4964 = vsel %vm542, %v409, 0
        %v4967 = vsel %vm542, %v410, 0
        %v4970 = vsel %vm542, %v411, 0
        %v4973 = vsel %vm542, %v412, 0
        %v4976 = vsel %vm542, %v413, 0
        %v4979 = vsel %vm542, %v414, 0
        %v4982 = vsel %vm542, %v415, 0
        %v4985 = vsel %vm542, %v416, 0
        %4987 = vmatprep.subr.mxu0 0.0
        %4988 = vmatpush1.msra.mxu0 %v4883
        %4989 = vmatprep.subr.mxu0 0.0
        %4990 = vmatpush1.msra.mxu0 %v4884
        %4991 = vmatprep.subr.mxu0 0.0
        %4992 = vmatpush1.msra.mxu0 %v4885
        %4993 = vmatprep.subr.mxu0 0.0
        %4994 = vmatpush1.msra.mxu0 %v4886
        %4995 = vmatprep.subr.mxu0 0.0
        %4996 = vmatpush1.msra.mxu0 %v4887
        %4997 = vmatprep.subr.mxu0 0.0
        %4998 = vmatpush1.msra.mxu0 %v4888
        %4999 = vmatprep.subr.mxu0 0.0
        %5000 = vmatpush1.msra.mxu0 %v4889
        %5001 = vmatprep.subr.mxu0 0.0
        %5002 = vmatpush1.msra.mxu0 %v4890
        %5003 = vmatprep.subr.mxu0 0.0
        %5004 = vmatpush1.msra.mxu0 0.0
        %5005 = vmatprep.subr.mxu0 0.0
        %5006 = vmatpush1.msra.mxu0 0.0
        %5007 = vmatprep.subr.mxu0 0.0
        %5008 = vmatpush1.msra.mxu0 0.0
        %5009 = vmatprep.subr.mxu0 0.0
        %5010 = vmatpush1.msra.mxu0 0.0
        %5011 = vmatprep.subr.mxu0 0.0
        %5012 = vmatpush1.msra.mxu0 0.0
        %5013 = vmatprep.subr.mxu0 0.0
        %5014 = vmatpush1.msra.mxu0 0.0
        %5015 = vmatprep.subr.mxu0 0.0
        %5016 = vmatpush1.msra.mxu0 0.0
        %5017 = vmatprep.subr.mxu0 0.0
        %5018 = vmatpush1.msra.mxu0 0.0
        %5019 = vmatprep.subr.mxu0 0.0
        %5020 = vmatpush1.msra.mxu0 0.0
        %5021 = vmatprep.subr.mxu0 0.0
        %5022 = vmatpush1.msra.mxu0 0.0
        %5023 = vmatprep.subr.mxu0 0.0
        %5024 = vmatpush1.msra.mxu0 0.0
        %5025 = vmatprep.subr.mxu0 0.0
        %5026 = vmatpush1.msra.mxu0 0.0
        %5027 = vmatprep.subr.mxu0 0.0
        %5028 = vmatpush1.msra.mxu0 0.0
        %5029 = vmatprep.subr.mxu0 0.0
        %5030 = vmatpush1.msra.mxu0 0.0
        %5031 = vmatprep.subr.mxu0 0.0
        %5032 = vmatpush1.msra.mxu0 0.0
        %5033 = vmatprep.subr.mxu0 0.0
        %5034 = vmatpush1.msra.mxu0 0.0
        %5035 = vmatprep.subr.mxu0 0.0
        %5036 = vmatpush1.msra.mxu0 0.0
        %5037 = vmatprep.subr.mxu0 0.0
        %5038 = vmatpush1.msra.mxu0 0.0
        %5039 = vmatprep.subr.mxu0 0.0
        %5040 = vmatpush1.msra.mxu0 0.0
        %5041 = vmatprep.subr.mxu0 0.0
        %5042 = vmatpush1.msra.mxu0 0.0
        %5043 = vmatprep.subr.mxu0 0.0
        %5044 = vmatpush1.msra.mxu0 0.0
        %5045 = vmatprep.subr.mxu0 0.0
        %5046 = vmatpush1.msra.mxu0 0.0
        %5047 = vmatprep.subr.mxu0 0.0
        %5048 = vmatpush1.msra.mxu0 0.0
        %5049 = vmatprep.subr.mxu0 0.0
        %5050 = vmatpush1.msra.mxu0 0.0
        %5051 = vmatprep.mubr.f32.mxu0 0.0
        %5052 = vmatmul.mubr.f32.gmra.mrb[0].mxu0 %v4892
        %v5053 = vpop.f32.mrb[0].mxu0
        %v5054 = vadd.f32 0.0, %v5053
        %v5055 = vpop.f32.mrb[0].mxu0
        %5056 = vmatprep.mubr.f32.mxu0 0.0
        %5057 = vmatmul.mubr.f32.gmra.mrb[0].mxu0 %v4895
        %v5058 = vpop.f32.mrb[0].mxu0
        %v5059 = vadd.f32 0.0, %v5058
        %v5060 = vpop.f32.mrb[0].mxu0
        %5061 = vmatprep.mubr.f32.mxu0 0.0
        %5062 = vmatmul.mubr.f32.gmra.mrb[0].mxu0 %v4898
        %v5063 = vpop.f32.mrb[0].mxu0
        %v5064 = vadd.f32 0.0, %v5063
        %v5065 = vpop.f32.mrb[0].mxu0
        %5066 = vmatprep.mubr.f32.mxu0 0.0
        %5067 = vmatmul.mubr.f32.gmra.mrb[0].mxu0 %v4901
        %v5068 = vpop.f32.mrb[0].mxu0
        %v5069 = vadd.f32 0.0, %v5068
        %v5070 = vpop.f32.mrb[0].mxu0
        %5071 = vmatprep.mubr.f32.mxu0 0.0
        %5072 = vmatmul.mubr.f32.gmra.mrb[0].mxu0 %v4904
        %v5073 = vpop.f32.mrb[0].mxu0
        %v5074 = vadd.f32 0.0, %v5073
        %v5075 = vpop.f32.mrb[0].mxu0
        %5076 = vmatprep.mubr.f32.mxu0 0.0
        %5077 = vmatmul.mubr.f32.gmra.mrb[0].mxu0 %v4907
        %v5078 = vpop.f32.mrb[0].mxu0
        %v5079 = vadd.f32 0.0, %v5078
        %v5080 = vpop.f32.mrb[0].mxu0
        %5081 = vmatprep.mubr.f32.mxu0 0.0
        %5082 = vmatmul.mubr.f32.gmra.mrb[0].mxu0 %v4910
        %v5083 = vpop.f32.mrb[0].mxu0
        %v5084 = vadd.f32 0.0, %v5083
        %v5085 = vpop.f32.mrb[0].mxu0
        %5086 = vmatprep.mubr.f32.mxu0 0.0
        %5087 = vmatmul.mubr.f32.gmra.mrb[0].mxu0 %v4913
        %v5088 = vpop.f32.mrb[0].mxu0
        %v5089 = vadd.f32 0.0, %v5088
        %v5090 = vpop.f32.mrb[0].mxu0
        %5091 = vmatprep.mubr.f32.mxu0 0.0
        %5092 = vmatmul.mubr.f32.gmra.mrb[0].mxu0 %v4916
        %v5093 = vpop.f32.mrb[0].mxu0
        %v5094 = vadd.f32 0.0, %v5093
        %v5095 = vpop.f32.mrb[0].mxu0
        %5096 = vmatprep.mubr.f32.mxu0 0.0
        %5097 = vmatmul.mubr.f32.gmra.mrb[0].mxu0 %v4919
        %v5098 = vpop.f32.mrb[0].mxu0
        %v5099 = vadd.f32 0.0, %v5098
        %v5100 = vpop.f32.mrb[0].mxu0
        %5101 = vmatprep.mubr.f32.mxu0 0.0
        %5102 = vmatmul.mubr.f32.gmra.mrb[0].mxu0 %v4922
        %v5103 = vpop.f32.mrb[0].mxu0
        %v5104 = vadd.f32 0.0, %v5103
        %v5105 = vpop.f32.mrb[0].mxu0
        %5106 = vmatprep.mubr.f32.mxu0 0.0
        %5107 = vmatmul.mubr.f32.gmra.mrb[0].mxu0 %v4925
        %v5108 = vpop.f32.mrb[0].mxu0
        %v5109 = vadd.f32 0.0, %v5108
        %v5110 = vpop.f32.mrb[0].mxu0
        %5111 = vmatprep.mubr.f32.mxu0 0.0
        %5112 = vmatmul.mubr.f32.gmra.mrb[0].mxu0 %v4928
        %v5113 = vpop.f32.mrb[0].mxu0
        %v5114 = vadd.f32 0.0, %v5113
        %v5115 = vpop.f32.mrb[0].mxu0
        %5116 = vmatprep.mubr.f32.mxu0 0.0
        %5117 = vmatmul.mubr.f32.gmra.mrb[0].mxu0 %v4931
        %v5118 = vpop.f32.mrb[0].mxu0
        %v5119 = vadd.f32 0.0, %v5118
        %v5120 = vpop.f32.mrb[0].mxu0
        %5121 = vmatprep.mubr.f32.mxu0 0.0
        %5122 = vmatmul.mubr.f32.gmra.mrb[0].mxu0 %v4934
        %v5123 = vpop.f32.mrb[0].mxu0
        %v5124 = vadd.f32 0.0, %v5123
        %v5125 = vpop.f32.mrb[0].mxu0
        %5126 = vmatprep.mubr.f32.mxu0 0.0
        %5127 = vmatmul.mubr.f32.gmra.mrb[0].mxu0 %v4937
        %v5128 = vpop.f32.mrb[0].mxu0
        %v5129 = vadd.f32 0.0, %v5128
        %v5130 = vpop.f32.mrb[0].mxu0
        %5131 = vmatprep.mubr.f32.mxu0 0.0
        %5132 = vmatmul.mubr.f32.gmra.mrb[0].mxu0 %v4940
        %v5133 = vpop.f32.mrb[0].mxu0
        %v5134 = vadd.f32 0.0, %v5133
        %v5135 = vpop.f32.mrb[0].mxu0
        %5136 = vmatprep.mubr.f32.mxu0 0.0
        %5137 = vmatmul.mubr.f32.gmra.mrb[0].mxu0 %v4943
        %v5138 = vpop.f32.mrb[0].mxu0
        %v5139 = vadd.f32 0.0, %v5138
        %v5140 = vpop.f32.mrb[0].mxu0
        %5141 = vmatprep.mubr.f32.mxu0 0.0
        %5142 = vmatmul.mubr.f32.gmra.mrb[0].mxu0 %v4946
        %v5143 = vpop.f32.mrb[0].mxu0
        %v5144 = vadd.f32 0.0, %v5143
        %v5145 = vpop.f32.mrb[0].mxu0
        %5146 = vmatprep.mubr.f32.mxu0 0.0
        %5147 = vmatmul.mubr.f32.gmra.mrb[0].mxu0 %v4949
        %v5148 = vpop.f32.mrb[0].mxu0
        %v5149 = vadd.f32 0.0, %v5148
        %v5150 = vpop.f32.mrb[0].mxu0
        %5151 = vmatprep.mubr.f32.mxu0 0.0
        %5152 = vmatmul.mubr.f32.gmra.mrb[0].mxu0 %v4952
        %v5153 = vpop.f32.mrb[0].mxu0
        %v5154 = vadd.f32 0.0, %v5153
        %v5155 = vpop.f32.mrb[0].mxu0
        %5156 = vmatprep.mubr.f32.mxu0 0.0
        %5157 = vmatmul.mubr.f32.gmra.mrb[0].mxu0 %v4955
        %v5158 = vpop.f32.mrb[0].mxu0
        %v5159 = vadd.f32 0.0, %v5158
        %v5160 = vpop.f32.mrb[0].mxu0
        %5161 = vmatprep.mubr.f32.mxu0 0.0
        %5162 = vmatmul.mubr.f32.gmra.mrb[0].mxu0 %v4958
        %v5163 = vpop.f32.mrb[0].mxu0
        %v5164 = vadd.f32 0.0, %v5163
        %v5165 = vpop.f32.mrb[0].mxu0
        %5166 = vmatprep.mubr.f32.mxu0 0.0
        %5167 = vmatmul.mubr.f32.gmra.mrb[0].mxu0 %v4961
        %v5168 = vpop.f32.mrb[0].mxu0
        %v5169 = vadd.f32 0.0, %v5168
        %v5170 = vpop.f32.mrb[0].mxu0
        %5171 = vmatprep.mubr.f32.mxu0 0.0
        %5172 = vmatmul.mubr.f32.gmra.mrb[0].mxu0 %v4964
        %v5173 = vpop.f32.mrb[0].mxu0
        %v5174 = vadd.f32 0.0, %v5173
        %v5175 = vpop.f32.mrb[0].mxu0
        %5176 = vmatprep.mubr.f32.mxu0 0.0
        %5177 = vmatmul.mubr.f32.gmra.mrb[0].mxu0 %v4967
        %v5178 = vpop.f32.mrb[0].mxu0
        %v5179 = vadd.f32 0.0, %v5178
        %v5180 = vpop.f32.mrb[0].mxu0
        %5181 = vmatprep.mubr.f32.mxu0 0.0
        %5182 = vmatmul.mubr.f32.gmra.mrb[0].mxu0 %v4970
        %v5183 = vpop.f32.mrb[0].mxu0
        %v5184 = vadd.f32 0.0, %v5183
        %v5185 = vpop.f32.mrb[0].mxu0
        %5186 = vmatprep.mubr.f32.mxu0 0.0
        %5187 = vmatmul.mubr.f32.gmra.mrb[0].mxu0 %v4973
        %v5188 = vpop.f32.mrb[0].mxu0
        %v5189 = vadd.f32 0.0, %v5188
        %v5190 = vpop.f32.mrb[0].mxu0
        %5191 = vmatprep.mubr.f32.mxu0 0.0
        %5192 = vmatmul.mubr.f32.gmra.mrb[0].mxu0 %v4976
        %v5193 = vpop.f32.mrb[0].mxu0
        %v5194 = vadd.f32 0.0, %v5193
        %v5195 = vpop.f32.mrb[0].mxu0
        %5196 = vmatprep.mubr.f32.mxu0 0.0
        %5197 = vmatmul.mubr.f32.gmra.mrb[0].mxu0 %v4979
        %v5198 = vpop.f32.mrb[0].mxu0
        %v5199 = vadd.f32 0.0, %v5198
        %v5200 = vpop.f32.mrb[0].mxu0
        %5201 = vmatprep.mubr.f32.mxu0 0.0
        %5202 = vmatmul.mubr.f32.gmra.mrb[0].mxu0 %v4982
        %v5203 = vpop.f32.mrb[0].mxu0
        %v5204 = vadd.f32 0.0, %v5203
        %v5205 = vpop.f32.mrb[0].mxu0
        %5206 = vmatprep.mubr.f32.mxu0 0.0
        %5207 = vmatmul.mubr.f32.gmra.mrb[0].mxu0 %v4985
        %v5208 = vpop.f32.mrb[0].mxu0
        %v5209 = vadd.f32 0.0, %v5208
        %v5210 = vpop.f32.mrb[0].mxu0
        %5211 = vdwg.mxu0
        %v5212 = vadd.f32 %v4725, %v5054
        %v5213 = vadd.f32 %v4730, %v5059
        %v5214 = vadd.f32 %v4735, %v5064
        %v5215 = vadd.f32 %v4740, %v5069
        %v5216 = vadd.f32 %v4745, %v5074
        %v5217 = vadd.f32 %v4750, %v5079
        %v5218 = vadd.f32 %v4755, %v5084
        %v5219 = vadd.f32 %v4760, %v5089
        %v5220 = vadd.f32 %v4765, %v5094
        %v5221 = vadd.f32 %v4770, %v5099
        %v5222 = vadd.f32 %v4775, %v5104
        %v5223 = vadd.f32 %v4780, %v5109
        %v5224 = vadd.f32 %v4785, %v5114
        %v5225 = vadd.f32 %v4790, %v5119
        %v5226 = vadd.f32 %v4795, %v5124
        %v5227 = vadd.f32 %v4800, %v5129
        %v5228 = vadd.f32 %v4805, %v5134
        %v5229 = vadd.f32 %v4810, %v5139
        %v5230 = vadd.f32 %v4815, %v5144
        %v5231 = vadd.f32 %v4820, %v5149
        %v5232 = vadd.f32 %v4825, %v5154
        %v5233 = vadd.f32 %v4830, %v5159
        %v5234 = vadd.f32 %v4835, %v5164
        %v5235 = vadd.f32 %v4840, %v5169
        %v5236 = vadd.f32 %v4845, %v5174
        %v5237 = vadd.f32 %v4850, %v5179
        %v5238 = vadd.f32 %v4855, %v5184
        %v5239 = vadd.f32 %v4860, %v5189
        %v5240 = vadd.f32 %v4865, %v5194
        %v5241 = vadd.f32 %v4870, %v5199
        %v5242 = vadd.f32 %v4875, %v5204
        %v5243 = vadd.f32 %v4880, %v5209
        %v5244 = vld [vmem:[%s10] sm:$0x1]
        %v5246 = vlaneseq
        %v5247 = vshrl.u32 %v5246, 7
        %v5248 = vsub.s32 0, %v5247
        %v5249 = vrot.slane %v5244, %v5248
        %v5251 = vadd.f32 %v5212, %v5249
        %v5252 = vadd.f32 %v5213, %v5249
        %v5253 = vadd.f32 %v5214, %v5249
        %v5254 = vadd.f32 %v5215, %v5249
        %v5255 = vadd.f32 %v5216, %v5249
        %v5256 = vadd.f32 %v5217, %v5249
        %v5257 = vadd.f32 %v5218, %v5249
        %v5258 = vadd.f32 %v5219, %v5249
        %v5259 = vadd.f32 %v5220, %v5249
        %v5260 = vadd.f32 %v5221, %v5249
        %v5261 = vadd.f32 %v5222, %v5249
        %v5262 = vadd.f32 %v5223, %v5249
        %v5263 = vadd.f32 %v5224, %v5249
        %v5264 = vadd.f32 %v5225, %v5249
        %v5265 = vadd.f32 %v5226, %v5249
        %v5266 = vadd.f32 %v5227, %v5249
        %v5267 = vadd.f32 %v5228, %v5249
        %v5268 = vadd.f32 %v5229, %v5249
        %v5269 = vadd.f32 %v5230, %v5249
        %v5270 = vadd.f32 %v5231, %v5249
        %v5271 = vadd.f32 %v5232, %v5249
        %v5272 = vadd.f32 %v5233, %v5249
        %v5273 = vadd.f32 %v5234, %v5249
        %v5274 = vadd.f32 %v5235, %v5249
        %v5275 = vadd.f32 %v5236, %v5249
        %v5276 = vadd.f32 %v5237, %v5249
        %v5277 = vadd.f32 %v5238, %v5249
        %v5278 = vadd.f32 %v5239, %v5249
        %v5279 = vadd.f32 %v5240, %v5249
        %v5280 = vadd.f32 %v5241, %v5249
        %v5281 = vadd.f32 %v5242, %v5249
        %v5282 = vadd.f32 %v5243, %v5249
        %5283 = vst [vmem:[%s379] sm:$0xff] %v5251
        %5284 = vst [vmem:[%s379 + $0x8] sm:$0xff] %v5252
        %5285 = vst [vmem:[%s379 + $0x10] sm:$0xff] %v5253
        %5286 = vst [vmem:[%s379 + $0x18] sm:$0xff] %v5254
        %5287 = vst [vmem:[%s379 + $0x20] sm:$0xff] %v5255
        %5288 = vst [vmem:[%s379 + $0x28] sm:$0xff] %v5256
        %5289 = vst [vmem:[%s379 + $0x30] sm:$0xff] %v5257
        %5290 = vst [vmem:[%s379 + $0x38] sm:$0xff] %v5258
        %5291 = vst [vmem:[%s379 + $0x40] sm:$0xff] %v5259
        %5292 = vst [vmem:[%s379 + $0x48] sm:$0xff] %v5260
        %5293 = vst [vmem:[%s379 + $0x50] sm:$0xff] %v5261
        %5294 = vst [vmem:[%s379 + $0x58] sm:$0xff] %v5262
        %5295 = vst [vmem:[%s379 + $0x60] sm:$0xff] %v5263
        %5296 = vst [vmem:[%s379 + $0x68] sm:$0xff] %v5264
        %5297 = vst [vmem:[%s379 + $0x70] sm:$0xff] %v5265
        %5298 = vst [vmem:[%s379 + $0x78] sm:$0xff] %v5266
        %5299 = vst [vmem:[%s379 + $0x80] sm:$0xff] %v5267
        %5300 = vst [vmem:[%s379 + $0x88] sm:$0xff] %v5268
        %5301 = vst [vmem:[%s379 + $0x90] sm:$0xff] %v5269
        %5302 = vst [vmem:[%s379 + $0x98] sm:$0xff] %v5270
        %5303 = vst [vmem:[%s379 + $0xa0] sm:$0xff] %v5271
        %5304 = vst [vmem:[%s379 + $0xa8] sm:$0xff] %v5272
        %5305 = vst [vmem:[%s379 + $0xb0] sm:$0xff] %v5273
        %5306 = vst [vmem:[%s379 + $0xb8] sm:$0xff] %v5274
        %5307 = vst [vmem:[%s379 + $0xc0] sm:$0xff] %v5275
        %5308 = vst [vmem:[%s379 + $0xc8] sm:$0xff] %v5276
        %5309 = vst [vmem:[%s379 + $0xd0] sm:$0xff] %v5277
        %5310 = vst [vmem:[%s379 + $0xd8] sm:$0xff] %v5278
        %5311 = vst [vmem:[%s379 + $0xe0] sm:$0xff] %v5279
        %5312 = vst [vmem:[%s379 + $0xe8] sm:$0xff] %v5280
        %5313 = vst [vmem:[%s379 + $0xf0] sm:$0xff] %v5281
        %5314 = vst [vmem:[%s379 + $0xf8] sm:$0xff] %v5282
        %s5315 = sand.u32 %s269, 1
        %s5316 = scalar_lea.sflag [#allocation4], %s5315
        %s5317 = sand.u32 %s269, 1
        %s5318 = smul.addr %s5317, 256
        %s5319 = scalar_lea.vmem [#allocation3], %s5318
        // Predicated region
        $region65: #{residual_forward.1} parent=63 // pred_check
          %p5320 = pneg %p279
        $region66: #{residual_forward.1} parent=63 // pred_check_branch
          %5322 = sbr.rel (%p5320) target = $region68
        $region67: #{residual_forward.1} parent=63 // pred_region
          %s5324 = ssub.s32 4096, 4096
          %5325 = vsyncadd %s5316, %s5324
          %s5326 = smul.addr %s25, 32
          %s5327 = smul.addr %s5326, 128
          %s5328 = scalar_lea.hbm %s11, %s5327
          %s5329 = sshll.u32 %s5319, 4
          %s5330 = int_to_ptr.vmem [resolvable:$true] %s5329
          %5335 = dma.vmem_to_hbm [thread:$0]  %s5330, 4096, %s5328, %s5316, 128, 128, 8
        $region68: #{residual_forward.1} parent=63 // pred_fallthru
          _
      $region64: #{residual_forward.1} parent=5 // pred_fallthru
        _
      %p5336 = scmp.le.s32.totalorder 2, %s20
      // Predicated region
      $region69: #{residual_forward.1} parent=5 // pred_check
        %p5337 = pneg %p5336
      $region70: #{residual_forward.1} parent=5 // pred_check_branch
        %5339 = sbr.rel (%p5337) target = $region72
      $region71: #{residual_forward.1} parent=5 // pred_region
        %s5340 = ssub.s32 %s20, 2
        // Predicated region
        $region73: #{residual_forward.1} parent=71 // pred_check
          %p5341 = pneg %p285
        $region74: #{residual_forward.1} parent=71 // pred_check_branch
          %5343 = sbr.rel (%p5341) target = $region76
        $region75: #{residual_forward.1} parent=71 // pred_region
          %s5344 = sand.u32 %s270, 1
          %s5345 = scalar_lea.sflag [#allocation4], %s5344
          %s5346 = sand.u32 %s270, 1
          %s5347 = smul.addr %s5346, 256
          %s5348 = scalar_lea.vmem [#allocation3], %s5347
          %5349 = dma.done %s5345, 4096
        $region76: #{residual_forward.1} parent=71 // pred_fallthru
          _
      $region72: #{residual_forward.1} parent=5 // pred_fallthru
        _
    $region6: #{residual_forward.1} parent=1 // loop_footer
      %s24 = sadd.s32 1, %s20
    $region7: #{residual_forward.1} parent=1 // loop_footer_branch
      %19 = sbr.rel target = $region3
    $region8: #{residual_forward.1} parent=1 // loop_exit
      _
    %5350 = vsyncpa [#allocation4], 1
    %s5351 = scalar_lea.sflag [#allocation4], 1
    %5352 = vsyncpa %s5351, 1

</llo_original>
